<compile_context>
chip_gen: v7x
topology: tpu7x:2x2x1
jax: 0.10.0
libtpu: 0.0.40
codegen_flags: <defaults>
</compile_context>

<pallas_src>
import functools

import jax
import jax.numpy as jnp
from jax.experimental import pallas as pl
from jax.experimental.pallas import tpu as pltpu

BN_EPS = 1e-5

C_IN = 256
C1, C2, C3, C4 = 512, 512, 256, 128
_BIAS_OFFS = (0, C1, C1 + C2, C1 + C2 + C3, C1 + C2 + C3 + C4)


def _round_up(x, m):
    return ((x + m - 1) // m) * m


def _device_kind():
    try:
        return jax.devices()[0].device_kind.lower()
    except Exception:
        return ""


def _disc_kernel(x_ref,
                 w1_ref, w2_ref, w3_ref, w4_ref, w5_ref,
                 b_ref, o_ref, *, act_dtype):
    # x tile: (C_IN, T), pixels on the lane axis.  Accepts f32 or bf16 input.
    x = x_ref[0].astype(jnp.bfloat16)

    # Concatenated BN shifts, sliced at static (8-aligned) sublane offsets.
    b1 = b_ref[_BIAS_OFFS[0]:_BIAS_OFFS[1], :].astype(act_dtype)
    b2 = b_ref[_BIAS_OFFS[1]:_BIAS_OFFS[2], :].astype(act_dtype)
    b3 = b_ref[_BIAS_OFFS[2]:_BIAS_OFFS[3], :].astype(act_dtype)
    b4 = b_ref[_BIAS_OFFS[3]:_BIAS_OFFS[4], :]                    # f32

    # Layers 1..3: MXU matmul (bf16 x bf16 -> f32 acc), bias + ReLU in
    # act_dtype (bf16 on v6e/v7x, f32 on v5e), emitting bf16 for the next MXU.
    h = jnp.dot(w1_ref[...], x, preferred_element_type=jnp.float32)
    h = jnp.maximum(h.astype(act_dtype) + b1, 0).astype(jnp.bfloat16)

    h = jnp.dot(w2_ref[...], h, preferred_element_type=jnp.float32)
    h = jnp.maximum(h.astype(act_dtype) + b2, 0).astype(jnp.bfloat16)

    h = jnp.dot(w3_ref[...], h, preferred_element_type=jnp.float32)
    h = jnp.maximum(h.astype(act_dtype) + b3, 0).astype(jnp.bfloat16)

    # Layer 4: keep f32 pointwise -- its output feeds the f32 VPU reduce below.
    h = jnp.dot(w4_ref[...], h, preferred_element_type=jnp.float32)
    h = jnp.maximum(h + b4, 0.0)                                  # (C4, T) f32

    # Layer 5: single output channel -> VPU multiply + sublane reduce (keeps
    # the MXU free; no 127/128 padding waste), sigmoid on one lane row.
    logits = jnp.sum(h * w5_ref[...], axis=0, keepdims=True)      # (1, T) f32
    o_ref[0] = jax.nn.sigmoid(logits)


def discriminator_pallas(x_bchw, kparams, *, tile_hw=None):
    """x_bchw: (B, C_IN, HW) f32 or bf16.  Returns (B, 1, HW) f32 sigmoid."""
    b, c, hw = x_bchw.shape
    assert c == C_IN

    w1, w2, w3, w4, w5, b_all = kparams

    kind = _device_kind()
    is_v7 = "v7" in kind
    # v5e and older have no bf16 VPU: keep pointwise bias+ReLU in f32 there.
    old_gen = any(t in kind for t in ("v2", "v3", "v4", "v5"))
    act_dtype = jnp.float32 if old_gen else jnp.bfloat16

    hw128 = _round_up(hw, 128)
    if tile_hw is None:
        # 2048 amortizes the ~0.35 us per-grid-step cost; allow 4096 on
        # v5e/v6e for large images (v7x has half the VMEM -> cap at 2048).
        tile_cap = 4096 if (not is_v7 and hw128 >= 4096) else 2048
    else:
        tile_cap = _round_up(tile_hw, 128)
    tile = min(tile_cap, hw128)

    # Guarantee >=2 grid blocks so both v7x TensorCores get work; costs at
    # most one extra grid step on single-TC chips (negligible).
    while b * pl.cdiv(hw, tile) < 2 and tile > 128:
        new_tile = max(128, _round_up(tile // 2, 128))
        if new_tile == tile:
            break
        tile = new_tile

    grid = (b, pl.cdiv(hw, tile))

    def const_spec(arr):
        # Constant index_map -> block never re-DMA'd across the grid; single
        # buffered because double-buffering a never-changing block is wasted
        # VMEM.
        return pl.BlockSpec(arr.shape, lambda bi, pi: (0,) * arr.ndim,
                            pipeline_mode=pl.Buffered(1))

    # Explicit VMEM limit (scoped defaults: 16 MiB v5e, 32 MiB v6e/v7x).
    vmem_limit = (48 if is_v7 else 64) * 1024 * 1024

    return pl.pallas_call(
        functools.partial(_disc_kernel, act_dtype=act_dtype),
        out_shape=jax.ShapeDtypeStruct((b, 1, hw), jnp.float32),
        grid_spec=pltpu.PrefetchScalarGridSpec(
            num_scalar_prefetch=0,
            grid=grid,
            in_specs=[
                pl.BlockSpec((1, C_IN, tile), lambda bi, pi: (bi, 0, pi)),
                const_spec(w1), const_spec(w2), const_spec(w3),
                const_spec(w4), const_spec(w5), const_spec(b_all),
            ],
            out_specs=pl.BlockSpec((1, 1, tile), lambda bi, pi: (bi, 0, pi)),
        ),
        compiler_params=pltpu.CompilerParams(
            dimension_semantics=("parallel", "parallel"),
            vmem_limit_bytes=vmem_limit,
        ),
    )(x_bchw, w1, w2, w3, w4, w5, b_all)


def make_raw_params(key):
    """Raw f32 params matching the PyTorch module.

    Conv2d: std=0.01 init, bias=False (as in the module).  BatchNorm2d is
    evaluated in inference mode; randomized gamma/beta/running stats emulate
    a trained BN so the fold + shift paths are exercised non-trivially.
    """
    kw = jax.random.split(key, 9)
    # PyTorch conv weight layout (C_out, C_in, 1, 1) -> stored as (C_out, C_in).
    w1 = 0.01 * jax.random.normal(kw[0], (C1, C_IN), jnp.float32)
    w2 = 0.01 * jax.random.normal(kw[1], (C2, C1), jnp.float32)
    w3 = 0.01 * jax.random.normal(kw[2], (C3, C2), jnp.float32)
    w4 = 0.01 * jax.random.normal(kw[3], (C4, C3), jnp.float32)
    w5 = 0.01 * jax.random.normal(kw[4], (1, C4), jnp.float32)

    def bn(c, k):
        kg, kb, km, kv = jax.random.split(k, 4)
        gamma = 1.0 + 0.2 * jax.random.normal(kg, (c,), jnp.float32)
        beta = 0.1 * jax.random.normal(kb, (c,), jnp.float32)
        mean = 0.1 * jax.random.normal(km, (c,), jnp.float32)
        var = 0.5 + jax.random.uniform(kv, (c,), jnp.float32)
        return gamma, beta, mean, var

    # TODO(synk): BatchNorm is implemented in inference mode (running stats);
    # training-mode batch statistics would need a cross-tile reduction pass.
    return dict(w=(w1, w2, w3, w4, w5),
                bn=(bn(C1, kw[5]), bn(C2, kw[6]), bn(C3, kw[7]), bn(C4, kw[8])))


def fold_params(raw):
    """Fold eval-mode BN scale into the conv weights (bf16 for the MXU) and
    concatenate the per-channel shifts into one (C1+C2+C3+C4, 1) f32 bias."""
    w1, w2, w3, w4, w5 = raw["w"]
    folded_w, shifts = [], []
    for w, (gamma, beta, mean, var) in zip((w1, w2, w3, w4), raw["bn"]):
        scale = gamma / jnp.sqrt(var + BN_EPS)             # (C_out,)
        shift = beta - mean * scale                        # (C_out,)
        folded_w.append((w * scale[:, None]).astype(jnp.bfloat16))
        shifts.append(shift[:, None].astype(jnp.float32))  # (C_out, 1)
    w5_col = w5.T.astype(jnp.float32)                      # (C4, 1), VPU path
    b_all = jnp.concatenate(shifts, axis=0)                # (1408, 1)
    return (*folded_w, w5_col, b_all)


def reference_forward(x_nchw, raw):
    """Plain-JAX f32 reference of the PyTorch forward (BN in eval mode)."""
    w1, w2, w3, w4, w5 = raw["w"]
    b, c, hh, ww = x_nchw.shape
    h = x_nchw.reshape(b, c, hh * ww)
    for w, (gamma, beta, mean, var) in zip((w1, w2, w3, w4), raw["bn"]):
        h = jnp.einsum("oi,bip->bop", w, h)
        scale = (gamma / jnp.sqrt(var + BN_EPS))[:, None]
        h = jnp.maximum((h - mean[:, None]) * scale + beta[:, None], 0.0)
    logits = jnp.einsum("oi,bip->bop", w5, h)
    return jax.nn.sigmoid(logits).reshape(b, 1, hh, ww)


@jax.jit
def discriminator_forward(x_nchw, kparams):
    b, c, hh, ww = x_nchw.shape
    out = discriminator_pallas(x_nchw.reshape(b, c, hh * ww), kparams)
    return out.reshape(b, 1, hh, ww)


if __name__ == "__main__":
    key = jax.random.PRNGKey(0)
    k_x, k_x2, k_p = jax.random.split(key, 3)

    raw = make_raw_params(k_p)
    kparams = fold_params(raw)

    # Small input consistent with the module: channel count must be 256.
    B, H, W = 2, 16, 16
    x = jax.random.normal(k_x, (B, C_IN, H, W), jnp.float32)
    out = jax.block_until_ready(discriminator_forward(x, kparams))
    ref = jax.block_until_ready(reference_forward(x, raw))
    assert out.shape == (B, 1, H, W)
    # bf16 matmuls/pointwise with f32 accumulation -> looser tolerance.
    assert jnp.allclose(out, ref, atol=2e-3, rtol=1e-2), float(
        jnp.max(jnp.abs(out - ref)))

    # Ragged spatial size (exercises the no-pad partial-tile path).
    H2, W2 = 9, 11  # H*W = 99, not a multiple of 128
    x2 = jax.random.normal(k_x2, (1, C_IN, H2, W2), jnp.float32)
    out2 = jax.block_until_ready(discriminator_forward(x2, kparams))
    ref2 = jax.block_until_ready(reference_forward(x2, raw))
    assert out2.shape == (1, 1, H2, W2)
    assert jnp.allclose(out2, ref2, atol=2e-3, rtol=1e-2), float(
        jnp.max(jnp.abs(out2 - ref2)))

    print("KERNEL_OK")
</pallas_src>

<mosaic_0001>
module attributes {stable_mosaic.version = 11 : i64} {
  func.func @_disc_kernel(%arg0: i32, %arg1: i32, %arg2: memref<1x256x256xf32, #tpu.memory_space<vmem>>, %arg3: memref<512x256xbf16, #tpu.memory_space<vmem>>, %arg4: memref<512x512xbf16, #tpu.memory_space<vmem>>, %arg5: memref<256x512xbf16, #tpu.memory_space<vmem>>, %arg6: memref<128x256xbf16, #tpu.memory_space<vmem>>, %arg7: memref<128x1xf32, #tpu.memory_space<vmem>>, %arg8: memref<1408x1xf32, #tpu.memory_space<vmem>>, %arg9: memref<1x1x256xf32, #tpu.memory_space<vmem>>) attributes {dimension_semantics = [#tpu.dimension_semantics<parallel>, #tpu.dimension_semantics<parallel>], iteration_bounds = array<i64: 2, 1>, scalar_prefetch = 0 : i64, scratch_operands = 0 : i64, tpu.core_type = #tpu.core_type<tc>, window_params = [{transform_indices = @transform_0, window_bounds = array<i64: 1, 256, 256>}, {pipeline_mode = #tpu.pipeline_mode<synchronous>, transform_indices = @transform_1, window_bounds = array<i64: 512, 256>}, {pipeline_mode = #tpu.pipeline_mode<synchronous>, transform_indices = @transform_2, window_bounds = array<i64: 512, 512>}, {pipeline_mode = #tpu.pipeline_mode<synchronous>, transform_indices = @transform_3, window_bounds = array<i64: 256, 512>}, {pipeline_mode = #tpu.pipeline_mode<synchronous>, transform_indices = @transform_4, window_bounds = array<i64: 128, 256>}, {pipeline_mode = #tpu.pipeline_mode<synchronous>, transform_indices = @transform_5, window_bounds = array<i64: 128, 1>}, {pipeline_mode = #tpu.pipeline_mode<synchronous>, transform_indices = @transform_6, window_bounds = array<i64: 1408, 1>}, {transform_indices = @transform_7, window_bounds = array<i64: 1, 1, 256>}]} {
    %c0 = arith.constant 0 : index
    %c0_0 = arith.constant 0 : index
    %c0_1 = arith.constant 0 : index
    %0 = vector.load %arg2[%c0, %c0_0, %c0_1] : memref<1x256x256xf32, #tpu.memory_space<vmem>>, vector<1x256x256xf32>
    %1 = vector.shape_cast %0 : vector<1x256x256xf32> to vector<256x256xf32>
    %2 = arith.truncf %1 : vector<256x256xf32> to vector<256x256xbf16>
    %c0_2 = arith.constant 0 : index
    %c0_3 = arith.constant 0 : index
    %3 = vector.load %arg8[%c0_2, %c0_3] : memref<1408x1xf32, #tpu.memory_space<vmem>>, vector<512x1xf32>
    %4 = arith.truncf %3 : vector<512x1xf32> to vector<512x1xbf16>
    %c512 = arith.constant 512 : index
    %c0_4 = arith.constant 0 : index
    %5 = vector.load %arg8[%c512, %c0_4] : memref<1408x1xf32, #tpu.memory_space<vmem>>, vector<512x1xf32>
    %6 = arith.truncf %5 : vector<512x1xf32> to vector<512x1xbf16>
    %c1024 = arith.constant 1024 : index
    %c0_5 = arith.constant 0 : index
    %7 = vector.load %arg8[%c1024, %c0_5] : memref<1408x1xf32, #tpu.memory_space<vmem>>, vector<256x1xf32>
    %8 = arith.truncf %7 : vector<256x1xf32> to vector<256x1xbf16>
    %c1280 = arith.constant 1280 : index
    %c0_6 = arith.constant 0 : index
    %9 = vector.load %arg8[%c1280, %c0_6] : memref<1408x1xf32, #tpu.memory_space<vmem>>, vector<128x1xf32>
    %c0_7 = arith.constant 0 : index
    %c0_8 = arith.constant 0 : index
    %10 = vector.load %arg3[%c0_7, %c0_8] : memref<512x256xbf16, #tpu.memory_space<vmem>>, vector<512x256xbf16>
    %cst = arith.constant dense<0.000000e+00> : vector<512x256xf32>
    %11 = tpu.matmul %10, %2, %cst {dimension_numbers = #tpu.dot_dimension_numbers<[1], [0], [0], [1], [0, 0, 1, 1], [], []>} : vector<512x256xbf16>, vector<256x256xbf16>, vector<512x256xf32> -> vector<512x256xf32>
    %12 = arith.truncf %11 : vector<512x256xf32> to vector<512x256xbf16>
    %13 = vector.broadcast %4 : vector<512x1xbf16> to vector<512x256xbf16>
    %14 = arith.addf %12, %13 : vector<512x256xbf16>
    %cst_9 = arith.constant 0.000000e+00 : bf16
    %15 = vector.broadcast %cst_9 : bf16 to vector<512x256xbf16>
    %16 = arith.maximumf %14, %15 : vector<512x256xbf16>
    %c0_10 = arith.constant 0 : index
    %c0_11 = arith.constant 0 : index
    %17 = vector.load %arg4[%c0_10, %c0_11] : memref<512x512xbf16, #tpu.memory_space<vmem>>, vector<512x512xbf16>
    %cst_12 = arith.constant dense<0.000000e+00> : vector<512x256xf32>
    %18 = tpu.matmul %17, %16, %cst_12 {dimension_numbers = #tpu.dot_dimension_numbers<[1], [0], [0], [1], [0, 0, 1, 1], [], []>} : vector<512x512xbf16>, vector<512x256xbf16>, vector<512x256xf32> -> vector<512x256xf32>
    %19 = arith.truncf %18 : vector<512x256xf32> to vector<512x256xbf16>
    %20 = vector.broadcast %6 : vector<512x1xbf16> to vector<512x256xbf16>
    %21 = arith.addf %19, %20 : vector<512x256xbf16>
    %cst_13 = arith.constant 0.000000e+00 : bf16
    %22 = vector.broadcast %cst_13 : bf16 to vector<512x256xbf16>
    %23 = arith.maximumf %21, %22 : vector<512x256xbf16>
    %c0_14 = arith.constant 0 : index
    %c0_15 = arith.constant 0 : index
    %24 = vector.load %arg5[%c0_14, %c0_15] : memref<256x512xbf16, #tpu.memory_space<vmem>>, vector<256x512xbf16>
    %cst_16 = arith.constant dense<0.000000e+00> : vector<256x256xf32>
    %25 = tpu.matmul %24, %23, %cst_16 {dimension_numbers = #tpu.dot_dimension_numbers<[1], [0], [0], [1], [0, 0, 1, 1], [], []>} : vector<256x512xbf16>, vector<512x256xbf16>, vector<256x256xf32> -> vector<256x256xf32>
    %26 = arith.truncf %25 : vector<256x256xf32> to vector<256x256xbf16>
    %27 = vector.broadcast %8 : vector<256x1xbf16> to vector<256x256xbf16>
    %28 = arith.addf %26, %27 : vector<256x256xbf16>
    %cst_17 = arith.constant 0.000000e+00 : bf16
    %29 = vector.broadcast %cst_17 : bf16 to vector<256x256xbf16>
    %30 = arith.maximumf %28, %29 : vector<256x256xbf16>
    %c0_18 = arith.constant 0 : index
    %c0_19 = arith.constant 0 : index
    %31 = vector.load %arg6[%c0_18, %c0_19] : memref<128x256xbf16, #tpu.memory_space<vmem>>, vector<128x256xbf16>
    %cst_20 = arith.constant dense<0.000000e+00> : vector<128x256xf32>
    %32 = tpu.matmul %31, %30, %cst_20 {dimension_numbers = #tpu.dot_dimension_numbers<[1], [0], [0], [1], [0, 0, 1, 1], [], []>} : vector<128x256xbf16>, vector<256x256xbf16>, vector<128x256xf32> -> vector<128x256xf32>
    %33 = vector.broadcast %9 : vector<128x1xf32> to vector<128x256xf32>
    %34 = arith.addf %32, %33 : vector<128x256xf32>
    %cst_21 = arith.constant 0.000000e+00 : f32
    %35 = vector.broadcast %cst_21 : f32 to vector<128x256xf32>
    %36 = arith.maximumf %34, %35 : vector<128x256xf32>
    %c0_22 = arith.constant 0 : index
    %c0_23 = arith.constant 0 : index
    %37 = vector.load %arg7[%c0_22, %c0_23] : memref<128x1xf32, #tpu.memory_space<vmem>>, vector<128x1xf32>
    %38 = vector.broadcast %37 : vector<128x1xf32> to vector<128x256xf32>
    %39 = arith.mulf %36, %38 : vector<128x256xf32>
    %cst_24 = arith.constant dense<0.000000e+00> : vector<256xf32>
    %40 = vector.multi_reduction <add>, %39, %cst_24 [0] : vector<128x256xf32> to vector<256xf32>
    %41 = vector.shape_cast %40 : vector<256xf32> to vector<1x256xf32>
    %42 = arith.negf %41 : vector<1x256xf32>
    %43 = math.exp %42 : vector<1x256xf32>
    %cst_25 = arith.constant 1.000000e+00 : f32
    %44 = vector.broadcast %cst_25 : f32 to vector<1x256xf32>
    %45 = arith.addf %44, %43 : vector<1x256xf32>
    %46 = arith.divf %44, %45 : vector<1x256xf32>
    %c0_26 = arith.constant 0 : index
    %c0_27 = arith.constant 0 : index
    %c0_28 = arith.constant 0 : index
    %47 = vector.load %arg9[%c0_26, %c0_27, %c0_28] : memref<1x1x256xf32, #tpu.memory_space<vmem>>, vector<1x1x256xf32>
    %48 = vector.shape_cast %47 : vector<1x1x256xf32> to vector<1x256xf32>
    %49 = vector.shape_cast %46 : vector<1x256xf32> to vector<1x1x256xf32>
    tpu.vector_store %arg9[%c0_26, %c0_27, %c0_28], %49 {strides = array<i32>} : memref<1x1x256xf32, #tpu.memory_space<vmem>>, vector<1x1x256xf32>,
    return
  }
  func.func @transform_0(%arg0: i32, %arg1: i32) -> (i32, i32, i32) {
    %c0_i32 = arith.constant 0 : i32
    %c0_i32_0 = arith.constant 0 : i32
    return %arg0, %c0_i32, %arg1 : i32, i32, i32
  }
  func.func @transform_1(%arg0: i32, %arg1: i32) -> (i32, i32) {
    %c0_i32 = arith.constant 0 : i32
    %c0_i32_0 = arith.constant 0 : i32
    %c0_i32_1 = arith.constant 0 : i32
    return %c0_i32, %c0_i32_0 : i32, i32
  }
  func.func @transform_2(%arg0: i32, %arg1: i32) -> (i32, i32) {
    %c0_i32 = arith.constant 0 : i32
    %c0_i32_0 = arith.constant 0 : i32
    %c0_i32_1 = arith.constant 0 : i32
    return %c0_i32, %c0_i32_0 : i32, i32
  }
  func.func @transform_3(%arg0: i32, %arg1: i32) -> (i32, i32) {
    %c0_i32 = arith.constant 0 : i32
    %c0_i32_0 = arith.constant 0 : i32
    %c0_i32_1 = arith.constant 0 : i32
    return %c0_i32, %c0_i32_0 : i32, i32
  }
  func.func @transform_4(%arg0: i32, %arg1: i32) -> (i32, i32) {
    %c0_i32 = arith.constant 0 : i32
    %c0_i32_0 = arith.constant 0 : i32
    %c0_i32_1 = arith.constant 0 : i32
    return %c0_i32, %c0_i32_0 : i32, i32
  }
  func.func @transform_5(%arg0: i32, %arg1: i32) -> (i32, i32) {
    %c0_i32 = arith.constant 0 : i32
    %c0_i32_0 = arith.constant 0 : i32
    %c0_i32_1 = arith.constant 0 : i32
    return %c0_i32, %c0_i32_0 : i32, i32
  }
  func.func @transform_6(%arg0: i32, %arg1: i32) -> (i32, i32) {
    %c0_i32 = arith.constant 0 : i32
    %c0_i32_0 = arith.constant 0 : i32
    %c0_i32_1 = arith.constant 0 : i32
    return %c0_i32, %c0_i32_0 : i32, i32
  }
  func.func @transform_7(%arg0: i32, %arg1: i32) -> (i32, i32, i32) {
    %c0_i32 = arith.constant 0 : i32
    %c0_i32_0 = arith.constant 0 : i32
    return %arg0, %c0_i32, %arg1 : i32, i32, i32
  }
}

</mosaic_0001>

<llo_original>
// kernel: discriminator_forward.1
$region0: #{discriminator_forward.1}
  #allocation0 [shape = 'u32[]', space=smem, size = 0x4, offset = 0x4, fixed_abs, tag = 'smem constant byte address 0x4 - core index']
  #allocation1 [shape = 'u32[144,128]{1,0:T(1,128)}', space=vmem, size = 0x12000, scoped, tag = 'internal scratch']
  %s0 = inlined_call_operand.hbm [shape: f32[2,256,256], index: 0, kind: input, shape index: {}]
  %s1 = inlined_call_operand.hbm [shape: bf16[512,256], index: 1, kind: input, shape index: {}]
  %s2 = inlined_call_operand.hbm [shape: bf16[512,512], index: 2, kind: input, shape index: {}]
  %s3 = inlined_call_operand.hbm [shape: bf16[256,512], index: 3, kind: input, shape index: {}]
  %s4 = inlined_call_operand.hbm [shape: bf16[128,256], index: 4, kind: input, shape index: {}]
  %s5 = inlined_call_operand.hbm [shape: f32[128,1], index: 5, kind: input, shape index: {}]
  %s6 = inlined_call_operand.hbm [shape: f32[1408,1], index: 6, kind: input, shape index: {}]
  %s7 = inlined_call_operand.hbm [shape: f32[2,1,256], index: 7, kind: output, shape index: {}]
  %s8 = sld [smem:[#allocation0]]
  $region89: #{discriminator_forward.1} parent=0
    _
  %s10 = ssub.s32 1, %s8
  %s11 = scalar_select 0, %s10, %s8
  $region1: #{discriminator_forward.1} parent=0
    #allocation2 [shape = 'u8[524288]{0}', space=vmem, size = 0x80000, scoped, tag = 'input window, operand 0']
    #allocation3 [shape = 's32[2]{0}', space=sflag, size = 0x8, scoped, tag = 'scoped memory for discriminator_forward.1']
    #allocation4 [shape = 's32[2]{0}', space=sflag, size = 0x8, scoped, tag = 'scoped memory for discriminator_forward.1']
    #allocation5 [shape = 'u8[262144]{0}', space=vmem, size = 0x40000, scoped, tag = 'input window, operand 1, single buffered']
    #allocation6 [shape = 's32[1]{0}', space=sflag, size = 0x4, scoped, tag = 'scoped memory for discriminator_forward.1']
    #allocation7 [shape = 'u8[524288]{0}', space=vmem, size = 0x80000, scoped, tag = 'input window, operand 2, single buffered']
    #allocation8 [shape = 'u8[262144]{0}', space=vmem, size = 0x40000, scoped, tag = 'input window, operand 3, single buffered']
    #allocation9 [shape = 's32[1]{0}', space=sflag, size = 0x4, scoped, tag = 'scoped memory for discriminator_forward.1']
    #allocation10 [shape = 'u8[65536]{0}', space=vmem, size = 0x10000, scoped, tag = 'input window, operand 4, single buffered']
    #allocation11 [shape = 'u8[65536]{0}', space=vmem, size = 0x10000, scoped, tag = 'input window, operand 5, single buffered']
    #allocation12 [shape = 's32[1]{0}', space=sflag, size = 0x4, scoped, tag = 'scoped memory for discriminator_forward.1']
    #allocation13 [shape = 'u8[720896]{0}', space=vmem, size = 0xb0000, scoped, tag = 'input window, operand 6, single buffered']
    #allocation14 [shape = 'u8[2048]{0}', space=vmem, size = 0x800, scoped, tag = 'output window, operand 0']
    %12 = vsyncpa [#allocation3], 0
    %s13 = scalar_lea.sflag [#allocation3], 1
    %14 = vsyncpa %s13, 0
    %15 = vsyncpa [#allocation6], 0
    %16 = vsyncpa [#allocation9], 0
    %17 = vsyncpa [#allocation12], 0
    %18 = vsyncpa [#allocation4], 0
    %s19 = scalar_lea.sflag [#allocation4], 1
    %20 = vsyncpa %s19, 0
    loop: start=0, step=1, limit=4
    $region2: #{discriminator_forward.1} parent=1 // loop_pre_header
      _
    $region3: #{discriminator_forward.1} parent=1 // loop_header
      %s22 = sphi 0, %s26
      %p23 = scmp.ge.s32.totalorder %s22, 4
      %s29 = sphi 0, %s41
      %s30 = sphi 0, %s37
      %s31 = sphi 0, %s29
      %s32 = sphi 0, %s30
      %s33 = sphi 0, %s31
      %s34 = sphi 0, %s32
      %s46 = sphi 0, %s48
      %s49 = sphi 0, %s46
      %s50 = sphi 0, %s49
      %s66 = sphi 0, %s50
      %s70 = sphi 0, %s70
      %s72 = sphi 0, %s70
      %s73 = sphi 0, %s72
      %s87 = sphi 0, %s73
      %s91 = sphi 0, %s91
      %s93 = sphi 0, %s91
      %s94 = sphi 0, %s93
      %s108 = sphi 0, %s94
      %s112 = sphi 0, %s112
      %s114 = sphi 0, %s112
      %s115 = sphi 0, %s114
      %s129 = sphi 0, %s115
      %s133 = sphi 0, %s133
      %s135 = sphi 0, %s133
      %s136 = sphi 0, %s135
      %s150 = sphi 0, %s136
      %s154 = sphi 0, %s154
      %s156 = sphi 0, %s154
      %s157 = sphi 0, %s156
      %s171 = sphi 0, %s157
      %s175 = sphi 0, %s175
      %s177 = sphi 0, %s175
      %s178 = sphi 0, %s177
      %s192 = sphi 0, %s178
      %s200 = sphi 0, %s202
      %s203 = sphi 0, %s200
      %s204 = sphi 0, %s203
      %s220 = sphi 0, %s204
    $region4: #{discriminator_forward.1} parent=1 // loop_header_branch
      %25 = sbr.rel (%p23) target = $region8
    $region5: #{discriminator_forward.1} parent=1 // loop_body
      %s27 = ssub.s32 %s22, 1
      %s28 = ssub.s32 %s22, 2
      %s35 = sadd.s32 1, %s30
      %p36 = scmp.ge.s32.totalorder %s35, 1
      %s37 = scalar_select %p36, 0, %s35
      %s38 = sadd.s32 1, %s29
      %s39 = scalar_select %p36, %s38, %s29
      %p40 = scmp.ge.s32.totalorder %s39, 2
      %s41 = scalar_select %p40, 0, %s39
      %s42 = ssub.s32 %s29, %s41
      %s43 = ssub.s32 %s30, %s37
      %s44 = sor.u32 %s42, %s43
      %p45 = scmp.eq.s32.totalorder %s44, 0
      %s47 = sadd.s32 %s46, 1
      %s48 = scalar_select %p45, %s46, %s47
      %p51 = pneg %p45
      %p52 = scmp.eq.s32.totalorder %s22, 1
      %p53 = por %p51, %p52
      %p54 = scmp.ne.s32.totalorder %s46, %s49
      %p55 = scmp.eq.s32.totalorder %s22, 0
      %p56 = por %p54, %p55
      %p57 = scmp.ne.s32.totalorder %s46, %s49
      %p58 = scmp.eq.s32.totalorder %s27, 1
      %p59 = por %p57, %p58
      %p60 = scmp.ne.s32.totalorder %s49, %s50
      %p61 = scmp.eq.s32.totalorder %s27, 0
      %p62 = por %p60, %p61
      %p63 = scmp.ne.s32.totalorder %s49, %s50
      %p64 = scmp.eq.s32.totalorder %s28, 1
      %p65 = por %p63, %p64
      %p67 = scmp.ne.s32.totalorder %s50, %s66
      %p68 = scmp.eq.s32.totalorder %s28, 0
      %p69 = por %p67, %p68
      %s71 = sadd.s32 %s70, 1
      %p74 = scmp.eq.s32.totalorder %s22, 1
      %p75 = scmp.ne.s32.totalorder %s70, %s72
      %p76 = scmp.eq.s32.totalorder %s22, 0
      %p77 = por %p75, %p76
      %p78 = scmp.ne.s32.totalorder %s70, %s72
      %p79 = scmp.eq.s32.totalorder %s27, 1
      %p80 = por %p78, %p79
      %p81 = scmp.ne.s32.totalorder %s72, %s73
      %p82 = scmp.eq.s32.totalorder %s27, 0
      %p83 = por %p81, %p82
      %p84 = scmp.ne.s32.totalorder %s72, %s73
      %p85 = scmp.eq.s32.totalorder %s28, 1
      %p86 = por %p84, %p85
      %p88 = scmp.ne.s32.totalorder %s73, %s87
      %p89 = scmp.eq.s32.totalorder %s28, 0
      %p90 = por %p88, %p89
      %s92 = sadd.s32 %s91, 1
      %p95 = scmp.eq.s32.totalorder %s22, 1
      %p96 = scmp.ne.s32.totalorder %s91, %s93
      %p97 = scmp.eq.s32.totalorder %s22, 0
      %p98 = por %p96, %p97
      %p99 = scmp.ne.s32.totalorder %s91, %s93
      %p100 = scmp.eq.s32.totalorder %s27, 1
      %p101 = por %p99, %p100
      %p102 = scmp.ne.s32.totalorder %s93, %s94
      %p103 = scmp.eq.s32.totalorder %s27, 0
      %p104 = por %p102, %p103
      %p105 = scmp.ne.s32.totalorder %s93, %s94
      %p106 = scmp.eq.s32.totalorder %s28, 1
      %p107 = por %p105, %p106
      %p109 = scmp.ne.s32.totalorder %s94, %s108
      %p110 = scmp.eq.s32.totalorder %s28, 0
      %p111 = por %p109, %p110
      %s113 = sadd.s32 %s112, 1
      %p116 = scmp.eq.s32.totalorder %s22, 1
      %p117 = scmp.ne.s32.totalorder %s112, %s114
      %p118 = scmp.eq.s32.totalorder %s22, 0
      %p119 = por %p117, %p118
      %p120 = scmp.ne.s32.totalorder %s112, %s114
      %p121 = scmp.eq.s32.totalorder %s27, 1
      %p122 = por %p120, %p121
      %p123 = scmp.ne.s32.totalorder %s114, %s115
      %p124 = scmp.eq.s32.totalorder %s27, 0
      %p125 = por %p123, %p124
      %p126 = scmp.ne.s32.totalorder %s114, %s115
      %p127 = scmp.eq.s32.totalorder %s28, 1
      %p128 = por %p126, %p127
      %p130 = scmp.ne.s32.totalorder %s115, %s129
      %p131 = scmp.eq.s32.totalorder %s28, 0
      %p132 = por %p130, %p131
      %s134 = sadd.s32 %s133, 1
      %p137 = scmp.eq.s32.totalorder %s22, 1
      %p138 = scmp.ne.s32.totalorder %s133, %s135
      %p139 = scmp.eq.s32.totalorder %s22, 0
      %p140 = por %p138, %p139
      %p141 = scmp.ne.s32.totalorder %s133, %s135
      %p142 = scmp.eq.s32.totalorder %s27, 1
      %p143 = por %p141, %p142
      %p144 = scmp.ne.s32.totalorder %s135, %s136
      %p145 = scmp.eq.s32.totalorder %s27, 0
      %p146 = por %p144, %p145
      %p147 = scmp.ne.s32.totalorder %s135, %s136
      %p148 = scmp.eq.s32.totalorder %s28, 1
      %p149 = por %p147, %p148
      %p151 = scmp.ne.s32.totalorder %s136, %s150
      %p152 = scmp.eq.s32.totalorder %s28, 0
      %p153 = por %p151, %p152
      %s155 = sadd.s32 %s154, 1
      %p158 = scmp.eq.s32.totalorder %s22, 1
      %p159 = scmp.ne.s32.totalorder %s154, %s156
      %p160 = scmp.eq.s32.totalorder %s22, 0
      %p161 = por %p159, %p160
      %p162 = scmp.ne.s32.totalorder %s154, %s156
      %p163 = scmp.eq.s32.totalorder %s27, 1
      %p164 = por %p162, %p163
      %p165 = scmp.ne.s32.totalorder %s156, %s157
      %p166 = scmp.eq.s32.totalorder %s27, 0
      %p167 = por %p165, %p166
      %p168 = scmp.ne.s32.totalorder %s156, %s157
      %p169 = scmp.eq.s32.totalorder %s28, 1
      %p170 = por %p168, %p169
      %p172 = scmp.ne.s32.totalorder %s157, %s171
      %p173 = scmp.eq.s32.totalorder %s28, 0
      %p174 = por %p172, %p173
      %s176 = sadd.s32 %s175, 1
      %p179 = scmp.eq.s32.totalorder %s22, 1
      %p180 = scmp.ne.s32.totalorder %s175, %s177
      %p181 = scmp.eq.s32.totalorder %s22, 0
      %p182 = por %p180, %p181
      %p183 = scmp.ne.s32.totalorder %s175, %s177
      %p184 = scmp.eq.s32.totalorder %s27, 1
      %p185 = por %p183, %p184
      %p186 = scmp.ne.s32.totalorder %s177, %s178
      %p187 = scmp.eq.s32.totalorder %s27, 0
      %p188 = por %p186, %p187
      %p189 = scmp.ne.s32.totalorder %s177, %s178
      %p190 = scmp.eq.s32.totalorder %s28, 1
      %p191 = por %p189, %p190
      %p193 = scmp.ne.s32.totalorder %s178, %s192
      %p194 = scmp.eq.s32.totalorder %s28, 0
      %p195 = por %p193, %p194
      %s196 = ssub.s32 %s29, %s41
      %s197 = ssub.s32 %s30, %s37
      %s198 = sor.u32 %s196, %s197
      %p199 = scmp.eq.s32.totalorder %s198, 0
      %s201 = sadd.s32 %s200, 1
      %s202 = scalar_select %p199, %s200, %s201
      %p205 = pneg %p199
      %p206 = scmp.eq.s32.totalorder %s22, 1
      %p207 = por %p205, %p206
      %p208 = scmp.ne.s32.totalorder %s200, %s203
      %p209 = scmp.eq.s32.totalorder %s22, 0
      %p210 = por %p208, %p209
      %p211 = scmp.ne.s32.totalorder %s200, %s203
      %p212 = scmp.eq.s32.totalorder %s27, 1
      %p213 = por %p211, %p212
      %p214 = scmp.ne.s32.totalorder %s203, %s204
      %p215 = scmp.eq.s32.totalorder %s27, 0
      %p216 = por %p214, %p215
      %p217 = scmp.ne.s32.totalorder %s203, %s204
      %p218 = scmp.eq.s32.totalorder %s28, 1
      %p219 = por %p217, %p218
      %p221 = scmp.ne.s32.totalorder %s204, %s220
      %p222 = scmp.eq.s32.totalorder %s28, 0
      %p223 = por %p221, %p222
      %p224 = scmp.le.s32.totalorder 1, %s22
      %p225 = scmp.lt.s32.totalorder %s22, 3
      %p226 = pnand %p224, %p225
      %p227 = pneg %p226
      // Predicated region
      $region9: #{discriminator_forward.1} parent=5 // pred_check
        _
      $region10: #{discriminator_forward.1} parent=5 // pred_check_branch
        %229 = sbr.rel (%p226) target = $region12
      $region11: #{discriminator_forward.1} parent=5 // pred_region
        %s230 = ssub.s32 %s22, 1
        // Predicated region
        $region13: #{discriminator_forward.1} parent=11 // pred_check
          %p231 = pneg %p83
        $region14: #{discriminator_forward.1} parent=11 // pred_check_branch
          %233 = sbr.rel (%p231) target = $region16
        $region15: #{discriminator_forward.1} parent=11 // pred_region
          %s235 = ssub.s32 8192, 8192
          %236 = vsyncadd [#allocation6], %s235
          %s237 = sshll.u32 [#allocation5], 4
          %s238 = int_to_ptr.vmem [resolvable:$true] %s237
          %243 = dma.hbm_to_vmem [thread:$0]  %s1, 8192, %s238, [#allocation6], 128, 128, 8
        $region16: #{discriminator_forward.1} parent=11 // pred_fallthru
          _
        // Predicated region
        $region17: #{discriminator_forward.1} parent=11 // pred_check
          %p244 = pneg %p104
        $region18: #{discriminator_forward.1} parent=11 // pred_check_branch
          %246 = sbr.rel (%p244) target = $region20
        $region19: #{discriminator_forward.1} parent=11 // pred_region
          %s248 = ssub.s32 16384, 16384
          %249 = vsyncadd [#allocation6], %s248
          %s250 = sshll.u32 [#allocation7], 4
          %s251 = int_to_ptr.vmem [resolvable:$true] %s250
          %256 = dma.hbm_to_vmem [thread:$0]  %s2, 16384, %s251, [#allocation6], 256, 256, 16
        $region20: #{discriminator_forward.1} parent=11 // pred_fallthru
          _
        // Predicated region
        $region21: #{discriminator_forward.1} parent=11 // pred_check
          %p257 = pneg %p125
        $region22: #{discriminator_forward.1} parent=11 // pred_check_branch
          %259 = sbr.rel (%p257) target = $region24
        $region23: #{discriminator_forward.1} parent=11 // pred_region
          %s261 = ssub.s32 8192, 8192
          %262 = vsyncadd [#allocation9], %s261
          %s263 = sshll.u32 [#allocation8], 4
          %s264 = int_to_ptr.vmem [resolvable:$true] %s263
          %269 = dma.hbm_to_vmem [thread:$0]  %s3, 8192, %s264, [#allocation9], 256, 256, 16
        $region24: #{discriminator_forward.1} parent=11 // pred_fallthru
          _
        // Predicated region
        $region25: #{discriminator_forward.1} parent=11 // pred_check
          %p270 = pneg %p146
        $region26: #{discriminator_forward.1} parent=11 // pred_check_branch
          %272 = sbr.rel (%p270) target = $region28
        $region27: #{discriminator_forward.1} parent=11 // pred_region
          %s274 = ssub.s32 2048, 2048
          %275 = vsyncadd [#allocation9], %s274
          %s276 = sshll.u32 [#allocation10], 4
          %s277 = int_to_ptr.vmem [resolvable:$true] %s276
          %282 = dma.hbm_to_vmem [thread:$0]  %s4, 2048, %s277, [#allocation9], 128, 128, 8
        $region28: #{discriminator_forward.1} parent=11 // pred_fallthru
          _
        // Predicated region
        $region29: #{discriminator_forward.1} parent=11 // pred_check
          %p283 = pneg %p167
        $region30: #{discriminator_forward.1} parent=11 // pred_check_branch
          %285 = sbr.rel (%p283) target = $region32
        $region31: #{discriminator_forward.1} parent=11 // pred_region
          %s287 = ssub.s32 2048, 2048
          %288 = vsyncadd [#allocation12], %s287
          %s289 = sshll.u32 [#allocation11], 4
          %s290 = int_to_ptr.vmem [resolvable:$true] %s289
          %295 = dma.hbm_to_vmem [thread:$0]  %s5, 2048, %s290, [#allocation12], 128, 128, 8
        $region32: #{discriminator_forward.1} parent=11 // pred_fallthru
          _
        // Predicated region
        $region33: #{discriminator_forward.1} parent=11 // pred_check
          %p296 = pneg %p188
        $region34: #{discriminator_forward.1} parent=11 // pred_check_branch
          %298 = sbr.rel (%p296) target = $region36
        $region35: #{discriminator_forward.1} parent=11 // pred_region
          %s300 = ssub.s32 22528, 22528
          %301 = vsyncadd [#allocation12], %s300
          %s302 = sshll.u32 [#allocation13], 4
          %s303 = int_to_ptr.vmem [resolvable:$true] %s302
          %308 = dma.hbm_to_vmem [thread:$0]  %s6, 22528, %s303, [#allocation12], 128, 128, 8
        $region36: #{discriminator_forward.1} parent=11 // pred_fallthru
          _
      $region12: #{discriminator_forward.1} parent=5 // pred_fallthru
        _
      %p309 = scmp.lt.s32.totalorder %s22, 2
      // Predicated region
      $region37: #{discriminator_forward.1} parent=5 // pred_check
        %p310 = pneg %p309
      $region38: #{discriminator_forward.1} parent=5 // pred_check_branch
        %312 = sbr.rel (%p310) target = $region40
      $region39: #{discriminator_forward.1} parent=5 // pred_region
        // Predicated region
        $region41: #{discriminator_forward.1} parent=39 // pred_check
          %p313 = pneg %p56
        $region42: #{discriminator_forward.1} parent=39 // pred_check_branch
          %315 = sbr.rel (%p313) target = $region44
        $region43: #{discriminator_forward.1} parent=39 // pred_region
          %s316 = sand.u32 %s46, 1
          %s317 = scalar_lea.sflag [#allocation3], %s316
          %s318 = sand.u32 %s46, 1
          %s319 = smul.addr %s318, 512
          %s320 = scalar_lea.vmem [#allocation2], %s319
          %s321 = smul.u32 2, %s30
          %s323 = ssub.s32 8192, 8192
          %324 = vsyncadd %s317, %s323
          %s325 = smul.addr %s29, 64
          %s326 = sadd.s32 %s321, %s325
          %s327 = smul.addr %s326, 128
          %s328 = scalar_lea.hbm %s0, %s327
          %s329 = sshll.u32 %s320, 4
          %s330 = int_to_ptr.vmem [resolvable:$true] %s329
          %335 = dma.hbm_to_vmem [thread:$0]  %s328, 8192, %s330, %s317, 256, 256, 16
        $region44: #{discriminator_forward.1} parent=39 // pred_fallthru
          _
      $region40: #{discriminator_forward.1} parent=5 // pred_fallthru
        _
      %p336 = scmp.le.s32.totalorder 1, %s22
      %p337 = scmp.lt.s32.totalorder %s22, 3
      %p338 = pnand %p336, %p337
      %p339 = pneg %p338
      // Predicated region
      $region45: #{discriminator_forward.1} parent=5 // pred_check
        _
      $region46: #{discriminator_forward.1} parent=5 // pred_check_branch
        %341 = sbr.rel (%p338) target = $region48
      $region47: #{discriminator_forward.1} parent=5 // pred_region
        %s342 = ssub.s32 %s22, 1
        %s343 = sand.u32 %s49, 1
        %s344 = scalar_lea.sflag [#allocation3], %s343
        %s345 = sand.u32 %s49, 1
        %s346 = smul.addr %s345, 512
        %s347 = scalar_lea.vmem [#allocation2], %s346
        // Predicated region
        $region49: #{discriminator_forward.1} parent=47 // pred_check
          %p348 = pneg %p62
        $region50: #{discriminator_forward.1} parent=47 // pred_check_branch
          %350 = sbr.rel (%p348) target = $region52
        $region51: #{discriminator_forward.1} parent=47 // pred_region
          %351 = dma.done %s344, 8192
        $region52: #{discriminator_forward.1} parent=47 // pred_fallthru
          _
        // Predicated region
        $region53: #{discriminator_forward.1} parent=47 // pred_check
          %p352 = pneg %p83
        $region54: #{discriminator_forward.1} parent=47 // pred_check_branch
          %354 = sbr.rel (%p352) target = $region56
        $region55: #{discriminator_forward.1} parent=47 // pred_region
          %355 = dma.done [#allocation6], 8192
        $region56: #{discriminator_forward.1} parent=47 // pred_fallthru
          _
        // Predicated region
        $region57: #{discriminator_forward.1} parent=47 // pred_check
          %p356 = pneg %p104
        $region58: #{discriminator_forward.1} parent=47 // pred_check_branch
          %358 = sbr.rel (%p356) target = $region60
        $region59: #{discriminator_forward.1} parent=47 // pred_region
          %359 = dma.done [#allocation6], 16384
        $region60: #{discriminator_forward.1} parent=47 // pred_fallthru
          _
        // Predicated region
        $region61: #{discriminator_forward.1} parent=47 // pred_check
          %p360 = pneg %p125
        $region62: #{discriminator_forward.1} parent=47 // pred_check_branch
          %362 = sbr.rel (%p360) target = $region64
        $region63: #{discriminator_forward.1} parent=47 // pred_region
          %363 = dma.done [#allocation9], 8192
        $region64: #{discriminator_forward.1} parent=47 // pred_fallthru
          _
        // Predicated region
        $region65: #{discriminator_forward.1} parent=47 // pred_check
          %p364 = pneg %p146
        $region66: #{discriminator_forward.1} parent=47 // pred_check_branch
          %366 = sbr.rel (%p364) target = $region68
        $region67: #{discriminator_forward.1} parent=47 // pred_region
          %367 = dma.done [#allocation9], 2048
        $region68: #{discriminator_forward.1} parent=47 // pred_fallthru
          _
        // Predicated region
        $region69: #{discriminator_forward.1} parent=47 // pred_check
          %p368 = pneg %p167
        $region70: #{discriminator_forward.1} parent=47 // pred_check_branch
          %370 = sbr.rel (%p368) target = $region72
        $region71: #{discriminator_forward.1} parent=47 // pred_region
          %371 = dma.done [#allocation12], 2048
        $region72: #{discriminator_forward.1} parent=47 // pred_fallthru
          _
        // Predicated region
        $region73: #{discriminator_forward.1} parent=47 // pred_check
          %p372 = pneg %p188
        $region74: #{discriminator_forward.1} parent=47 // pred_check_branch
          %374 = sbr.rel (%p372) target = $region76
        $region75: #{discriminator_forward.1} parent=47 // pred_region
          %375 = dma.done [#allocation12], 22528
        $region76: #{discriminator_forward.1} parent=47 // pred_fallthru
          _
        %s376 = sand.u32 %s49, 1
        %s377 = scalar_lea.sflag [#allocation3], %s376
        %s378 = sand.u32 %s49, 1
        %s379 = smul.addr %s378, 512
        %s380 = scalar_lea.vmem [#allocation2], %s379
        %p381 = pneg %p62
        %p382 = pneg %p59
        %p383 = pneg %p83
        %p384 = pneg %p80
        %p385 = pneg %p104
        %p386 = pneg %p101
        %p387 = pneg %p125
        %p388 = pneg %p122
        %p389 = pneg %p146
        %p390 = pneg %p143
        %p391 = pneg %p167
        %p392 = pneg %p164
        %p393 = pneg %p188
        %p394 = pneg %p185
        %p395 = pneg %p216
        %p396 = pneg %p213
        %s397 = sand.u32 %s203, 1
        %s398 = scalar_lea.sflag [#allocation4], %s397
        %s399 = sand.u32 %s203, 1
        %s400 = smul.addr %s399, 2
        %s401 = scalar_lea.vmem [#allocation14], %s400
        %s402 = smul.u32 2, %s32
        %s403 = smul.u32 2, %s32
        %v405 = vld [vmem:[%s347] sm:$0xff]
        %v406 = vld [vmem:[%s347 + $0x8] sm:$0xff]
        %v407 = vld [vmem:[%s347 + $0x10] sm:$0xff]
        %v408 = vld [vmem:[%s347 + $0x18] sm:$0xff]
        %v409 = vld [vmem:[%s347 + $0x20] sm:$0xff]
        %v410 = vld [vmem:[%s347 + $0x28] sm:$0xff]
        %v411 = vld [vmem:[%s347 + $0x30] sm:$0xff]
        %v412 = vld [vmem:[%s347 + $0x38] sm:$0xff]
        %v413 = vld [vmem:[%s347 + $0x40] sm:$0xff]
        %v414 = vld [vmem:[%s347 + $0x48] sm:$0xff]
        %v415 = vld [vmem:[%s347 + $0x50] sm:$0xff]
        %v416 = vld [vmem:[%s347 + $0x58] sm:$0xff]
        %v417 = vld [vmem:[%s347 + $0x60] sm:$0xff]
        %v418 = vld [vmem:[%s347 + $0x68] sm:$0xff]
        %v419 = vld [vmem:[%s347 + $0x70] sm:$0xff]
        %v420 = vld [vmem:[%s347 + $0x78] sm:$0xff]
        %v421 = vld [vmem:[%s347 + $0x80] sm:$0xff]
        %v422 = vld [vmem:[%s347 + $0x88] sm:$0xff]
        %v423 = vld [vmem:[%s347 + $0x90] sm:$0xff]
        %v424 = vld [vmem:[%s347 + $0x98] sm:$0xff]
        %v425 = vld [vmem:[%s347 + $0xa0] sm:$0xff]
        %v426 = vld [vmem:[%s347 + $0xa8] sm:$0xff]
        %v427 = vld [vmem:[%s347 + $0xb0] sm:$0xff]
        %v428 = vld [vmem:[%s347 + $0xb8] sm:$0xff]
        %v429 = vld [vmem:[%s347 + $0xc0] sm:$0xff]
        %v430 = vld [vmem:[%s347 + $0xc8] sm:$0xff]
        %v431 = vld [vmem:[%s347 + $0xd0] sm:$0xff]
        %v432 = vld [vmem:[%s347 + $0xd8] sm:$0xff]
        %v433 = vld [vmem:[%s347 + $0xe0] sm:$0xff]
        %v434 = vld [vmem:[%s347 + $0xe8] sm:$0xff]
        %v435 = vld [vmem:[%s347 + $0xf0] sm:$0xff]
        %v436 = vld [vmem:[%s347 + $0xf8] sm:$0xff]
        %v437 = vld [vmem:[%s347 + $0x100] sm:$0xff]
        %v438 = vld [vmem:[%s347 + $0x108] sm:$0xff]
        %v439 = vld [vmem:[%s347 + $0x110] sm:$0xff]
        %v440 = vld [vmem:[%s347 + $0x118] sm:$0xff]
        %v441 = vld [vmem:[%s347 + $0x120] sm:$0xff]
        %v442 = vld [vmem:[%s347 + $0x128] sm:$0xff]
        %v443 = vld [vmem:[%s347 + $0x130] sm:$0xff]
        %v444 = vld [vmem:[%s347 + $0x138] sm:$0xff]
        %v445 = vld [vmem:[%s347 + $0x140] sm:$0xff]
        %v446 = vld [vmem:[%s347 + $0x148] sm:$0xff]
        %v447 = vld [vmem:[%s347 + $0x150] sm:$0xff]
        %v448 = vld [vmem:[%s347 + $0x158] sm:$0xff]
        %v449 = vld [vmem:[%s347 + $0x160] sm:$0xff]
        %v450 = vld [vmem:[%s347 + $0x168] sm:$0xff]
        %v451 = vld [vmem:[%s347 + $0x170] sm:$0xff]
        %v452 = vld [vmem:[%s347 + $0x178] sm:$0xff]
        %v453 = vld [vmem:[%s347 + $0x180] sm:$0xff]
        %v454 = vld [vmem:[%s347 + $0x188] sm:$0xff]
        %v455 = vld [vmem:[%s347 + $0x190] sm:$0xff]
        %v456 = vld [vmem:[%s347 + $0x198] sm:$0xff]
        %v457 = vld [vmem:[%s347 + $0x1a0] sm:$0xff]
        %v458 = vld [vmem:[%s347 + $0x1a8] sm:$0xff]
        %v459 = vld [vmem:[%s347 + $0x1b0] sm:$0xff]
        %v460 = vld [vmem:[%s347 + $0x1b8] sm:$0xff]
        %v461 = vld [vmem:[%s347 + $0x1c0] sm:$0xff]
        %v462 = vld [vmem:[%s347 + $0x1c8] sm:$0xff]
        %v463 = vld [vmem:[%s347 + $0x1d0] sm:$0xff]
        %v464 = vld [vmem:[%s347 + $0x1d8] sm:$0xff]
        %v465 = vld [vmem:[%s347 + $0x1e0] sm:$0xff]
        %v466 = vld [vmem:[%s347 + $0x1e8] sm:$0xff]
        %v467 = vld [vmem:[%s347 + $0x1f0] sm:$0xff]
        %v468 = vld [vmem:[%s347 + $0x1f8] sm:$0xff]
        %v469 = vpack.c.bf16 %v407, %v405
        %v470 = vpack.c.bf16 %v408, %v406
        %v471 = vpack.c.bf16 %v411, %v409
        %v472 = vpack.c.bf16 %v412, %v410
        %v473 = vpack.c.bf16 %v415, %v413
        %v474 = vpack.c.bf16 %v416, %v414
        %v475 = vpack.c.bf16 %v419, %v417
        %v476 = vpack.c.bf16 %v420, %v418
        %v477 = vpack.c.bf16 %v423, %v421
        %v478 = vpack.c.bf16 %v424, %v422
        %v479 = vpack.c.bf16 %v427, %v425
        %v480 = vpack.c.bf16 %v428, %v426
        %v481 = vpack.c.bf16 %v431, %v429
        %v482 = vpack.c.bf16 %v432, %v430
        %v483 = vpack.c.bf16 %v435, %v433
        %v484 = vpack.c.bf16 %v436, %v434
        %v485 = vpack.c.bf16 %v439, %v437
        %v486 = vpack.c.bf16 %v440, %v438
        %v487 = vpack.c.bf16 %v443, %v441
        %v488 = vpack.c.bf16 %v444, %v442
        %v489 = vpack.c.bf16 %v447, %v445
        %v490 = vpack.c.bf16 %v448, %v446
        %v491 = vpack.c.bf16 %v451, %v449
        %v492 = vpack.c.bf16 %v452, %v450
        %v493 = vpack.c.bf16 %v455, %v453
        %v494 = vpack.c.bf16 %v456, %v454
        %v495 = vpack.c.bf16 %v459, %v457
        %v496 = vpack.c.bf16 %v460, %v458
        %v497 = vpack.c.bf16 %v463, %v461
        %v498 = vpack.c.bf16 %v464, %v462
        %v499 = vpack.c.bf16 %v467, %v465
        %v500 = vpack.c.bf16 %v468, %v466
        %v501 = vld [vmem:[#allocation13] sm:$0xff]
        %v502 = vld [vmem:[#allocation13 + $0x8] sm:$0xff]
        %v503 = vld [vmem:[#allocation13 + $0x10] sm:$0xff]
        %v504 = vld [vmem:[#allocation13 + $0x18] sm:$0xff]
        %v505 = vld [vmem:[#allocation13 + $0x20] sm:$0xff]
        %v506 = vld [vmem:[#allocation13 + $0x28] sm:$0xff]
        %v507 = vld [vmem:[#allocation13 + $0x30] sm:$0xff]
        %v508 = vld [vmem:[#allocation13 + $0x38] sm:$0xff]
        %v509 = vld [vmem:[#allocation13 + $0x40] sm:$0xff]
        %v510 = vld [vmem:[#allocation13 + $0x48] sm:$0xff]
        %v511 = vld [vmem:[#allocation13 + $0x50] sm:$0xff]
        %v512 = vld [vmem:[#allocation13 + $0x58] sm:$0xff]
        %v513 = vld [vmem:[#allocation13 + $0x60] sm:$0xff]
        %v514 = vld [vmem:[#allocation13 + $0x68] sm:$0xff]
        %v515 = vld [vmem:[#allocation13 + $0x70] sm:$0xff]
        %v516 = vld [vmem:[#allocation13 + $0x78] sm:$0xff]
        %v517 = vld [vmem:[#allocation13 + $0x80] sm:$0xff]
        %v518 = vld [vmem:[#allocation13 + $0x88] sm:$0xff]
        %v519 = vld [vmem:[#allocation13 + $0x90] sm:$0xff]
        %v520 = vld [vmem:[#allocation13 + $0x98] sm:$0xff]
        %v521 = vld [vmem:[#allocation13 + $0xa0] sm:$0xff]
        %v522 = vld [vmem:[#allocation13 + $0xa8] sm:$0xff]
        %v523 = vld [vmem:[#allocation13 + $0xb0] sm:$0xff]
        %v524 = vld [vmem:[#allocation13 + $0xb8] sm:$0xff]
        %v525 = vld [vmem:[#allocation13 + $0xc0] sm:$0xff]
        %v526 = vld [vmem:[#allocation13 + $0xc8] sm:$0xff]
        %v527 = vld [vmem:[#allocation13 + $0xd0] sm:$0xff]
        %v528 = vld [vmem:[#allocation13 + $0xd8] sm:$0xff]
        %v529 = vld [vmem:[#allocation13 + $0xe0] sm:$0xff]
        %v530 = vld [vmem:[#allocation13 + $0xe8] sm:$0xff]
        %v531 = vld [vmem:[#allocation13 + $0xf0] sm:$0xff]
        %v532 = vld [vmem:[#allocation13 + $0xf8] sm:$0xff]
        %v533 = vld [vmem:[#allocation13 + $0x100] sm:$0xff]
        %v534 = vld [vmem:[#allocation13 + $0x108] sm:$0xff]
        %v535 = vld [vmem:[#allocation13 + $0x110] sm:$0xff]
        %v536 = vld [vmem:[#allocation13 + $0x118] sm:$0xff]
        %v537 = vld [vmem:[#allocation13 + $0x120] sm:$0xff]
        %v538 = vld [vmem:[#allocation13 + $0x128] sm:$0xff]
        %v539 = vld [vmem:[#allocation13 + $0x130] sm:$0xff]
        %v540 = vld [vmem:[#allocation13 + $0x138] sm:$0xff]
        %v541 = vld [vmem:[#allocation13 + $0x140] sm:$0xff]
        %v542 = vld [vmem:[#allocation13 + $0x148] sm:$0xff]
        %v543 = vld [vmem:[#allocation13 + $0x150] sm:$0xff]
        %v544 = vld [vmem:[#allocation13 + $0x158] sm:$0xff]
        %v545 = vld [vmem:[#allocation13 + $0x160] sm:$0xff]
        %v546 = vld [vmem:[#allocation13 + $0x168] sm:$0xff]
        %v547 = vld [vmem:[#allocation13 + $0x170] sm:$0xff]
        %v548 = vld [vmem:[#allocation13 + $0x178] sm:$0xff]
        %v549 = vld [vmem:[#allocation13 + $0x180] sm:$0xff]
        %v550 = vld [vmem:[#allocation13 + $0x188] sm:$0xff]
        %v551 = vld [vmem:[#allocation13 + $0x190] sm:$0xff]
        %v552 = vld [vmem:[#allocation13 + $0x198] sm:$0xff]
        %v553 = vld [vmem:[#allocation13 + $0x1a0] sm:$0xff]
        %v554 = vld [vmem:[#allocation13 + $0x1a8] sm:$0xff]
        %v555 = vld [vmem:[#allocation13 + $0x1b0] sm:$0xff]
        %v556 = vld [vmem:[#allocation13 + $0x1b8] sm:$0xff]
        %v557 = vld [vmem:[#allocation13 + $0x1c0] sm:$0xff]
        %v558 = vld [vmem:[#allocation13 + $0x1c8] sm:$0xff]
        %v559 = vld [vmem:[#allocation13 + $0x1d0] sm:$0xff]
        %v560 = vld [vmem:[#allocation13 + $0x1d8] sm:$0xff]
        %v561 = vld [vmem:[#allocation13 + $0x1e0] sm:$0xff]
        %v562 = vld [vmem:[#allocation13 + $0x1e8] sm:$0xff]
        %v563 = vld [vmem:[#allocation13 + $0x1f0] sm:$0xff]
        %v564 = vld [vmem:[#allocation13 + $0x1f8] sm:$0xff]
        %v565 = vpack.c.bf16 %v502, %v501
        %v566 = vpack.c.bf16 %v504, %v503
        %v567 = vpack.c.bf16 %v506, %v505
        %v568 = vpack.c.bf16 %v508, %v507
        %v569 = vpack.c.bf16 %v510, %v509
        %v570 = vpack.c.bf16 %v512, %v511
        %v571 = vpack.c.bf16 %v514, %v513
        %v572 = vpack.c.bf16 %v516, %v515
        %v573 = vpack.c.bf16 %v518, %v517
        %v574 = vpack.c.bf16 %v520, %v519
        %v575 = vpack.c.bf16 %v522, %v521
        %v576 = vpack.c.bf16 %v524, %v523
        %v577 = vpack.c.bf16 %v526, %v525
        %v578 = vpack.c.bf16 %v528, %v527
        %v579 = vpack.c.bf16 %v530, %v529
        %v580 = vpack.c.bf16 %v532, %v531
        %v581 = vpack.c.bf16 %v534, %v533
        %v582 = vpack.c.bf16 %v536, %v535
        %v583 = vpack.c.bf16 %v538, %v537
        %v584 = vpack.c.bf16 %v540, %v539
        %v585 = vpack.c.bf16 %v542, %v541
        %v586 = vpack.c.bf16 %v544, %v543
        %v587 = vpack.c.bf16 %v546, %v545
        %v588 = vpack.c.bf16 %v548, %v547
        %v589 = vpack.c.bf16 %v550, %v549
        %v590 = vpack.c.bf16 %v552, %v551
        %v591 = vpack.c.bf16 %v554, %v553
        %v592 = vpack.c.bf16 %v556, %v555
        %v593 = vpack.c.bf16 %v558, %v557
        %v594 = vpack.c.bf16 %v560, %v559
        %v595 = vpack.c.bf16 %v562, %v561
        %v596 = vpack.c.bf16 %v564, %v563
        %v597 = vld [vmem:[#allocation13 + $0x200] sm:$0xff]
        %v598 = vld [vmem:[#allocation13 + $0x208] sm:$0xff]
        %v599 = vld [vmem:[#allocation13 + $0x210] sm:$0xff]
        %v600 = vld [vmem:[#allocation13 + $0x218] sm:$0xff]
        %v601 = vld [vmem:[#allocation13 + $0x220] sm:$0xff]
        %v602 = vld [vmem:[#allocation13 + $0x228] sm:$0xff]
        %v603 = vld [vmem:[#allocation13 + $0x230] sm:$0xff]
        %v604 = vld [vmem:[#allocation13 + $0x238] sm:$0xff]
        %v605 = vld [vmem:[#allocation13 + $0x240] sm:$0xff]
        %v606 = vld [vmem:[#allocation13 + $0x248] sm:$0xff]
        %v607 = vld [vmem:[#allocation13 + $0x250] sm:$0xff]
        %v608 = vld [vmem:[#allocation13 + $0x258] sm:$0xff]
        %v609 = vld [vmem:[#allocation13 + $0x260] sm:$0xff]
        %v610 = vld [vmem:[#allocation13 + $0x268] sm:$0xff]
        %v611 = vld [vmem:[#allocation13 + $0x270] sm:$0xff]
        %v612 = vld [vmem:[#allocation13 + $0x278] sm:$0xff]
        %v613 = vld [vmem:[#allocation13 + $0x280] sm:$0xff]
        %v614 = vld [vmem:[#allocation13 + $0x288] sm:$0xff]
        %v615 = vld [vmem:[#allocation13 + $0x290] sm:$0xff]
        %v616 = vld [vmem:[#allocation13 + $0x298] sm:$0xff]
        %v617 = vld [vmem:[#allocation13 + $0x2a0] sm:$0xff]
        %v618 = vld [vmem:[#allocation13 + $0x2a8] sm:$0xff]
        %v619 = vld [vmem:[#allocation13 + $0x2b0] sm:$0xff]
        %v620 = vld [vmem:[#allocation13 + $0x2b8] sm:$0xff]
        %v621 = vld [vmem:[#allocation13 + $0x2c0] sm:$0xff]
        %v622 = vld [vmem:[#allocation13 + $0x2c8] sm:$0xff]
        %v623 = vld [vmem:[#allocation13 + $0x2d0] sm:$0xff]
        %v624 = vld [vmem:[#allocation13 + $0x2d8] sm:$0xff]
        %v625 = vld [vmem:[#allocation13 + $0x2e0] sm:$0xff]
        %v626 = vld [vmem:[#allocation13 + $0x2e8] sm:$0xff]
        %v627 = vld [vmem:[#allocation13 + $0x2f0] sm:$0xff]
        %v628 = vld [vmem:[#allocation13 + $0x2f8] sm:$0xff]
        %v629 = vld [vmem:[#allocation13 + $0x300] sm:$0xff]
        %v630 = vld [vmem:[#allocation13 + $0x308] sm:$0xff]
        %v631 = vld [vmem:[#allocation13 + $0x310] sm:$0xff]
        %v632 = vld [vmem:[#allocation13 + $0x318] sm:$0xff]
        %v633 = vld [vmem:[#allocation13 + $0x320] sm:$0xff]
        %v634 = vld [vmem:[#allocation13 + $0x328] sm:$0xff]
        %v635 = vld [vmem:[#allocation13 + $0x330] sm:$0xff]
        %v636 = vld [vmem:[#allocation13 + $0x338] sm:$0xff]
        %v637 = vld [vmem:[#allocation13 + $0x340] sm:$0xff]
        %v638 = vld [vmem:[#allocation13 + $0x348] sm:$0xff]
        %v639 = vld [vmem:[#allocation13 + $0x350] sm:$0xff]
        %v640 = vld [vmem:[#allocation13 + $0x358] sm:$0xff]
        %v641 = vld [vmem:[#allocation13 + $0x360] sm:$0xff]
        %v642 = vld [vmem:[#allocation13 + $0x368] sm:$0xff]
        %v643 = vld [vmem:[#allocation13 + $0x370] sm:$0xff]
        %v644 = vld [vmem:[#allocation13 + $0x378] sm:$0xff]
        %v645 = vld [vmem:[#allocation13 + $0x380] sm:$0xff]
        %v646 = vld [vmem:[#allocation13 + $0x388] sm:$0xff]
        %v647 = vld [vmem:[#allocation13 + $0x390] sm:$0xff]
        %v648 = vld [vmem:[#allocation13 + $0x398] sm:$0xff]
        %v649 = vld [vmem:[#allocation13 + $0x3a0] sm:$0xff]
        %v650 = vld [vmem:[#allocation13 + $0x3a8] sm:$0xff]
        %v651 = vld [vmem:[#allocation13 + $0x3b0] sm:$0xff]
        %v652 = vld [vmem:[#allocation13 + $0x3b8] sm:$0xff]
        %v653 = vld [vmem:[#allocation13 + $0x3c0] sm:$0xff]
        %v654 = vld [vmem:[#allocation13 + $0x3c8] sm:$0xff]
        %v655 = vld [vmem:[#allocation13 + $0x3d0] sm:$0xff]
        %v656 = vld [vmem:[#allocation13 + $0x3d8] sm:$0xff]
        %v657 = vld [vmem:[#allocation13 + $0x3e0] sm:$0xff]
        %v658 = vld [vmem:[#allocation13 + $0x3e8] sm:$0xff]
        %v659 = vld [vmem:[#allocation13 + $0x3f0] sm:$0xff]
        %v660 = vld [vmem:[#allocation13 + $0x3f8] sm:$0xff]
        %v661 = vpack.c.bf16 %v598, %v597
        %v662 = vpack.c.bf16 %v600, %v599
        %v663 = vpack.c.bf16 %v602, %v601
        %v664 = vpack.c.bf16 %v604, %v603
        %v665 = vpack.c.bf16 %v606, %v605
        %v666 = vpack.c.bf16 %v608, %v607
        %v667 = vpack.c.bf16 %v610, %v609
        %v668 = vpack.c.bf16 %v612, %v611
        %v669 = vpack.c.bf16 %v614, %v613
        %v670 = vpack.c.bf16 %v616, %v615
        %v671 = vpack.c.bf16 %v618, %v617
        %v672 = vpack.c.bf16 %v620, %v619
        %v673 = vpack.c.bf16 %v622, %v621
        %v674 = vpack.c.bf16 %v624, %v623
        %v675 = vpack.c.bf16 %v626, %v625
        %v676 = vpack.c.bf16 %v628, %v627
        %v677 = vpack.c.bf16 %v630, %v629
        %v678 = vpack.c.bf16 %v632, %v631
        %v679 = vpack.c.bf16 %v634, %v633
        %v680 = vpack.c.bf16 %v636, %v635
        %v681 = vpack.c.bf16 %v638, %v637
        %v682 = vpack.c.bf16 %v640, %v639
        %v683 = vpack.c.bf16 %v642, %v641
        %v684 = vpack.c.bf16 %v644, %v643
        %v685 = vpack.c.bf16 %v646, %v645
        %v686 = vpack.c.bf16 %v648, %v647
        %v687 = vpack.c.bf16 %v650, %v649
        %v688 = vpack.c.bf16 %v652, %v651
        %v689 = vpack.c.bf16 %v654, %v653
        %v690 = vpack.c.bf16 %v656, %v655
        %v691 = vpack.c.bf16 %v658, %v657
        %v692 = vpack.c.bf16 %v660, %v659
        %v693 = vld [vmem:[#allocation13 + $0x400] sm:$0xff]
        %v694 = vld [vmem:[#allocation13 + $0x408] sm:$0xff]
        %v695 = vld [vmem:[#allocation13 + $0x410] sm:$0xff]
        %v696 = vld [vmem:[#allocation13 + $0x418] sm:$0xff]
        %v697 = vld [vmem:[#allocation13 + $0x420] sm:$0xff]
        %v698 = vld [vmem:[#allocation13 + $0x428] sm:$0xff]
        %v699 = vld [vmem:[#allocation13 + $0x430] sm:$0xff]
        %v700 = vld [vmem:[#allocation13 + $0x438] sm:$0xff]
        %v701 = vld [vmem:[#allocation13 + $0x440] sm:$0xff]
        %v702 = vld [vmem:[#allocation13 + $0x448] sm:$0xff]
        %v703 = vld [vmem:[#allocation13 + $0x450] sm:$0xff]
        %v704 = vld [vmem:[#allocation13 + $0x458] sm:$0xff]
        %v705 = vld [vmem:[#allocation13 + $0x460] sm:$0xff]
        %v706 = vld [vmem:[#allocation13 + $0x468] sm:$0xff]
        %v707 = vld [vmem:[#allocation13 + $0x470] sm:$0xff]
        %v708 = vld [vmem:[#allocation13 + $0x478] sm:$0xff]
        %v709 = vld [vmem:[#allocation13 + $0x480] sm:$0xff]
        %v710 = vld [vmem:[#allocation13 + $0x488] sm:$0xff]
        %v711 = vld [vmem:[#allocation13 + $0x490] sm:$0xff]
        %v712 = vld [vmem:[#allocation13 + $0x498] sm:$0xff]
        %v713 = vld [vmem:[#allocation13 + $0x4a0] sm:$0xff]
        %v714 = vld [vmem:[#allocation13 + $0x4a8] sm:$0xff]
        %v715 = vld [vmem:[#allocation13 + $0x4b0] sm:$0xff]
        %v716 = vld [vmem:[#allocation13 + $0x4b8] sm:$0xff]
        %v717 = vld [vmem:[#allocation13 + $0x4c0] sm:$0xff]
        %v718 = vld [vmem:[#allocation13 + $0x4c8] sm:$0xff]
        %v719 = vld [vmem:[#allocation13 + $0x4d0] sm:$0xff]
        %v720 = vld [vmem:[#allocation13 + $0x4d8] sm:$0xff]
        %v721 = vld [vmem:[#allocation13 + $0x4e0] sm:$0xff]
        %v722 = vld [vmem:[#allocation13 + $0x4e8] sm:$0xff]
        %v723 = vld [vmem:[#allocation13 + $0x4f0] sm:$0xff]
        %v724 = vld [vmem:[#allocation13 + $0x4f8] sm:$0xff]
        %v725 = vpack.c.bf16 %v694, %v693
        %v726 = vpack.c.bf16 %v696, %v695
        %v727 = vpack.c.bf16 %v698, %v697
        %v728 = vpack.c.bf16 %v700, %v699
        %v729 = vpack.c.bf16 %v702, %v701
        %v730 = vpack.c.bf16 %v704, %v703
        %v731 = vpack.c.bf16 %v706, %v705
        %v732 = vpack.c.bf16 %v708, %v707
        %v733 = vpack.c.bf16 %v710, %v709
        %v734 = vpack.c.bf16 %v712, %v711
        %v735 = vpack.c.bf16 %v714, %v713
        %v736 = vpack.c.bf16 %v716, %v715
        %v737 = vpack.c.bf16 %v718, %v717
        %v738 = vpack.c.bf16 %v720, %v719
        %v739 = vpack.c.bf16 %v722, %v721
        %v740 = vpack.c.bf16 %v724, %v723
        %v741 = vld [vmem:[#allocation13 + $0x500] sm:$0xff]
        %v742 = vld [vmem:[#allocation13 + $0x508] sm:$0xff]
        %v743 = vld [vmem:[#allocation13 + $0x510] sm:$0xff]
        %v744 = vld [vmem:[#allocation13 + $0x518] sm:$0xff]
        %v745 = vld [vmem:[#allocation13 + $0x520] sm:$0xff]
        %v746 = vld [vmem:[#allocation13 + $0x528] sm:$0xff]
        %v747 = vld [vmem:[#allocation13 + $0x530] sm:$0xff]
        %v748 = vld [vmem:[#allocation13 + $0x538] sm:$0xff]
        %v749 = vld [vmem:[#allocation13 + $0x540] sm:$0xff]
        %v750 = vld [vmem:[#allocation13 + $0x548] sm:$0xff]
        %v751 = vld [vmem:[#allocation13 + $0x550] sm:$0xff]
        %v752 = vld [vmem:[#allocation13 + $0x558] sm:$0xff]
        %v753 = vld [vmem:[#allocation13 + $0x560] sm:$0xff]
        %v754 = vld [vmem:[#allocation13 + $0x568] sm:$0xff]
        %v755 = vld [vmem:[#allocation13 + $0x570] sm:$0xff]
        %v756 = vld [vmem:[#allocation13 + $0x578] sm:$0xff]
        %v757 = vld [vmem:[#allocation5] sm:$0xff]
        %v758 = vld [vmem:[#allocation5 + $0x8] sm:$0xff]
        %v759 = vld [vmem:[#allocation5 + $0x10] sm:$0xff]
        %v760 = vld [vmem:[#allocation5 + $0x18] sm:$0xff]
        %v761 = vld [vmem:[#allocation5 + $0x20] sm:$0xff]
        %v762 = vld [vmem:[#allocation5 + $0x28] sm:$0xff]
        %v763 = vld [vmem:[#allocation5 + $0x30] sm:$0xff]
        %v764 = vld [vmem:[#allocation5 + $0x38] sm:$0xff]
        %v765 = vld [vmem:[#allocation5 + $0x40] sm:$0xff]
        %v766 = vld [vmem:[#allocation5 + $0x48] sm:$0xff]
        %v767 = vld [vmem:[#allocation5 + $0x50] sm:$0xff]
        %v768 = vld [vmem:[#allocation5 + $0x58] sm:$0xff]
        %v769 = vld [vmem:[#allocation5 + $0x60] sm:$0xff]
        %v770 = vld [vmem:[#allocation5 + $0x68] sm:$0xff]
        %v771 = vld [vmem:[#allocation5 + $0x70] sm:$0xff]
        %v772 = vld [vmem:[#allocation5 + $0x78] sm:$0xff]
        %v773 = vld [vmem:[#allocation5 + $0x80] sm:$0xff]
        %v774 = vld [vmem:[#allocation5 + $0x88] sm:$0xff]
        %v775 = vld [vmem:[#allocation5 + $0x90] sm:$0xff]
        %v776 = vld [vmem:[#allocation5 + $0x98] sm:$0xff]
        %v777 = vld [vmem:[#allocation5 + $0xa0] sm:$0xff]
        %v778 = vld [vmem:[#allocation5 + $0xa8] sm:$0xff]
        %v779 = vld [vmem:[#allocation5 + $0xb0] sm:$0xff]
        %v780 = vld [vmem:[#allocation5 + $0xb8] sm:$0xff]
        %v781 = vld [vmem:[#allocation5 + $0xc0] sm:$0xff]
        %v782 = vld [vmem:[#allocation5 + $0xc8] sm:$0xff]
        %v783 = vld [vmem:[#allocation5 + $0xd0] sm:$0xff]
        %v784 = vld [vmem:[#allocation5 + $0xd8] sm:$0xff]
        %v785 = vld [vmem:[#allocation5 + $0xe0] sm:$0xff]
        %v786 = vld [vmem:[#allocation5 + $0xe8] sm:$0xff]
        %v787 = vld [vmem:[#allocation5 + $0xf0] sm:$0xff]
        %v788 = vld [vmem:[#allocation5 + $0xf8] sm:$0xff]
        %v789 = vld [vmem:[#allocation5 + $0x100] sm:$0xff]
        %v790 = vld [vmem:[#allocation5 + $0x108] sm:$0xff]
        %v791 = vld [vmem:[#allocation5 + $0x110] sm:$0xff]
        %v792 = vld [vmem:[#allocation5 + $0x118] sm:$0xff]
        %v793 = vld [vmem:[#allocation5 + $0x120] sm:$0xff]
        %v794 = vld [vmem:[#allocation5 + $0x128] sm:$0xff]
        %v795 = vld [vmem:[#allocation5 + $0x130] sm:$0xff]
        %v796 = vld [vmem:[#allocation5 + $0x138] sm:$0xff]
        %v797 = vld [vmem:[#allocation5 + $0x140] sm:$0xff]
        %v798 = vld [vmem:[#allocation5 + $0x148] sm:$0xff]
        %v799 = vld [vmem:[#allocation5 + $0x150] sm:$0xff]
        %v800 = vld [vmem:[#allocation5 + $0x158] sm:$0xff]
        %v801 = vld [vmem:[#allocation5 + $0x160] sm:$0xff]
        %v802 = vld [vmem:[#allocation5 + $0x168] sm:$0xff]
        %v803 = vld [vmem:[#allocation5 + $0x170] sm:$0xff]
        %v804 = vld [vmem:[#allocation5 + $0x178] sm:$0xff]
        %v805 = vld [vmem:[#allocation5 + $0x180] sm:$0xff]
        %v806 = vld [vmem:[#allocation5 + $0x188] sm:$0xff]
        %v807 = vld [vmem:[#allocation5 + $0x190] sm:$0xff]
        %v808 = vld [vmem:[#allocation5 + $0x198] sm:$0xff]
        %v809 = vld [vmem:[#allocation5 + $0x1a0] sm:$0xff]
        %v810 = vld [vmem:[#allocation5 + $0x1a8] sm:$0xff]
        %v811 = vld [vmem:[#allocation5 + $0x1b0] sm:$0xff]
        %v812 = vld [vmem:[#allocation5 + $0x1b8] sm:$0xff]
        %v813 = vld [vmem:[#allocation5 + $0x1c0] sm:$0xff]
        %v814 = vld [vmem:[#allocation5 + $0x1c8] sm:$0xff]
        %v815 = vld [vmem:[#allocation5 + $0x1d0] sm:$0xff]
        %v816 = vld [vmem:[#allocation5 + $0x1d8] sm:$0xff]
        %v817 = vld [vmem:[#allocation5 + $0x1e0] sm:$0xff]
        %v818 = vld [vmem:[#allocation5 + $0x1e8] sm:$0xff]
        %v819 = vld [vmem:[#allocation5 + $0x1f0] sm:$0xff]
        %v820 = vld [vmem:[#allocation5 + $0x1f8] sm:$0xff]
        %v885 = vunpack.c.l.b16 %v757
        %v886 = vunpack.c.h.b16 %v757
        %v887 = vunpack.c.l.b16 %v758
        %v888 = vunpack.c.h.b16 %v758
        %v889 = vunpack.c.l.b16 %v759
        %v890 = vunpack.c.h.b16 %v759
        %v891 = vunpack.c.l.b16 %v760
        %v892 = vunpack.c.h.b16 %v760
        %v893 = vunpack.c.l.b16 %v761
        %v894 = vunpack.c.h.b16 %v761
        %v895 = vunpack.c.l.b16 %v762
        %v896 = vunpack.c.h.b16 %v762
        %v897 = vunpack.c.l.b16 %v763
        %v898 = vunpack.c.h.b16 %v763
        %v899 = vunpack.c.l.b16 %v764
        %v900 = vunpack.c.h.b16 %v764
        %v901 = vunpack.c.l.b16 %v765
        %v902 = vunpack.c.h.b16 %v765
        %v903 = vunpack.c.l.b16 %v766
        %v904 = vunpack.c.h.b16 %v766
        %v905 = vunpack.c.l.b16 %v767
        %v906 = vunpack.c.h.b16 %v767
        %v907 = vunpack.c.l.b16 %v768
        %v908 = vunpack.c.h.b16 %v768
        %v909 = vunpack.c.l.b16 %v769
        %v910 = vunpack.c.h.b16 %v769
        %v911 = vunpack.c.l.b16 %v770
        %v912 = vunpack.c.h.b16 %v770
        %v913 = vunpack.c.l.b16 %v771
        %v914 = vunpack.c.h.b16 %v771
        %v915 = vunpack.c.l.b16 %v772
        %v916 = vunpack.c.h.b16 %v772
        %v917 = vunpack.c.l.b16 %v773
        %v918 = vunpack.c.h.b16 %v773
        %v919 = vunpack.c.l.b16 %v774
        %v920 = vunpack.c.h.b16 %v774
        %v921 = vunpack.c.l.b16 %v775
        %v922 = vunpack.c.h.b16 %v775
        %v923 = vunpack.c.l.b16 %v776
        %v924 = vunpack.c.h.b16 %v776
        %v925 = vunpack.c.l.b16 %v777
        %v926 = vunpack.c.h.b16 %v777
        %v927 = vunpack.c.l.b16 %v778
        %v928 = vunpack.c.h.b16 %v778
        %v929 = vunpack.c.l.b16 %v779
        %v930 = vunpack.c.h.b16 %v779
        %v931 = vunpack.c.l.b16 %v780
        %v932 = vunpack.c.h.b16 %v780
        %v933 = vunpack.c.l.b16 %v781
        %v934 = vunpack.c.h.b16 %v781
        %v935 = vunpack.c.l.b16 %v782
        %v936 = vunpack.c.h.b16 %v782
        %v937 = vunpack.c.l.b16 %v783
        %v938 = vunpack.c.h.b16 %v783
        %v939 = vunpack.c.l.b16 %v784
        %v940 = vunpack.c.h.b16 %v784
        %v941 = vunpack.c.l.b16 %v785
        %v942 = vunpack.c.h.b16 %v785
        %v943 = vunpack.c.l.b16 %v786
        %v944 = vunpack.c.h.b16 %v786
        %v945 = vunpack.c.l.b16 %v787
        %v946 = vunpack.c.h.b16 %v787
        %v947 = vunpack.c.l.b16 %v788
        %v948 = vunpack.c.h.b16 %v788
        %v949 = vunpack.c.l.b16 %v789
        %v950 = vunpack.c.h.b16 %v789
        %v951 = vunpack.c.l.b16 %v790
        %v952 = vunpack.c.h.b16 %v790
        %v953 = vunpack.c.l.b16 %v791
        %v954 = vunpack.c.h.b16 %v791
        %v955 = vunpack.c.l.b16 %v792
        %v956 = vunpack.c.h.b16 %v792
        %v957 = vunpack.c.l.b16 %v793
        %v958 = vunpack.c.h.b16 %v793
        %v959 = vunpack.c.l.b16 %v794
        %v960 = vunpack.c.h.b16 %v794
        %v961 = vunpack.c.l.b16 %v795
        %v962 = vunpack.c.h.b16 %v795
        %v963 = vunpack.c.l.b16 %v796
        %v964 = vunpack.c.h.b16 %v796
        %v965 = vunpack.c.l.b16 %v797
        %v966 = vunpack.c.h.b16 %v797
        %v967 = vunpack.c.l.b16 %v798
        %v968 = vunpack.c.h.b16 %v798
        %v969 = vunpack.c.l.b16 %v799
        %v970 = vunpack.c.h.b16 %v799
        %v971 = vunpack.c.l.b16 %v800
        %v972 = vunpack.c.h.b16 %v800
        %v973 = vunpack.c.l.b16 %v801
        %v974 = vunpack.c.h.b16 %v801
        %v975 = vunpack.c.l.b16 %v802
        %v976 = vunpack.c.h.b16 %v802
        %v977 = vunpack.c.l.b16 %v803
        %v978 = vunpack.c.h.b16 %v803
        %v979 = vunpack.c.l.b16 %v804
        %v980 = vunpack.c.h.b16 %v804
        %v981 = vunpack.c.l.b16 %v805
        %v982 = vunpack.c.h.b16 %v805
        %v983 = vunpack.c.l.b16 %v806
        %v984 = vunpack.c.h.b16 %v806
        %v985 = vunpack.c.l.b16 %v807
        %v986 = vunpack.c.h.b16 %v807
        %v987 = vunpack.c.l.b16 %v808
        %v988 = vunpack.c.h.b16 %v808
        %v989 = vunpack.c.l.b16 %v809
        %v990 = vunpack.c.h.b16 %v809
        %v991 = vunpack.c.l.b16 %v810
        %v992 = vunpack.c.h.b16 %v810
        %v993 = vunpack.c.l.b16 %v811
        %v994 = vunpack.c.h.b16 %v811
        %v995 = vunpack.c.l.b16 %v812
        %v996 = vunpack.c.h.b16 %v812
        %v997 = vunpack.c.l.b16 %v813
        %v998 = vunpack.c.h.b16 %v813
        %v999 = vunpack.c.l.b16 %v814
        %v1000 = vunpack.c.h.b16 %v814
        %v1001 = vunpack.c.l.b16 %v815
        %v1002 = vunpack.c.h.b16 %v815
        %v1003 = vunpack.c.l.b16 %v816
        %v1004 = vunpack.c.h.b16 %v816
        %v1005 = vunpack.c.l.b16 %v817
        %v1006 = vunpack.c.h.b16 %v817
        %v1007 = vunpack.c.l.b16 %v818
        %v1008 = vunpack.c.h.b16 %v818
        %v1009 = vunpack.c.l.b16 %v819
        %v1010 = vunpack.c.h.b16 %v819
        %v1011 = vunpack.c.l.b16 %v820
        %v1012 = vunpack.c.h.b16 %v820
        %v1013 = vpack.c.b16 %v887, %v885
        %v1014 = vpack.c.b16 %v888, %v886
        %v1015 = vpack.c.b16 %v891, %v889
        %v1016 = vpack.c.b16 %v892, %v890
        %v1017 = vpack.c.b16 %v895, %v893
        %v1018 = vpack.c.b16 %v896, %v894
        %v1019 = vpack.c.b16 %v899, %v897
        %v1020 = vpack.c.b16 %v900, %v898
        %v1021 = vpack.c.b16 %v903, %v901
        %v1022 = vpack.c.b16 %v904, %v902
        %v1023 = vpack.c.b16 %v907, %v905
        %v1024 = vpack.c.b16 %v908, %v906
        %v1025 = vpack.c.b16 %v911, %v909
        %v1026 = vpack.c.b16 %v912, %v910
        %v1027 = vpack.c.b16 %v915, %v913
        %v1028 = vpack.c.b16 %v916, %v914
        %v1029 = vpack.c.b16 %v919, %v917
        %v1030 = vpack.c.b16 %v920, %v918
        %v1031 = vpack.c.b16 %v923, %v921
        %v1032 = vpack.c.b16 %v924, %v922
        %v1033 = vpack.c.b16 %v927, %v925
        %v1034 = vpack.c.b16 %v928, %v926
        %v1035 = vpack.c.b16 %v931, %v929
        %v1036 = vpack.c.b16 %v932, %v930
        %v1037 = vpack.c.b16 %v935, %v933
        %v1038 = vpack.c.b16 %v936, %v934
        %v1039 = vpack.c.b16 %v939, %v937
        %v1040 = vpack.c.b16 %v940, %v938
        %v1041 = vpack.c.b16 %v943, %v941
        %v1042 = vpack.c.b16 %v944, %v942
        %v1043 = vpack.c.b16 %v947, %v945
        %v1044 = vpack.c.b16 %v948, %v946
        %v1045 = vpack.c.b16 %v951, %v949
        %v1046 = vpack.c.b16 %v952, %v950
        %v1047 = vpack.c.b16 %v955, %v953
        %v1048 = vpack.c.b16 %v956, %v954
        %v1049 = vpack.c.b16 %v959, %v957
        %v1050 = vpack.c.b16 %v960, %v958
        %v1051 = vpack.c.b16 %v963, %v961
        %v1052 = vpack.c.b16 %v964, %v962
        %v1053 = vpack.c.b16 %v967, %v965
        %v1054 = vpack.c.b16 %v968, %v966
        %v1055 = vpack.c.b16 %v971, %v969
        %v1056 = vpack.c.b16 %v972, %v970
        %v1057 = vpack.c.b16 %v975, %v973
        %v1058 = vpack.c.b16 %v976, %v974
        %v1059 = vpack.c.b16 %v979, %v977
        %v1060 = vpack.c.b16 %v980, %v978
        %v1061 = vpack.c.b16 %v983, %v981
        %v1062 = vpack.c.b16 %v984, %v982
        %v1063 = vpack.c.b16 %v987, %v985
        %v1064 = vpack.c.b16 %v988, %v986
        %v1065 = vpack.c.b16 %v991, %v989
        %v1066 = vpack.c.b16 %v992, %v990
        %v1067 = vpack.c.b16 %v995, %v993
        %v1068 = vpack.c.b16 %v996, %v994
        %v1069 = vpack.c.b16 %v999, %v997
        %v1070 = vpack.c.b16 %v1000, %v998
        %v1071 = vpack.c.b16 %v1003, %v1001
        %v1072 = vpack.c.b16 %v1004, %v1002
        %v1073 = vpack.c.b16 %v1007, %v1005
        %v1074 = vpack.c.b16 %v1008, %v1006
        %v1075 = vpack.c.b16 %v1011, %v1009
        %v1076 = vpack.c.b16 %v1012, %v1010
        %1141 = vmatprep.subr.bf16.mxu0 %v470
        %1142 = vmatpush1.bf16.msra.mxu0 %v469
        %1143 = vmatprep.subr.bf16.mxu0 %v472
        %1144 = vmatpush1.bf16.msra.mxu0 %v471
        %1145 = vmatprep.subr.bf16.mxu0 %v474
        %1146 = vmatpush1.bf16.msra.mxu0 %v473
        %1147 = vmatprep.subr.bf16.mxu0 %v476
        %1148 = vmatpush1.bf16.msra.mxu0 %v475
        %1149 = vmatprep.subr.bf16.mxu0 %v478
        %1150 = vmatpush1.bf16.msra.mxu0 %v477
        %1151 = vmatprep.subr.bf16.mxu0 %v480
        %1152 = vmatpush1.bf16.msra.mxu0 %v479
        %1153 = vmatprep.subr.bf16.mxu0 %v482
        %1154 = vmatpush1.bf16.msra.mxu0 %v481
        %1155 = vmatprep.subr.bf16.mxu0 %v484
        %1156 = vmatpush1.bf16.msra.mxu0 %v483
        %1157 = vmatprep.subr.bf16.mxu0 %v486
        %1158 = vmatpush1.bf16.msra.mxu0 %v485
        %1159 = vmatprep.subr.bf16.mxu0 %v488
        %1160 = vmatpush1.bf16.msra.mxu0 %v487
        %1161 = vmatprep.subr.bf16.mxu0 %v490
        %1162 = vmatpush1.bf16.msra.mxu0 %v489
        %1163 = vmatprep.subr.bf16.mxu0 %v492
        %1164 = vmatpush1.bf16.msra.mxu0 %v491
        %1165 = vmatprep.subr.bf16.mxu0 %v494
        %1166 = vmatpush1.bf16.msra.mxu0 %v493
        %1167 = vmatprep.subr.bf16.mxu0 %v496
        %1168 = vmatpush1.bf16.msra.mxu0 %v495
        %1169 = vmatprep.subr.bf16.mxu0 %v498
        %1170 = vmatpush1.bf16.msra.mxu0 %v497
        %1171 = vmatprep.subr.bf16.mxu0 %v500
        %1172 = vmatpush1.bf16.msra.mxu0 %v499
        %1173 = vmatprep.mubr.bf16.mxu0 %v1014
        %1174 = vmatmul.mubr.bf16.gmra.mrb[0].mxu0 %v1013
        %v1175 = vpop.f32.mrb[0].mxu0
        %v1176 = vadd.f32 0.0, %v1175
        %v1177 = vpop.f32.mrb[0].mxu0
        %v1178 = vadd.f32 0.0, %v1177
        %v1179 = vpop.f32.mrb[0].mxu0
        %v1180 = vadd.f32 0.0, %v1179
        %v1181 = vpop.f32.mrb[0].mxu0
        %v1182 = vadd.f32 0.0, %v1181
        %1183 = vmatprep.mubr.bf16.mxu0 %v1016
        %1184 = vmatmul.mubr.bf16.gmra.mrb[0].mxu0 %v1015
        %v1185 = vpop.f32.mrb[0].mxu0
        %v1186 = vadd.f32 0.0, %v1185
        %v1187 = vpop.f32.mrb[0].mxu0
        %v1188 = vadd.f32 0.0, %v1187
        %v1189 = vpop.f32.mrb[0].mxu0
        %v1190 = vadd.f32 0.0, %v1189
        %v1191 = vpop.f32.mrb[0].mxu0
        %v1192 = vadd.f32 0.0, %v1191
        %1193 = vmatprep.mubr.bf16.mxu0 %v1018
        %1194 = vmatmul.mubr.bf16.gmra.mrb[0].mxu0 %v1017
        %v1195 = vpop.f32.mrb[0].mxu0
        %v1196 = vadd.f32 0.0, %v1195
        %v1197 = vpop.f32.mrb[0].mxu0
        %v1198 = vadd.f32 0.0, %v1197
        %v1199 = vpop.f32.mrb[0].mxu0
        %v1200 = vadd.f32 0.0, %v1199
        %v1201 = vpop.f32.mrb[0].mxu0
        %v1202 = vadd.f32 0.0, %v1201
        %1203 = vmatprep.mubr.bf16.mxu0 %v1020
        %1204 = vmatmul.mubr.bf16.gmra.mrb[0].mxu0 %v1019
        %v1205 = vpop.f32.mrb[0].mxu0
        %v1206 = vadd.f32 0.0, %v1205
        %v1207 = vpop.f32.mrb[0].mxu0
        %v1208 = vadd.f32 0.0, %v1207
        %v1209 = vpop.f32.mrb[0].mxu0
        %v1210 = vadd.f32 0.0, %v1209
        %v1211 = vpop.f32.mrb[0].mxu0
        %v1212 = vadd.f32 0.0, %v1211
        %1213 = vmatprep.mubr.bf16.mxu0 %v1022
        %1214 = vmatmul.mubr.bf16.gmra.mrb[0].mxu0 %v1021
        %v1215 = vpop.f32.mrb[0].mxu0
        %v1216 = vadd.f32 0.0, %v1215
        %v1217 = vpop.f32.mrb[0].mxu0
        %v1218 = vadd.f32 0.0, %v1217
        %v1219 = vpop.f32.mrb[0].mxu0
        %v1220 = vadd.f32 0.0, %v1219
        %v1221 = vpop.f32.mrb[0].mxu0
        %v1222 = vadd.f32 0.0, %v1221
        %1223 = vmatprep.mubr.bf16.mxu0 %v1024
        %1224 = vmatmul.mubr.bf16.gmra.mrb[0].mxu0 %v1023
        %v1225 = vpop.f32.mrb[0].mxu0
        %v1226 = vadd.f32 0.0, %v1225
        %v1227 = vpop.f32.mrb[0].mxu0
        %v1228 = vadd.f32 0.0, %v1227
        %v1229 = vpop.f32.mrb[0].mxu0
        %v1230 = vadd.f32 0.0, %v1229
        %v1231 = vpop.f32.mrb[0].mxu0
        %v1232 = vadd.f32 0.0, %v1231
        %1233 = vmatprep.mubr.bf16.mxu0 %v1026
        %1234 = vmatmul.mubr.bf16.gmra.mrb[0].mxu0 %v1025
        %v1235 = vpop.f32.mrb[0].mxu0
        %v1236 = vadd.f32 0.0, %v1235
        %v1237 = vpop.f32.mrb[0].mxu0
        %v1238 = vadd.f32 0.0, %v1237
        %v1239 = vpop.f32.mrb[0].mxu0
        %v1240 = vadd.f32 0.0, %v1239
        %v1241 = vpop.f32.mrb[0].mxu0
        %v1242 = vadd.f32 0.0, %v1241
        %1243 = vmatprep.mubr.bf16.mxu0 %v1028
        %1244 = vmatmul.mubr.bf16.gmra.mrb[0].mxu0 %v1027
        %v1245 = vpop.f32.mrb[0].mxu0
        %v1246 = vadd.f32 0.0, %v1245
        %v1247 = vpop.f32.mrb[0].mxu0
        %v1248 = vadd.f32 0.0, %v1247
        %v1249 = vpop.f32.mrb[0].mxu0
        %v1250 = vadd.f32 0.0, %v1249
        %v1251 = vpop.f32.mrb[0].mxu0
        %v1252 = vadd.f32 0.0, %v1251
        %1253 = vmatprep.mubr.bf16.mxu0 %v1030
        %1254 = vmatmul.mubr.bf16.gmra.mrb[0].mxu0 %v1029
        %v1255 = vpop.f32.mrb[0].mxu0
        %v1256 = vadd.f32 0.0, %v1255
        %v1257 = vpop.f32.mrb[0].mxu0
        %v1258 = vadd.f32 0.0, %v1257
        %v1259 = vpop.f32.mrb[0].mxu0
        %v1260 = vadd.f32 0.0, %v1259
        %v1261 = vpop.f32.mrb[0].mxu0
        %v1262 = vadd.f32 0.0, %v1261
        %1263 = vmatprep.mubr.bf16.mxu0 %v1032
        %1264 = vmatmul.mubr.bf16.gmra.mrb[0].mxu0 %v1031
        %v1265 = vpop.f32.mrb[0].mxu0
        %v1266 = vadd.f32 0.0, %v1265
        %v1267 = vpop.f32.mrb[0].mxu0
        %v1268 = vadd.f32 0.0, %v1267
        %v1269 = vpop.f32.mrb[0].mxu0
        %v1270 = vadd.f32 0.0, %v1269
        %v1271 = vpop.f32.mrb[0].mxu0
        %v1272 = vadd.f32 0.0, %v1271
        %1273 = vmatprep.mubr.bf16.mxu0 %v1034
        %1274 = vmatmul.mubr.bf16.gmra.mrb[0].mxu0 %v1033
        %v1275 = vpop.f32.mrb[0].mxu0
        %v1276 = vadd.f32 0.0, %v1275
        %v1277 = vpop.f32.mrb[0].mxu0
        %v1278 = vadd.f32 0.0, %v1277
        %v1279 = vpop.f32.mrb[0].mxu0
        %v1280 = vadd.f32 0.0, %v1279
        %v1281 = vpop.f32.mrb[0].mxu0
        %v1282 = vadd.f32 0.0, %v1281
        %1283 = vmatprep.mubr.bf16.mxu0 %v1036
        %1284 = vmatmul.mubr.bf16.gmra.mrb[0].mxu0 %v1035
        %v1285 = vpop.f32.mrb[0].mxu0
        %v1286 = vadd.f32 0.0, %v1285
        %v1287 = vpop.f32.mrb[0].mxu0
        %v1288 = vadd.f32 0.0, %v1287
        %v1289 = vpop.f32.mrb[0].mxu0
        %v1290 = vadd.f32 0.0, %v1289
        %v1291 = vpop.f32.mrb[0].mxu0
        %v1292 = vadd.f32 0.0, %v1291
        %1293 = vmatprep.mubr.bf16.mxu0 %v1038
        %1294 = vmatmul.mubr.bf16.gmra.mrb[0].mxu0 %v1037
        %v1295 = vpop.f32.mrb[0].mxu0
        %v1296 = vadd.f32 0.0, %v1295
        %v1297 = vpop.f32.mrb[0].mxu0
        %v1298 = vadd.f32 0.0, %v1297
        %v1299 = vpop.f32.mrb[0].mxu0
        %v1300 = vadd.f32 0.0, %v1299
        %v1301 = vpop.f32.mrb[0].mxu0
        %v1302 = vadd.f32 0.0, %v1301
        %1303 = vmatprep.mubr.bf16.mxu0 %v1040
        %1304 = vmatmul.mubr.bf16.gmra.mrb[0].mxu0 %v1039
        %v1305 = vpop.f32.mrb[0].mxu0
        %v1306 = vadd.f32 0.0, %v1305
        %v1307 = vpop.f32.mrb[0].mxu0
        %v1308 = vadd.f32 0.0, %v1307
        %v1309 = vpop.f32.mrb[0].mxu0
        %v1310 = vadd.f32 0.0, %v1309
        %v1311 = vpop.f32.mrb[0].mxu0
        %v1312 = vadd.f32 0.0, %v1311
        %1313 = vmatprep.mubr.bf16.mxu0 %v1042
        %1314 = vmatmul.mubr.bf16.gmra.mrb[0].mxu0 %v1041
        %v1315 = vpop.f32.mrb[0].mxu0
        %v1316 = vadd.f32 0.0, %v1315
        %v1317 = vpop.f32.mrb[0].mxu0
        %v1318 = vadd.f32 0.0, %v1317
        %v1319 = vpop.f32.mrb[0].mxu0
        %v1320 = vadd.f32 0.0, %v1319
        %v1321 = vpop.f32.mrb[0].mxu0
        %v1322 = vadd.f32 0.0, %v1321
        %1323 = vmatprep.mubr.bf16.mxu0 %v1044
        %1324 = vmatmul.mubr.bf16.gmra.mrb[0].mxu0 %v1043
        %v1325 = vpop.f32.mrb[0].mxu0
        %v1326 = vadd.f32 0.0, %v1325
        %v1327 = vpop.f32.mrb[0].mxu0
        %v1328 = vadd.f32 0.0, %v1327
        %v1329 = vpop.f32.mrb[0].mxu0
        %v1330 = vadd.f32 0.0, %v1329
        %v1331 = vpop.f32.mrb[0].mxu0
        %v1332 = vadd.f32 0.0, %v1331
        %1333 = vmatprep.mubr.bf16.mxu0 %v1046
        %1334 = vmatmul.mubr.bf16.gmra.mrb[0].mxu0 %v1045
        %v1335 = vpop.f32.mrb[0].mxu0
        %v1336 = vadd.f32 0.0, %v1335
        %v1337 = vpop.f32.mrb[0].mxu0
        %v1338 = vadd.f32 0.0, %v1337
        %v1339 = vpop.f32.mrb[0].mxu0
        %v1340 = vadd.f32 0.0, %v1339
        %v1341 = vpop.f32.mrb[0].mxu0
        %v1342 = vadd.f32 0.0, %v1341
        %1343 = vmatprep.mubr.bf16.mxu0 %v1048
        %1344 = vmatmul.mubr.bf16.gmra.mrb[0].mxu0 %v1047
        %v1345 = vpop.f32.mrb[0].mxu0
        %v1346 = vadd.f32 0.0, %v1345
        %v1347 = vpop.f32.mrb[0].mxu0
        %v1348 = vadd.f32 0.0, %v1347
        %v1349 = vpop.f32.mrb[0].mxu0
        %v1350 = vadd.f32 0.0, %v1349
        %v1351 = vpop.f32.mrb[0].mxu0
        %v1352 = vadd.f32 0.0, %v1351
        %1353 = vmatprep.mubr.bf16.mxu0 %v1050
        %1354 = vmatmul.mubr.bf16.gmra.mrb[0].mxu0 %v1049
        %v1355 = vpop.f32.mrb[0].mxu0
        %v1356 = vadd.f32 0.0, %v1355
        %v1357 = vpop.f32.mrb[0].mxu0
        %v1358 = vadd.f32 0.0, %v1357
        %v1359 = vpop.f32.mrb[0].mxu0
        %v1360 = vadd.f32 0.0, %v1359
        %v1361 = vpop.f32.mrb[0].mxu0
        %v1362 = vadd.f32 0.0, %v1361
        %1363 = vmatprep.mubr.bf16.mxu0 %v1052
        %1364 = vmatmul.mubr.bf16.gmra.mrb[0].mxu0 %v1051
        %v1365 = vpop.f32.mrb[0].mxu0
        %v1366 = vadd.f32 0.0, %v1365
        %v1367 = vpop.f32.mrb[0].mxu0
        %v1368 = vadd.f32 0.0, %v1367
        %v1369 = vpop.f32.mrb[0].mxu0
        %v1370 = vadd.f32 0.0, %v1369
        %v1371 = vpop.f32.mrb[0].mxu0
        %v1372 = vadd.f32 0.0, %v1371
        %1373 = vmatprep.mubr.bf16.mxu0 %v1054
        %1374 = vmatmul.mubr.bf16.gmra.mrb[0].mxu0 %v1053
        %v1375 = vpop.f32.mrb[0].mxu0
        %v1376 = vadd.f32 0.0, %v1375
        %v1377 = vpop.f32.mrb[0].mxu0
        %v1378 = vadd.f32 0.0, %v1377
        %v1379 = vpop.f32.mrb[0].mxu0
        %v1380 = vadd.f32 0.0, %v1379
        %v1381 = vpop.f32.mrb[0].mxu0
        %v1382 = vadd.f32 0.0, %v1381
        %1383 = vmatprep.mubr.bf16.mxu0 %v1056
        %1384 = vmatmul.mubr.bf16.gmra.mrb[0].mxu0 %v1055
        %v1385 = vpop.f32.mrb[0].mxu0
        %v1386 = vadd.f32 0.0, %v1385
        %v1387 = vpop.f32.mrb[0].mxu0
        %v1388 = vadd.f32 0.0, %v1387
        %v1389 = vpop.f32.mrb[0].mxu0
        %v1390 = vadd.f32 0.0, %v1389
        %v1391 = vpop.f32.mrb[0].mxu0
        %v1392 = vadd.f32 0.0, %v1391
        %1393 = vmatprep.mubr.bf16.mxu0 %v1058
        %1394 = vmatmul.mubr.bf16.gmra.mrb[0].mxu0 %v1057
        %v1395 = vpop.f32.mrb[0].mxu0
        %v1396 = vadd.f32 0.0, %v1395
        %v1397 = vpop.f32.mrb[0].mxu0
        %v1398 = vadd.f32 0.0, %v1397
        %v1399 = vpop.f32.mrb[0].mxu0
        %v1400 = vadd.f32 0.0, %v1399
        %v1401 = vpop.f32.mrb[0].mxu0
        %v1402 = vadd.f32 0.0, %v1401
        %1403 = vmatprep.mubr.bf16.mxu0 %v1060
        %1404 = vmatmul.mubr.bf16.gmra.mrb[0].mxu0 %v1059
        %v1405 = vpop.f32.mrb[0].mxu0
        %v1406 = vadd.f32 0.0, %v1405
        %v1407 = vpop.f32.mrb[0].mxu0
        %v1408 = vadd.f32 0.0, %v1407
        %v1409 = vpop.f32.mrb[0].mxu0
        %v1410 = vadd.f32 0.0, %v1409
        %v1411 = vpop.f32.mrb[0].mxu0
        %v1412 = vadd.f32 0.0, %v1411
        %1413 = vmatprep.mubr.bf16.mxu0 %v1062
        %1414 = vmatmul.mubr.bf16.gmra.mrb[0].mxu0 %v1061
        %v1415 = vpop.f32.mrb[0].mxu0
        %v1416 = vadd.f32 0.0, %v1415
        %v1417 = vpop.f32.mrb[0].mxu0
        %v1418 = vadd.f32 0.0, %v1417
        %v1419 = vpop.f32.mrb[0].mxu0
        %v1420 = vadd.f32 0.0, %v1419
        %v1421 = vpop.f32.mrb[0].mxu0
        %v1422 = vadd.f32 0.0, %v1421
        %1423 = vmatprep.mubr.bf16.mxu0 %v1064
        %1424 = vmatmul.mubr.bf16.gmra.mrb[0].mxu0 %v1063
        %v1425 = vpop.f32.mrb[0].mxu0
        %v1426 = vadd.f32 0.0, %v1425
        %v1427 = vpop.f32.mrb[0].mxu0
        %v1428 = vadd.f32 0.0, %v1427
        %v1429 = vpop.f32.mrb[0].mxu0
        %v1430 = vadd.f32 0.0, %v1429
        %v1431 = vpop.f32.mrb[0].mxu0
        %v1432 = vadd.f32 0.0, %v1431
        %1433 = vmatprep.mubr.bf16.mxu0 %v1066
        %1434 = vmatmul.mubr.bf16.gmra.mrb[0].mxu0 %v1065
        %v1435 = vpop.f32.mrb[0].mxu0
        %v1436 = vadd.f32 0.0, %v1435
        %v1437 = vpop.f32.mrb[0].mxu0
        %v1438 = vadd.f32 0.0, %v1437
        %v1439 = vpop.f32.mrb[0].mxu0
        %v1440 = vadd.f32 0.0, %v1439
        %v1441 = vpop.f32.mrb[0].mxu0
        %v1442 = vadd.f32 0.0, %v1441
        %1443 = vmatprep.mubr.bf16.mxu0 %v1068
        %1444 = vmatmul.mubr.bf16.gmra.mrb[0].mxu0 %v1067
        %v1445 = vpop.f32.mrb[0].mxu0
        %v1446 = vadd.f32 0.0, %v1445
        %v1447 = vpop.f32.mrb[0].mxu0
        %v1448 = vadd.f32 0.0, %v1447
        %v1449 = vpop.f32.mrb[0].mxu0
        %v1450 = vadd.f32 0.0, %v1449
        %v1451 = vpop.f32.mrb[0].mxu0
        %v1452 = vadd.f32 0.0, %v1451
        %1453 = vmatprep.mubr.bf16.mxu0 %v1070
        %1454 = vmatmul.mubr.bf16.gmra.mrb[0].mxu0 %v1069
        %v1455 = vpop.f32.mrb[0].mxu0
        %v1456 = vadd.f32 0.0, %v1455
        %v1457 = vpop.f32.mrb[0].mxu0
        %v1458 = vadd.f32 0.0, %v1457
        %v1459 = vpop.f32.mrb[0].mxu0
        %v1460 = vadd.f32 0.0, %v1459
        %v1461 = vpop.f32.mrb[0].mxu0
        %v1462 = vadd.f32 0.0, %v1461
        %1463 = vmatprep.mubr.bf16.mxu0 %v1072
        %1464 = vmatmul.mubr.bf16.gmra.mrb[0].mxu0 %v1071
        %v1465 = vpop.f32.mrb[0].mxu0
        %v1466 = vadd.f32 0.0, %v1465
        %v1467 = vpop.f32.mrb[0].mxu0
        %v1468 = vadd.f32 0.0, %v1467
        %v1469 = vpop.f32.mrb[0].mxu0
        %v1470 = vadd.f32 0.0, %v1469
        %v1471 = vpop.f32.mrb[0].mxu0
        %v1472 = vadd.f32 0.0, %v1471
        %1473 = vmatprep.mubr.bf16.mxu0 %v1074
        %1474 = vmatmul.mubr.bf16.gmra.mrb[0].mxu0 %v1073
        %v1475 = vpop.f32.mrb[0].mxu0
        %v1476 = vadd.f32 0.0, %v1475
        %v1477 = vpop.f32.mrb[0].mxu0
        %v1478 = vadd.f32 0.0, %v1477
        %v1479 = vpop.f32.mrb[0].mxu0
        %v1480 = vadd.f32 0.0, %v1479
        %v1481 = vpop.f32.mrb[0].mxu0
        %v1482 = vadd.f32 0.0, %v1481
        %1483 = vmatprep.mubr.bf16.mxu0 %v1076
        %1484 = vmatmul.mubr.bf16.gmra.mrb[0].mxu0 %v1075
        %v1485 = vpop.f32.mrb[0].mxu0
        %v1486 = vadd.f32 0.0, %v1485
        %v1487 = vpop.f32.mrb[0].mxu0
        %v1488 = vadd.f32 0.0, %v1487
        %v1489 = vpop.f32.mrb[0].mxu0
        %v1490 = vadd.f32 0.0, %v1489
        %v1491 = vpop.f32.mrb[0].mxu0
        %v1492 = vadd.f32 0.0, %v1491
        %1493 = vdwg.mxu0
        %v1494 = vpack.c.bf16 %v1180, %v1176
        %v1495 = vpack.c.bf16 %v1182, %v1178
        %v1496 = vpack.c.bf16 %v1190, %v1186
        %v1497 = vpack.c.bf16 %v1192, %v1188
        %v1498 = vpack.c.bf16 %v1200, %v1196
        %v1499 = vpack.c.bf16 %v1202, %v1198
        %v1500 = vpack.c.bf16 %v1210, %v1206
        %v1501 = vpack.c.bf16 %v1212, %v1208
        %v1502 = vpack.c.bf16 %v1220, %v1216
        %v1503 = vpack.c.bf16 %v1222, %v1218
        %v1504 = vpack.c.bf16 %v1230, %v1226
        %v1505 = vpack.c.bf16 %v1232, %v1228
        %v1506 = vpack.c.bf16 %v1240, %v1236
        %v1507 = vpack.c.bf16 %v1242, %v1238
        %v1508 = vpack.c.bf16 %v1250, %v1246
        %v1509 = vpack.c.bf16 %v1252, %v1248
        %v1510 = vpack.c.bf16 %v1260, %v1256
        %v1511 = vpack.c.bf16 %v1262, %v1258
        %v1512 = vpack.c.bf16 %v1270, %v1266
        %v1513 = vpack.c.bf16 %v1272, %v1268
        %v1514 = vpack.c.bf16 %v1280, %v1276
        %v1515 = vpack.c.bf16 %v1282, %v1278
        %v1516 = vpack.c.bf16 %v1290, %v1286
        %v1517 = vpack.c.bf16 %v1292, %v1288
        %v1518 = vpack.c.bf16 %v1300, %v1296
        %v1519 = vpack.c.bf16 %v1302, %v1298
        %v1520 = vpack.c.bf16 %v1310, %v1306
        %v1521 = vpack.c.bf16 %v1312, %v1308
        %v1522 = vpack.c.bf16 %v1320, %v1316
        %v1523 = vpack.c.bf16 %v1322, %v1318
        %v1524 = vpack.c.bf16 %v1330, %v1326
        %v1525 = vpack.c.bf16 %v1332, %v1328
        %v1526 = vpack.c.bf16 %v1340, %v1336
        %v1527 = vpack.c.bf16 %v1342, %v1338
        %v1528 = vpack.c.bf16 %v1350, %v1346
        %v1529 = vpack.c.bf16 %v1352, %v1348
        %v1530 = vpack.c.bf16 %v1360, %v1356
        %v1531 = vpack.c.bf16 %v1362, %v1358
        %v1532 = vpack.c.bf16 %v1370, %v1366
        %v1533 = vpack.c.bf16 %v1372, %v1368
        %v1534 = vpack.c.bf16 %v1380, %v1376
        %v1535 = vpack.c.bf16 %v1382, %v1378
        %v1536 = vpack.c.bf16 %v1390, %v1386
        %v1537 = vpack.c.bf16 %v1392, %v1388
        %v1538 = vpack.c.bf16 %v1400, %v1396
        %v1539 = vpack.c.bf16 %v1402, %v1398
        %v1540 = vpack.c.bf16 %v1410, %v1406
        %v1541 = vpack.c.bf16 %v1412, %v1408
        %v1542 = vpack.c.bf16 %v1420, %v1416
        %v1543 = vpack.c.bf16 %v1422, %v1418
        %v1544 = vpack.c.bf16 %v1430, %v1426
        %v1545 = vpack.c.bf16 %v1432, %v1428
        %v1546 = vpack.c.bf16 %v1440, %v1436
        %v1547 = vpack.c.bf16 %v1442, %v1438
        %v1548 = vpack.c.bf16 %v1450, %v1446
        %v1549 = vpack.c.bf16 %v1452, %v1448
        %v1550 = vpack.c.bf16 %v1460, %v1456
        %v1551 = vpack.c.bf16 %v1462, %v1458
        %v1552 = vpack.c.bf16 %v1470, %v1466
        %v1553 = vpack.c.bf16 %v1472, %v1468
        %v1554 = vpack.c.bf16 %v1480, %v1476
        %v1555 = vpack.c.bf16 %v1482, %v1478
        %v1556 = vpack.c.bf16 %v1490, %v1486
        %v1557 = vpack.c.bf16 %v1492, %v1488
        %1559 = vset.pattern.permute.xlu0 0
        %1560 = vperm.xlu0 %1559, %v565
        %v1561 = vpop.permute.xlu0 %1560
        %1564 = vset.pattern.permute.xlu0 0
        %1565 = vperm.xlu0 %1564, %v566
        %v1566 = vpop.permute.xlu0 %1565
        %1569 = vset.pattern.permute.xlu0 0
        %1570 = vperm.xlu0 %1569, %v567
        %v1571 = vpop.permute.xlu0 %1570
        %1574 = vset.pattern.permute.xlu0 0
        %1575 = vperm.xlu0 %1574, %v568
        %v1576 = vpop.permute.xlu0 %1575
        %1579 = vset.pattern.permute.xlu0 0
        %1580 = vperm.xlu0 %1579, %v569
        %v1581 = vpop.permute.xlu0 %1580
        %1584 = vset.pattern.permute.xlu0 0
        %1585 = vperm.xlu0 %1584, %v570
        %v1586 = vpop.permute.xlu0 %1585
        %1589 = vset.pattern.permute.xlu0 0
        %1590 = vperm.xlu0 %1589, %v571
        %v1591 = vpop.permute.xlu0 %1590
        %1594 = vset.pattern.permute.xlu0 0
        %1595 = vperm.xlu0 %1594, %v572
        %v1596 = vpop.permute.xlu0 %1595
        %1599 = vset.pattern.permute.xlu0 0
        %1600 = vperm.xlu0 %1599, %v573
        %v1601 = vpop.permute.xlu0 %1600
        %1604 = vset.pattern.permute.xlu0 0
        %1605 = vperm.xlu0 %1604, %v574
        %v1606 = vpop.permute.xlu0 %1605
        %1609 = vset.pattern.permute.xlu0 0
        %1610 = vperm.xlu0 %1609, %v575
        %v1611 = vpop.permute.xlu0 %1610
        %1614 = vset.pattern.permute.xlu0 0
        %1615 = vperm.xlu0 %1614, %v576
        %v1616 = vpop.permute.xlu0 %1615
        %1619 = vset.pattern.permute.xlu0 0
        %1620 = vperm.xlu0 %1619, %v577
        %v1621 = vpop.permute.xlu0 %1620
        %1624 = vset.pattern.permute.xlu0 0
        %1625 = vperm.xlu0 %1624, %v578
        %v1626 = vpop.permute.xlu0 %1625
        %1629 = vset.pattern.permute.xlu0 0
        %1630 = vperm.xlu0 %1629, %v579
        %v1631 = vpop.permute.xlu0 %1630
        %1634 = vset.pattern.permute.xlu0 0
        %1635 = vperm.xlu0 %1634, %v580
        %v1636 = vpop.permute.xlu0 %1635
        %1639 = vset.pattern.permute.xlu0 0
        %1640 = vperm.xlu0 %1639, %v581
        %v1641 = vpop.permute.xlu0 %1640
        %1644 = vset.pattern.permute.xlu0 0
        %1645 = vperm.xlu0 %1644, %v582
        %v1646 = vpop.permute.xlu0 %1645
        %1649 = vset.pattern.permute.xlu0 0
        %1650 = vperm.xlu0 %1649, %v583
        %v1651 = vpop.permute.xlu0 %1650
        %1654 = vset.pattern.permute.xlu0 0
        %1655 = vperm.xlu0 %1654, %v584
        %v1656 = vpop.permute.xlu0 %1655
        %1659 = vset.pattern.permute.xlu0 0
        %1660 = vperm.xlu0 %1659, %v585
        %v1661 = vpop.permute.xlu0 %1660
        %1664 = vset.pattern.permute.xlu0 0
        %1665 = vperm.xlu0 %1664, %v586
        %v1666 = vpop.permute.xlu0 %1665
        %1669 = vset.pattern.permute.xlu0 0
        %1670 = vperm.xlu0 %1669, %v587
        %v1671 = vpop.permute.xlu0 %1670
        %1674 = vset.pattern.permute.xlu0 0
        %1675 = vperm.xlu0 %1674, %v588
        %v1676 = vpop.permute.xlu0 %1675
        %1679 = vset.pattern.permute.xlu0 0
        %1680 = vperm.xlu0 %1679, %v589
        %v1681 = vpop.permute.xlu0 %1680
        %1684 = vset.pattern.permute.xlu0 0
        %1685 = vperm.xlu0 %1684, %v590
        %v1686 = vpop.permute.xlu0 %1685
        %1689 = vset.pattern.permute.xlu0 0
        %1690 = vperm.xlu0 %1689, %v591
        %v1691 = vpop.permute.xlu0 %1690
        %1694 = vset.pattern.permute.xlu0 0
        %1695 = vperm.xlu0 %1694, %v592
        %v1696 = vpop.permute.xlu0 %1695
        %1699 = vset.pattern.permute.xlu0 0
        %1700 = vperm.xlu0 %1699, %v593
        %v1701 = vpop.permute.xlu0 %1700
        %1704 = vset.pattern.permute.xlu0 0
        %1705 = vperm.xlu0 %1704, %v594
        %v1706 = vpop.permute.xlu0 %1705
        %1709 = vset.pattern.permute.xlu0 0
        %1710 = vperm.xlu0 %1709, %v595
        %v1711 = vpop.permute.xlu0 %1710
        %1714 = vset.pattern.permute.xlu0 0
        %1715 = vperm.xlu0 %1714, %v596
        %v1716 = vpop.permute.xlu0 %1715
        %v1718 = vadd.bf16 %v1494, %v1561
        %v1719 = vadd.bf16 %v1495, %v1561
        %v1720 = vadd.bf16 %v1496, %v1566
        %v1721 = vadd.bf16 %v1497, %v1566
        %v1722 = vadd.bf16 %v1498, %v1571
        %v1723 = vadd.bf16 %v1499, %v1571
        %v1724 = vadd.bf16 %v1500, %v1576
        %v1725 = vadd.bf16 %v1501, %v1576
        %v1726 = vadd.bf16 %v1502, %v1581
        %v1727 = vadd.bf16 %v1503, %v1581
        %v1728 = vadd.bf16 %v1504, %v1586
        %v1729 = vadd.bf16 %v1505, %v1586
        %v1730 = vadd.bf16 %v1506, %v1591
        %v1731 = vadd.bf16 %v1507, %v1591
        %v1732 = vadd.bf16 %v1508, %v1596
        %v1733 = vadd.bf16 %v1509, %v1596
        %v1734 = vadd.bf16 %v1510, %v1601
        %v1735 = vadd.bf16 %v1511, %v1601
        %v1736 = vadd.bf16 %v1512, %v1606
        %v1737 = vadd.bf16 %v1513, %v1606
        %v1738 = vadd.bf16 %v1514, %v1611
        %v1739 = vadd.bf16 %v1515, %v1611
        %v1740 = vadd.bf16 %v1516, %v1616
        %v1741 = vadd.bf16 %v1517, %v1616
        %v1742 = vadd.bf16 %v1518, %v1621
        %v1743 = vadd.bf16 %v1519, %v1621
        %v1744 = vadd.bf16 %v1520, %v1626
        %v1745 = vadd.bf16 %v1521, %v1626
        %v1746 = vadd.bf16 %v1522, %v1631
        %v1747 = vadd.bf16 %v1523, %v1631
        %v1748 = vadd.bf16 %v1524, %v1636
        %v1749 = vadd.bf16 %v1525, %v1636
        %v1750 = vadd.bf16 %v1526, %v1641
        %v1751 = vadd.bf16 %v1527, %v1641
        %v1752 = vadd.bf16 %v1528, %v1646
        %v1753 = vadd.bf16 %v1529, %v1646
        %v1754 = vadd.bf16 %v1530, %v1651
        %v1755 = vadd.bf16 %v1531, %v1651
        %v1756 = vadd.bf16 %v1532, %v1656
        %v1757 = vadd.bf16 %v1533, %v1656
        %v1758 = vadd.bf16 %v1534, %v1661
        %v1759 = vadd.bf16 %v1535, %v1661
        %v1760 = vadd.bf16 %v1536, %v1666
        %v1761 = vadd.bf16 %v1537, %v1666
        %v1762 = vadd.bf16 %v1538, %v1671
        %v1763 = vadd.bf16 %v1539, %v1671
        %v1764 = vadd.bf16 %v1540, %v1676
        %v1765 = vadd.bf16 %v1541, %v1676
        %v1766 = vadd.bf16 %v1542, %v1681
        %v1767 = vadd.bf16 %v1543, %v1681
        %v1768 = vadd.bf16 %v1544, %v1686
        %v1769 = vadd.bf16 %v1545, %v1686
        %v1770 = vadd.bf16 %v1546, %v1691
        %v1771 = vadd.bf16 %v1547, %v1691
        %v1772 = vadd.bf16 %v1548, %v1696
        %v1773 = vadd.bf16 %v1549, %v1696
        %v1774 = vadd.bf16 %v1550, %v1701
        %v1775 = vadd.bf16 %v1551, %v1701
        %v1776 = vadd.bf16 %v1552, %v1706
        %v1777 = vadd.bf16 %v1553, %v1706
        %v1778 = vadd.bf16 %v1554, %v1711
        %v1779 = vadd.bf16 %v1555, %v1711
        %v1780 = vadd.bf16 %v1556, %v1716
        %v1781 = vadd.bf16 %v1557, %v1716
        %v1782 = vmax.bf16 %v1718, 0
        %v1783 = vmax.bf16 %v1719, 0
        %v1784 = vmax.bf16 %v1720, 0
        %v1785 = vmax.bf16 %v1721, 0
        %v1786 = vmax.bf16 %v1722, 0
        %v1787 = vmax.bf16 %v1723, 0
        %v1788 = vmax.bf16 %v1724, 0
        %v1789 = vmax.bf16 %v1725, 0
        %v1790 = vmax.bf16 %v1726, 0
        %v1791 = vmax.bf16 %v1727, 0
        %v1792 = vmax.bf16 %v1728, 0
        %v1793 = vmax.bf16 %v1729, 0
        %v1794 = vmax.bf16 %v1730, 0
        %v1795 = vmax.bf16 %v1731, 0
        %v1796 = vmax.bf16 %v1732, 0
        %v1797 = vmax.bf16 %v1733, 0
        %v1798 = vmax.bf16 %v1734, 0
        %v1799 = vmax.bf16 %v1735, 0
        %v1800 = vmax.bf16 %v1736, 0
        %v1801 = vmax.bf16 %v1737, 0
        %v1802 = vmax.bf16 %v1738, 0
        %v1803 = vmax.bf16 %v1739, 0
        %v1804 = vmax.bf16 %v1740, 0
        %v1805 = vmax.bf16 %v1741, 0
        %v1806 = vmax.bf16 %v1742, 0
        %v1807 = vmax.bf16 %v1743, 0
        %v1808 = vmax.bf16 %v1744, 0
        %v1809 = vmax.bf16 %v1745, 0
        %v1810 = vmax.bf16 %v1746, 0
        %v1811 = vmax.bf16 %v1747, 0
        %v1812 = vmax.bf16 %v1748, 0
        %v1813 = vmax.bf16 %v1749, 0
        %v1814 = vmax.bf16 %v1750, 0
        %v1815 = vmax.bf16 %v1751, 0
        %v1816 = vmax.bf16 %v1752, 0
        %v1817 = vmax.bf16 %v1753, 0
        %v1818 = vmax.bf16 %v1754, 0
        %v1819 = vmax.bf16 %v1755, 0
        %v1820 = vmax.bf16 %v1756, 0
        %v1821 = vmax.bf16 %v1757, 0
        %v1822 = vmax.bf16 %v1758, 0
        %v1823 = vmax.bf16 %v1759, 0
        %v1824 = vmax.bf16 %v1760, 0
        %v1825 = vmax.bf16 %v1761, 0
        %v1826 = vmax.bf16 %v1762, 0
        %v1827 = vmax.bf16 %v1763, 0
        %v1828 = vmax.bf16 %v1764, 0
        %v1829 = vmax.bf16 %v1765, 0
        %v1830 = vmax.bf16 %v1766, 0
        %v1831 = vmax.bf16 %v1767, 0
        %v1832 = vmax.bf16 %v1768, 0
        %v1833 = vmax.bf16 %v1769, 0
        %v1834 = vmax.bf16 %v1770, 0
        %v1835 = vmax.bf16 %v1771, 0
        %v1836 = vmax.bf16 %v1772, 0
        %v1837 = vmax.bf16 %v1773, 0
        %v1838 = vmax.bf16 %v1774, 0
        %v1839 = vmax.bf16 %v1775, 0
        %v1840 = vmax.bf16 %v1776, 0
        %v1841 = vmax.bf16 %v1777, 0
        %v1842 = vmax.bf16 %v1778, 0
        %v1843 = vmax.bf16 %v1779, 0
        %v1844 = vmax.bf16 %v1780, 0
        %v1845 = vmax.bf16 %v1781, 0
        %v1846 = vld [vmem:[#allocation7] sm:$0xff]
        %v1847 = vld [vmem:[#allocation7 + $0x8] sm:$0xff]
        %v1848 = vld [vmem:[#allocation7 + $0x10] sm:$0xff]
        %v1849 = vld [vmem:[#allocation7 + $0x18] sm:$0xff]
        %v1850 = vld [vmem:[#allocation7 + $0x20] sm:$0xff]
        %v1851 = vld [vmem:[#allocation7 + $0x28] sm:$0xff]
        %v1852 = vld [vmem:[#allocation7 + $0x30] sm:$0xff]
        %v1853 = vld [vmem:[#allocation7 + $0x38] sm:$0xff]
        %v1854 = vld [vmem:[#allocation7 + $0x40] sm:$0xff]
        %v1855 = vld [vmem:[#allocation7 + $0x48] sm:$0xff]
        %v1856 = vld [vmem:[#allocation7 + $0x50] sm:$0xff]
        %v1857 = vld [vmem:[#allocation7 + $0x58] sm:$0xff]
        %v1858 = vld [vmem:[#allocation7 + $0x60] sm:$0xff]
        %v1859 = vld [vmem:[#allocation7 + $0x68] sm:$0xff]
        %v1860 = vld [vmem:[#allocation7 + $0x70] sm:$0xff]
        %v1861 = vld [vmem:[#allocation7 + $0x78] sm:$0xff]
        %v1862 = vld [vmem:[#allocation7 + $0x80] sm:$0xff]
        %v1863 = vld [vmem:[#allocation7 + $0x88] sm:$0xff]
        %v1864 = vld [vmem:[#allocation7 + $0x90] sm:$0xff]
        %v1865 = vld [vmem:[#allocation7 + $0x98] sm:$0xff]
        %v1866 = vld [vmem:[#allocation7 + $0xa0] sm:$0xff]
        %v1867 = vld [vmem:[#allocation7 + $0xa8] sm:$0xff]
        %v1868 = vld [vmem:[#allocation7 + $0xb0] sm:$0xff]
        %v1869 = vld [vmem:[#allocation7 + $0xb8] sm:$0xff]
        %v1870 = vld [vmem:[#allocation7 + $0xc0] sm:$0xff]
        %v1871 = vld [vmem:[#allocation7 + $0xc8] sm:$0xff]
        %v1872 = vld [vmem:[#allocation7 + $0xd0] sm:$0xff]
        %v1873 = vld [vmem:[#allocation7 + $0xd8] sm:$0xff]
        %v1874 = vld [vmem:[#allocation7 + $0xe0] sm:$0xff]
        %v1875 = vld [vmem:[#allocation7 + $0xe8] sm:$0xff]
        %v1876 = vld [vmem:[#allocation7 + $0xf0] sm:$0xff]
        %v1877 = vld [vmem:[#allocation7 + $0xf8] sm:$0xff]
        %v1878 = vld [vmem:[#allocation7 + $0x100] sm:$0xff]
        %v1879 = vld [vmem:[#allocation7 + $0x108] sm:$0xff]
        %v1880 = vld [vmem:[#allocation7 + $0x110] sm:$0xff]
        %v1881 = vld [vmem:[#allocation7 + $0x118] sm:$0xff]
        %v1882 = vld [vmem:[#allocation7 + $0x120] sm:$0xff]
        %v1883 = vld [vmem:[#allocation7 + $0x128] sm:$0xff]
        %v1884 = vld [vmem:[#allocation7 + $0x130] sm:$0xff]
        %v1885 = vld [vmem:[#allocation7 + $0x138] sm:$0xff]
        %v1886 = vld [vmem:[#allocation7 + $0x140] sm:$0xff]
        %v1887 = vld [vmem:[#allocation7 + $0x148] sm:$0xff]
        %v1888 = vld [vmem:[#allocation7 + $0x150] sm:$0xff]
        %v1889 = vld [vmem:[#allocation7 + $0x158] sm:$0xff]
        %v1890 = vld [vmem:[#allocation7 + $0x160] sm:$0xff]
        %v1891 = vld [vmem:[#allocation7 + $0x168] sm:$0xff]
        %v1892 = vld [vmem:[#allocation7 + $0x170] sm:$0xff]
        %v1893 = vld [vmem:[#allocation7 + $0x178] sm:$0xff]
        %v1894 = vld [vmem:[#allocation7 + $0x180] sm:$0xff]
        %v1895 = vld [vmem:[#allocation7 + $0x188] sm:$0xff]
        %v1896 = vld [vmem:[#allocation7 + $0x190] sm:$0xff]
        %v1897 = vld [vmem:[#allocation7 + $0x198] sm:$0xff]
        %v1898 = vld [vmem:[#allocation7 + $0x1a0] sm:$0xff]
        %v1899 = vld [vmem:[#allocation7 + $0x1a8] sm:$0xff]
        %v1900 = vld [vmem:[#allocation7 + $0x1b0] sm:$0xff]
        %v1901 = vld [vmem:[#allocation7 + $0x1b8] sm:$0xff]
        %v1902 = vld [vmem:[#allocation7 + $0x1c0] sm:$0xff]
        %v1903 = vld [vmem:[#allocation7 + $0x1c8] sm:$0xff]
        %v1904 = vld [vmem:[#allocation7 + $0x1d0] sm:$0xff]
        %v1905 = vld [vmem:[#allocation7 + $0x1d8] sm:$0xff]
        %v1906 = vld [vmem:[#allocation7 + $0x1e0] sm:$0xff]
        %v1907 = vld [vmem:[#allocation7 + $0x1e8] sm:$0xff]
        %v1908 = vld [vmem:[#allocation7 + $0x1f0] sm:$0xff]
        %v1909 = vld [vmem:[#allocation7 + $0x1f8] sm:$0xff]
        %v1910 = vld [vmem:[#allocation7 + $0x200] sm:$0xff]
        %v1911 = vld [vmem:[#allocation7 + $0x208] sm:$0xff]
        %v1912 = vld [vmem:[#allocation7 + $0x210] sm:$0xff]
        %v1913 = vld [vmem:[#allocation7 + $0x218] sm:$0xff]
        %v1914 = vld [vmem:[#allocation7 + $0x220] sm:$0xff]
        %v1915 = vld [vmem:[#allocation7 + $0x228] sm:$0xff]
        %v1916 = vld [vmem:[#allocation7 + $0x230] sm:$0xff]
        %v1917 = vld [vmem:[#allocation7 + $0x238] sm:$0xff]
        %v1918 = vld [vmem:[#allocation7 + $0x240] sm:$0xff]
        %v1919 = vld [vmem:[#allocation7 + $0x248] sm:$0xff]
        %v1920 = vld [vmem:[#allocation7 + $0x250] sm:$0xff]
        %v1921 = vld [vmem:[#allocation7 + $0x258] sm:$0xff]
        %v1922 = vld [vmem:[#allocation7 + $0x260] sm:$0xff]
        %v1923 = vld [vmem:[#allocation7 + $0x268] sm:$0xff]
        %v1924 = vld [vmem:[#allocation7 + $0x270] sm:$0xff]
        %v1925 = vld [vmem:[#allocation7 + $0x278] sm:$0xff]
        %v1926 = vld [vmem:[#allocation7 + $0x280] sm:$0xff]
        %v1927 = vld [vmem:[#allocation7 + $0x288] sm:$0xff]
        %v1928 = vld [vmem:[#allocation7 + $0x290] sm:$0xff]
        %v1929 = vld [vmem:[#allocation7 + $0x298] sm:$0xff]
        %v1930 = vld [vmem:[#allocation7 + $0x2a0] sm:$0xff]
        %v1931 = vld [vmem:[#allocation7 + $0x2a8] sm:$0xff]
        %v1932 = vld [vmem:[#allocation7 + $0x2b0] sm:$0xff]
        %v1933 = vld [vmem:[#allocation7 + $0x2b8] sm:$0xff]
        %v1934 = vld [vmem:[#allocation7 + $0x2c0] sm:$0xff]
        %v1935 = vld [vmem:[#allocation7 + $0x2c8] sm:$0xff]
        %v1936 = vld [vmem:[#allocation7 + $0x2d0] sm:$0xff]
        %v1937 = vld [vmem:[#allocation7 + $0x2d8] sm:$0xff]
        %v1938 = vld [vmem:[#allocation7 + $0x2e0] sm:$0xff]
        %v1939 = vld [vmem:[#allocation7 + $0x2e8] sm:$0xff]
        %v1940 = vld [vmem:[#allocation7 + $0x2f0] sm:$0xff]
        %v1941 = vld [vmem:[#allocation7 + $0x2f8] sm:$0xff]
        %v1942 = vld [vmem:[#allocation7 + $0x300] sm:$0xff]
        %v1943 = vld [vmem:[#allocation7 + $0x308] sm:$0xff]
        %v1944 = vld [vmem:[#allocation7 + $0x310] sm:$0xff]
        %v1945 = vld [vmem:[#allocation7 + $0x318] sm:$0xff]
        %v1946 = vld [vmem:[#allocation7 + $0x320] sm:$0xff]
        %v1947 = vld [vmem:[#allocation7 + $0x328] sm:$0xff]
        %v1948 = vld [vmem:[#allocation7 + $0x330] sm:$0xff]
        %v1949 = vld [vmem:[#allocation7 + $0x338] sm:$0xff]
        %v1950 = vld [vmem:[#allocation7 + $0x340] sm:$0xff]
        %v1951 = vld [vmem:[#allocation7 + $0x348] sm:$0xff]
        %v1952 = vld [vmem:[#allocation7 + $0x350] sm:$0xff]
        %v1953 = vld [vmem:[#allocation7 + $0x358] sm:$0xff]
        %v1954 = vld [vmem:[#allocation7 + $0x360] sm:$0xff]
        %v1955 = vld [vmem:[#allocation7 + $0x368] sm:$0xff]
        %v1956 = vld [vmem:[#allocation7 + $0x370] sm:$0xff]
        %v1957 = vld [vmem:[#allocation7 + $0x378] sm:$0xff]
        %v1958 = vld [vmem:[#allocation7 + $0x380] sm:$0xff]
        %v1959 = vld [vmem:[#allocation7 + $0x388] sm:$0xff]
        %v1960 = vld [vmem:[#allocation7 + $0x390] sm:$0xff]
        %v1961 = vld [vmem:[#allocation7 + $0x398] sm:$0xff]
        %v1962 = vld [vmem:[#allocation7 + $0x3a0] sm:$0xff]
        %v1963 = vld [vmem:[#allocation7 + $0x3a8] sm:$0xff]
        %v1964 = vld [vmem:[#allocation7 + $0x3b0] sm:$0xff]
        %v1965 = vld [vmem:[#allocation7 + $0x3b8] sm:$0xff]
        %v1966 = vld [vmem:[#allocation7 + $0x3c0] sm:$0xff]
        %v1967 = vld [vmem:[#allocation7 + $0x3c8] sm:$0xff]
        %v1968 = vld [vmem:[#allocation7 + $0x3d0] sm:$0xff]
        %v1969 = vld [vmem:[#allocation7 + $0x3d8] sm:$0xff]
        %v1970 = vld [vmem:[#allocation7 + $0x3e0] sm:$0xff]
        %v1971 = vld [vmem:[#allocation7 + $0x3e8] sm:$0xff]
        %v1972 = vld [vmem:[#allocation7 + $0x3f0] sm:$0xff]
        %v1973 = vld [vmem:[#allocation7 + $0x3f8] sm:$0xff]
        %v2102 = vunpack.c.l.b16 %v1846
        %v2103 = vunpack.c.h.b16 %v1846
        %v2104 = vunpack.c.l.b16 %v1847
        %v2105 = vunpack.c.h.b16 %v1847
        %v2106 = vunpack.c.l.b16 %v1848
        %v2107 = vunpack.c.h.b16 %v1848
        %v2108 = vunpack.c.l.b16 %v1849
        %v2109 = vunpack.c.h.b16 %v1849
        %v2110 = vunpack.c.l.b16 %v1850
        %v2111 = vunpack.c.h.b16 %v1850
        %v2112 = vunpack.c.l.b16 %v1851
        %v2113 = vunpack.c.h.b16 %v1851
        %v2114 = vunpack.c.l.b16 %v1852
        %v2115 = vunpack.c.h.b16 %v1852
        %v2116 = vunpack.c.l.b16 %v1853
        %v2117 = vunpack.c.h.b16 %v1853
        %v2118 = vunpack.c.l.b16 %v1854
        %v2119 = vunpack.c.h.b16 %v1854
        %v2120 = vunpack.c.l.b16 %v1855
        %v2121 = vunpack.c.h.b16 %v1855
        %v2122 = vunpack.c.l.b16 %v1856
        %v2123 = vunpack.c.h.b16 %v1856
        %v2124 = vunpack.c.l.b16 %v1857
        %v2125 = vunpack.c.h.b16 %v1857
        %v2126 = vunpack.c.l.b16 %v1858
        %v2127 = vunpack.c.h.b16 %v1858
        %v2128 = vunpack.c.l.b16 %v1859
        %v2129 = vunpack.c.h.b16 %v1859
        %v2130 = vunpack.c.l.b16 %v1860
        %v2131 = vunpack.c.h.b16 %v1860
        %v2132 = vunpack.c.l.b16 %v1861
        %v2133 = vunpack.c.h.b16 %v1861
        %v2134 = vunpack.c.l.b16 %v1862
        %v2135 = vunpack.c.h.b16 %v1862
        %v2136 = vunpack.c.l.b16 %v1863
        %v2137 = vunpack.c.h.b16 %v1863
        %v2138 = vunpack.c.l.b16 %v1864
        %v2139 = vunpack.c.h.b16 %v1864
        %v2140 = vunpack.c.l.b16 %v1865
        %v2141 = vunpack.c.h.b16 %v1865
        %v2142 = vunpack.c.l.b16 %v1866
        %v2143 = vunpack.c.h.b16 %v1866
        %v2144 = vunpack.c.l.b16 %v1867
        %v2145 = vunpack.c.h.b16 %v1867
        %v2146 = vunpack.c.l.b16 %v1868
        %v2147 = vunpack.c.h.b16 %v1868
        %v2148 = vunpack.c.l.b16 %v1869
        %v2149 = vunpack.c.h.b16 %v1869
        %v2150 = vunpack.c.l.b16 %v1870
        %v2151 = vunpack.c.h.b16 %v1870
        %v2152 = vunpack.c.l.b16 %v1871
        %v2153 = vunpack.c.h.b16 %v1871
        %v2154 = vunpack.c.l.b16 %v1872
        %v2155 = vunpack.c.h.b16 %v1872
        %v2156 = vunpack.c.l.b16 %v1873
        %v2157 = vunpack.c.h.b16 %v1873
        %v2158 = vunpack.c.l.b16 %v1874
        %v2159 = vunpack.c.h.b16 %v1874
        %v2160 = vunpack.c.l.b16 %v1875
        %v2161 = vunpack.c.h.b16 %v1875
        %v2162 = vunpack.c.l.b16 %v1876
        %v2163 = vunpack.c.h.b16 %v1876
        %v2164 = vunpack.c.l.b16 %v1877
        %v2165 = vunpack.c.h.b16 %v1877
        %v2166 = vunpack.c.l.b16 %v1878
        %v2167 = vunpack.c.h.b16 %v1878
        %v2168 = vunpack.c.l.b16 %v1879
        %v2169 = vunpack.c.h.b16 %v1879
        %v2170 = vunpack.c.l.b16 %v1880
        %v2171 = vunpack.c.h.b16 %v1880
        %v2172 = vunpack.c.l.b16 %v1881
        %v2173 = vunpack.c.h.b16 %v1881
        %v2174 = vunpack.c.l.b16 %v1882
        %v2175 = vunpack.c.h.b16 %v1882
        %v2176 = vunpack.c.l.b16 %v1883
        %v2177 = vunpack.c.h.b16 %v1883
        %v2178 = vunpack.c.l.b16 %v1884
        %v2179 = vunpack.c.h.b16 %v1884
        %v2180 = vunpack.c.l.b16 %v1885
        %v2181 = vunpack.c.h.b16 %v1885
        %v2182 = vunpack.c.l.b16 %v1886
        %v2183 = vunpack.c.h.b16 %v1886
        %v2184 = vunpack.c.l.b16 %v1887
        %v2185 = vunpack.c.h.b16 %v1887
        %v2186 = vunpack.c.l.b16 %v1888
        %v2187 = vunpack.c.h.b16 %v1888
        %v2188 = vunpack.c.l.b16 %v1889
        %v2189 = vunpack.c.h.b16 %v1889
        %v2190 = vunpack.c.l.b16 %v1890
        %v2191 = vunpack.c.h.b16 %v1890
        %v2192 = vunpack.c.l.b16 %v1891
        %v2193 = vunpack.c.h.b16 %v1891
        %v2194 = vunpack.c.l.b16 %v1892
        %v2195 = vunpack.c.h.b16 %v1892
        %v2196 = vunpack.c.l.b16 %v1893
        %v2197 = vunpack.c.h.b16 %v1893
        %v2198 = vunpack.c.l.b16 %v1894
        %v2199 = vunpack.c.h.b16 %v1894
        %v2200 = vunpack.c.l.b16 %v1895
        %v2201 = vunpack.c.h.b16 %v1895
        %v2202 = vunpack.c.l.b16 %v1896
        %v2203 = vunpack.c.h.b16 %v1896
        %v2204 = vunpack.c.l.b16 %v1897
        %v2205 = vunpack.c.h.b16 %v1897
        %v2206 = vunpack.c.l.b16 %v1898
        %v2207 = vunpack.c.h.b16 %v1898
        %v2208 = vunpack.c.l.b16 %v1899
        %v2209 = vunpack.c.h.b16 %v1899
        %v2210 = vunpack.c.l.b16 %v1900
        %v2211 = vunpack.c.h.b16 %v1900
        %v2212 = vunpack.c.l.b16 %v1901
        %v2213 = vunpack.c.h.b16 %v1901
        %v2214 = vunpack.c.l.b16 %v1902
        %v2215 = vunpack.c.h.b16 %v1902
        %v2216 = vunpack.c.l.b16 %v1903
        %v2217 = vunpack.c.h.b16 %v1903
        %v2218 = vunpack.c.l.b16 %v1904
        %v2219 = vunpack.c.h.b16 %v1904
        %v2220 = vunpack.c.l.b16 %v1905
        %v2221 = vunpack.c.h.b16 %v1905
        %v2222 = vunpack.c.l.b16 %v1906
        %v2223 = vunpack.c.h.b16 %v1906
        %v2224 = vunpack.c.l.b16 %v1907
        %v2225 = vunpack.c.h.b16 %v1907
        %v2226 = vunpack.c.l.b16 %v1908
        %v2227 = vunpack.c.h.b16 %v1908
        %v2228 = vunpack.c.l.b16 %v1909
        %v2229 = vunpack.c.h.b16 %v1909
        %v2230 = vunpack.c.l.b16 %v1910
        %v2231 = vunpack.c.h.b16 %v1910
        %v2232 = vunpack.c.l.b16 %v1911
        %v2233 = vunpack.c.h.b16 %v1911
        %v2234 = vunpack.c.l.b16 %v1912
        %v2235 = vunpack.c.h.b16 %v1912
        %v2236 = vunpack.c.l.b16 %v1913
        %v2237 = vunpack.c.h.b16 %v1913
        %v2238 = vunpack.c.l.b16 %v1914
        %v2239 = vunpack.c.h.b16 %v1914
        %v2240 = vunpack.c.l.b16 %v1915
        %v2241 = vunpack.c.h.b16 %v1915
        %v2242 = vunpack.c.l.b16 %v1916
        %v2243 = vunpack.c.h.b16 %v1916
        %v2244 = vunpack.c.l.b16 %v1917
        %v2245 = vunpack.c.h.b16 %v1917
        %v2246 = vunpack.c.l.b16 %v1918
        %v2247 = vunpack.c.h.b16 %v1918
        %v2248 = vunpack.c.l.b16 %v1919
        %v2249 = vunpack.c.h.b16 %v1919
        %v2250 = vunpack.c.l.b16 %v1920
        %v2251 = vunpack.c.h.b16 %v1920
        %v2252 = vunpack.c.l.b16 %v1921
        %v2253 = vunpack.c.h.b16 %v1921
        %v2254 = vunpack.c.l.b16 %v1922
        %v2255 = vunpack.c.h.b16 %v1922
        %v2256 = vunpack.c.l.b16 %v1923
        %v2257 = vunpack.c.h.b16 %v1923
        %v2258 = vunpack.c.l.b16 %v1924
        %v2259 = vunpack.c.h.b16 %v1924
        %v2260 = vunpack.c.l.b16 %v1925
        %v2261 = vunpack.c.h.b16 %v1925
        %v2262 = vunpack.c.l.b16 %v1926
        %v2263 = vunpack.c.h.b16 %v1926
        %v2264 = vunpack.c.l.b16 %v1927
        %v2265 = vunpack.c.h.b16 %v1927
        %v2266 = vunpack.c.l.b16 %v1928
        %v2267 = vunpack.c.h.b16 %v1928
        %v2268 = vunpack.c.l.b16 %v1929
        %v2269 = vunpack.c.h.b16 %v1929
        %v2270 = vunpack.c.l.b16 %v1930
        %v2271 = vunpack.c.h.b16 %v1930
        %v2272 = vunpack.c.l.b16 %v1931
        %v2273 = vunpack.c.h.b16 %v1931
        %v2274 = vunpack.c.l.b16 %v1932
        %v2275 = vunpack.c.h.b16 %v1932
        %v2276 = vunpack.c.l.b16 %v1933
        %v2277 = vunpack.c.h.b16 %v1933
        %v2278 = vunpack.c.l.b16 %v1934
        %v2279 = vunpack.c.h.b16 %v1934
        %v2280 = vunpack.c.l.b16 %v1935
        %v2281 = vunpack.c.h.b16 %v1935
        %v2282 = vunpack.c.l.b16 %v1936
        %v2283 = vunpack.c.h.b16 %v1936
        %v2284 = vunpack.c.l.b16 %v1937
        %v2285 = vunpack.c.h.b16 %v1937
        %v2286 = vunpack.c.l.b16 %v1938
        %v2287 = vunpack.c.h.b16 %v1938
        %v2288 = vunpack.c.l.b16 %v1939
        %v2289 = vunpack.c.h.b16 %v1939
        %v2290 = vunpack.c.l.b16 %v1940
        %v2291 = vunpack.c.h.b16 %v1940
        %v2292 = vunpack.c.l.b16 %v1941
        %v2293 = vunpack.c.h.b16 %v1941
        %v2294 = vunpack.c.l.b16 %v1942
        %v2295 = vunpack.c.h.b16 %v1942
        %v2296 = vunpack.c.l.b16 %v1943
        %v2297 = vunpack.c.h.b16 %v1943
        %v2298 = vunpack.c.l.b16 %v1944
        %v2299 = vunpack.c.h.b16 %v1944
        %v2300 = vunpack.c.l.b16 %v1945
        %v2301 = vunpack.c.h.b16 %v1945
        %v2302 = vunpack.c.l.b16 %v1946
        %v2303 = vunpack.c.h.b16 %v1946
        %v2304 = vunpack.c.l.b16 %v1947
        %v2305 = vunpack.c.h.b16 %v1947
        %v2306 = vunpack.c.l.b16 %v1948
        %v2307 = vunpack.c.h.b16 %v1948
        %v2308 = vunpack.c.l.b16 %v1949
        %v2309 = vunpack.c.h.b16 %v1949
        %v2310 = vunpack.c.l.b16 %v1950
        %v2311 = vunpack.c.h.b16 %v1950
        %v2312 = vunpack.c.l.b16 %v1951
        %v2313 = vunpack.c.h.b16 %v1951
        %v2314 = vunpack.c.l.b16 %v1952
        %v2315 = vunpack.c.h.b16 %v1952
        %v2316 = vunpack.c.l.b16 %v1953
        %v2317 = vunpack.c.h.b16 %v1953
        %v2318 = vunpack.c.l.b16 %v1954
        %v2319 = vunpack.c.h.b16 %v1954
        %v2320 = vunpack.c.l.b16 %v1955
        %v2321 = vunpack.c.h.b16 %v1955
        %v2322 = vunpack.c.l.b16 %v1956
        %v2323 = vunpack.c.h.b16 %v1956
        %v2324 = vunpack.c.l.b16 %v1957
        %v2325 = vunpack.c.h.b16 %v1957
        %v2326 = vunpack.c.l.b16 %v1958
        %v2327 = vunpack.c.h.b16 %v1958
        %v2328 = vunpack.c.l.b16 %v1959
        %v2329 = vunpack.c.h.b16 %v1959
        %v2330 = vunpack.c.l.b16 %v1960
        %v2331 = vunpack.c.h.b16 %v1960
        %v2332 = vunpack.c.l.b16 %v1961
        %v2333 = vunpack.c.h.b16 %v1961
        %v2334 = vunpack.c.l.b16 %v1962
        %v2335 = vunpack.c.h.b16 %v1962
        %v2336 = vunpack.c.l.b16 %v1963
        %v2337 = vunpack.c.h.b16 %v1963
        %v2338 = vunpack.c.l.b16 %v1964
        %v2339 = vunpack.c.h.b16 %v1964
        %v2340 = vunpack.c.l.b16 %v1965
        %v2341 = vunpack.c.h.b16 %v1965
        %v2342 = vunpack.c.l.b16 %v1966
        %v2343 = vunpack.c.h.b16 %v1966
        %v2344 = vunpack.c.l.b16 %v1967
        %v2345 = vunpack.c.h.b16 %v1967
        %v2346 = vunpack.c.l.b16 %v1968
        %v2347 = vunpack.c.h.b16 %v1968
        %v2348 = vunpack.c.l.b16 %v1969
        %v2349 = vunpack.c.h.b16 %v1969
        %v2350 = vunpack.c.l.b16 %v1970
        %v2351 = vunpack.c.h.b16 %v1970
        %v2352 = vunpack.c.l.b16 %v1971
        %v2353 = vunpack.c.h.b16 %v1971
        %v2354 = vunpack.c.l.b16 %v1972
        %v2355 = vunpack.c.h.b16 %v1972
        %v2356 = vunpack.c.l.b16 %v1973
        %v2357 = vunpack.c.h.b16 %v1973
        %v2358 = vpack.c.b16 %v2106, %v2102
        %v2359 = vpack.c.b16 %v2107, %v2103
        %v2360 = vpack.c.b16 %v2108, %v2104
        %v2361 = vpack.c.b16 %v2109, %v2105
        %v2362 = vpack.c.b16 %v2114, %v2110
        %v2363 = vpack.c.b16 %v2115, %v2111
        %v2364 = vpack.c.b16 %v2116, %v2112
        %v2365 = vpack.c.b16 %v2117, %v2113
        %v2366 = vpack.c.b16 %v2122, %v2118
        %v2367 = vpack.c.b16 %v2123, %v2119
        %v2368 = vpack.c.b16 %v2124, %v2120
        %v2369 = vpack.c.b16 %v2125, %v2121
        %v2370 = vpack.c.b16 %v2130, %v2126
        %v2371 = vpack.c.b16 %v2131, %v2127
        %v2372 = vpack.c.b16 %v2132, %v2128
        %v2373 = vpack.c.b16 %v2133, %v2129
        %v2374 = vpack.c.b16 %v2138, %v2134
        %v2375 = vpack.c.b16 %v2139, %v2135
        %v2376 = vpack.c.b16 %v2140, %v2136
        %v2377 = vpack.c.b16 %v2141, %v2137
        %v2378 = vpack.c.b16 %v2146, %v2142
        %v2379 = vpack.c.b16 %v2147, %v2143
        %v2380 = vpack.c.b16 %v2148, %v2144
        %v2381 = vpack.c.b16 %v2149, %v2145
        %v2382 = vpack.c.b16 %v2154, %v2150
        %v2383 = vpack.c.b16 %v2155, %v2151
        %v2384 = vpack.c.b16 %v2156, %v2152
        %v2385 = vpack.c.b16 %v2157, %v2153
        %v2386 = vpack.c.b16 %v2162, %v2158
        %v2387 = vpack.c.b16 %v2163, %v2159
        %v2388 = vpack.c.b16 %v2164, %v2160
        %v2389 = vpack.c.b16 %v2165, %v2161
        %v2390 = vpack.c.b16 %v2170, %v2166
        %v2391 = vpack.c.b16 %v2171, %v2167
        %v2392 = vpack.c.b16 %v2172, %v2168
        %v2393 = vpack.c.b16 %v2173, %v2169
        %v2394 = vpack.c.b16 %v2178, %v2174
        %v2395 = vpack.c.b16 %v2179, %v2175
        %v2396 = vpack.c.b16 %v2180, %v2176
        %v2397 = vpack.c.b16 %v2181, %v2177
        %v2398 = vpack.c.b16 %v2186, %v2182
        %v2399 = vpack.c.b16 %v2187, %v2183
        %v2400 = vpack.c.b16 %v2188, %v2184
        %v2401 = vpack.c.b16 %v2189, %v2185
        %v2402 = vpack.c.b16 %v2194, %v2190
        %v2403 = vpack.c.b16 %v2195, %v2191
        %v2404 = vpack.c.b16 %v2196, %v2192
        %v2405 = vpack.c.b16 %v2197, %v2193
        %v2406 = vpack.c.b16 %v2202, %v2198
        %v2407 = vpack.c.b16 %v2203, %v2199
        %v2408 = vpack.c.b16 %v2204, %v2200
        %v2409 = vpack.c.b16 %v2205, %v2201
        %v2410 = vpack.c.b16 %v2210, %v2206
        %v2411 = vpack.c.b16 %v2211, %v2207
        %v2412 = vpack.c.b16 %v2212, %v2208
        %v2413 = vpack.c.b16 %v2213, %v2209
        %v2414 = vpack.c.b16 %v2218, %v2214
        %v2415 = vpack.c.b16 %v2219, %v2215
        %v2416 = vpack.c.b16 %v2220, %v2216
        %v2417 = vpack.c.b16 %v2221, %v2217
        %v2418 = vpack.c.b16 %v2226, %v2222
        %v2419 = vpack.c.b16 %v2227, %v2223
        %v2420 = vpack.c.b16 %v2228, %v2224
        %v2421 = vpack.c.b16 %v2229, %v2225
        %v2422 = vpack.c.b16 %v2234, %v2230
        %v2423 = vpack.c.b16 %v2235, %v2231
        %v2424 = vpack.c.b16 %v2236, %v2232
        %v2425 = vpack.c.b16 %v2237, %v2233
        %v2426 = vpack.c.b16 %v2242, %v2238
        %v2427 = vpack.c.b16 %v2243, %v2239
        %v2428 = vpack.c.b16 %v2244, %v2240
        %v2429 = vpack.c.b16 %v2245, %v2241
        %v2430 = vpack.c.b16 %v2250, %v2246
        %v2431 = vpack.c.b16 %v2251, %v2247
        %v2432 = vpack.c.b16 %v2252, %v2248
        %v2433 = vpack.c.b16 %v2253, %v2249
        %v2434 = vpack.c.b16 %v2258, %v2254
        %v2435 = vpack.c.b16 %v2259, %v2255
        %v2436 = vpack.c.b16 %v2260, %v2256
        %v2437 = vpack.c.b16 %v2261, %v2257
        %v2438 = vpack.c.b16 %v2266, %v2262
        %v2439 = vpack.c.b16 %v2267, %v2263
        %v2440 = vpack.c.b16 %v2268, %v2264
        %v2441 = vpack.c.b16 %v2269, %v2265
        %v2442 = vpack.c.b16 %v2274, %v2270
        %v2443 = vpack.c.b16 %v2275, %v2271
        %v2444 = vpack.c.b16 %v2276, %v2272
        %v2445 = vpack.c.b16 %v2277, %v2273
        %v2446 = vpack.c.b16 %v2282, %v2278
        %v2447 = vpack.c.b16 %v2283, %v2279
        %v2448 = vpack.c.b16 %v2284, %v2280
        %v2449 = vpack.c.b16 %v2285, %v2281
        %v2450 = vpack.c.b16 %v2290, %v2286
        %v2451 = vpack.c.b16 %v2291, %v2287
        %v2452 = vpack.c.b16 %v2292, %v2288
        %v2453 = vpack.c.b16 %v2293, %v2289
        %v2454 = vpack.c.b16 %v2298, %v2294
        %v2455 = vpack.c.b16 %v2299, %v2295
        %v2456 = vpack.c.b16 %v2300, %v2296
        %v2457 = vpack.c.b16 %v2301, %v2297
        %v2458 = vpack.c.b16 %v2306, %v2302
        %v2459 = vpack.c.b16 %v2307, %v2303
        %v2460 = vpack.c.b16 %v2308, %v2304
        %v2461 = vpack.c.b16 %v2309, %v2305
        %v2462 = vpack.c.b16 %v2314, %v2310
        %v2463 = vpack.c.b16 %v2315, %v2311
        %v2464 = vpack.c.b16 %v2316, %v2312
        %v2465 = vpack.c.b16 %v2317, %v2313
        %v2466 = vpack.c.b16 %v2322, %v2318
        %v2467 = vpack.c.b16 %v2323, %v2319
        %v2468 = vpack.c.b16 %v2324, %v2320
        %v2469 = vpack.c.b16 %v2325, %v2321
        %v2470 = vpack.c.b16 %v2330, %v2326
        %v2471 = vpack.c.b16 %v2331, %v2327
        %v2472 = vpack.c.b16 %v2332, %v2328
        %v2473 = vpack.c.b16 %v2333, %v2329
        %v2474 = vpack.c.b16 %v2338, %v2334
        %v2475 = vpack.c.b16 %v2339, %v2335
        %v2476 = vpack.c.b16 %v2340, %v2336
        %v2477 = vpack.c.b16 %v2341, %v2337
        %v2478 = vpack.c.b16 %v2346, %v2342
        %v2479 = vpack.c.b16 %v2347, %v2343
        %v2480 = vpack.c.b16 %v2348, %v2344
        %v2481 = vpack.c.b16 %v2349, %v2345
        %v2482 = vpack.c.b16 %v2354, %v2350
        %v2483 = vpack.c.b16 %v2355, %v2351
        %v2484 = vpack.c.b16 %v2356, %v2352
        %v2485 = vpack.c.b16 %v2357, %v2353
        %2614 = vmatprep.subr.bf16.mxu0 %v1783
        %2615 = vmatpush1.bf16.msra.mxu0 %v1782
        %2616 = vmatprep.subr.bf16.mxu0 %v1785
        %2617 = vmatpush1.bf16.msra.mxu0 %v1784
        %2618 = vmatprep.subr.bf16.mxu0 %v1787
        %2619 = vmatpush1.bf16.msra.mxu0 %v1786
        %2620 = vmatprep.subr.bf16.mxu0 %v1789
        %2621 = vmatpush1.bf16.msra.mxu0 %v1788
        %2622 = vmatprep.subr.bf16.mxu0 %v1791
        %2623 = vmatpush1.bf16.msra.mxu0 %v1790
        %2624 = vmatprep.subr.bf16.mxu0 %v1793
        %2625 = vmatpush1.bf16.msra.mxu0 %v1792
        %2626 = vmatprep.subr.bf16.mxu0 %v1795
        %2627 = vmatpush1.bf16.msra.mxu0 %v1794
        %2628 = vmatprep.subr.bf16.mxu0 %v1797
        %2629 = vmatpush1.bf16.msra.mxu0 %v1796
        %2630 = vmatprep.subr.bf16.mxu0 %v1799
        %2631 = vmatpush1.bf16.msra.mxu0 %v1798
        %2632 = vmatprep.subr.bf16.mxu0 %v1801
        %2633 = vmatpush1.bf16.msra.mxu0 %v1800
        %2634 = vmatprep.subr.bf16.mxu0 %v1803
        %2635 = vmatpush1.bf16.msra.mxu0 %v1802
        %2636 = vmatprep.subr.bf16.mxu0 %v1805
        %2637 = vmatpush1.bf16.msra.mxu0 %v1804
        %2638 = vmatprep.subr.bf16.mxu0 %v1807
        %2639 = vmatpush1.bf16.msra.mxu0 %v1806
        %2640 = vmatprep.subr.bf16.mxu0 %v1809
        %2641 = vmatpush1.bf16.msra.mxu0 %v1808
        %2642 = vmatprep.subr.bf16.mxu0 %v1811
        %2643 = vmatpush1.bf16.msra.mxu0 %v1810
        %2644 = vmatprep.subr.bf16.mxu0 %v1813
        %2645 = vmatpush1.bf16.msra.mxu0 %v1812
        %2646 = vmatprep.mubr.bf16.mxu0 %v2359
        %2647 = vmatmul.mubr.bf16.gmra.mrb[0].mxu0 %v2358
        %v2648 = vpop.f32.mrb[0].mxu0
        %v2649 = vadd.f32 0.0, %v2648
        %v2650 = vpop.f32.mrb[0].mxu0
        %v2651 = vadd.f32 0.0, %v2650
        %v2652 = vpop.f32.mrb[0].mxu0
        %v2653 = vadd.f32 0.0, %v2652
        %v2654 = vpop.f32.mrb[0].mxu0
        %v2655 = vadd.f32 0.0, %v2654
        %2656 = vmatprep.mubr.bf16.mxu0 %v2363
        %2657 = vmatmul.mubr.bf16.gmra.mrb[0].mxu0 %v2362
        %v2658 = vpop.f32.mrb[0].mxu0
        %v2659 = vadd.f32 0.0, %v2658
        %v2660 = vpop.f32.mrb[0].mxu0
        %v2661 = vadd.f32 0.0, %v2660
        %v2662 = vpop.f32.mrb[0].mxu0
        %v2663 = vadd.f32 0.0, %v2662
        %v2664 = vpop.f32.mrb[0].mxu0
        %v2665 = vadd.f32 0.0, %v2664
        %2666 = vmatprep.mubr.bf16.mxu0 %v2367
        %2667 = vmatmul.mubr.bf16.gmra.mrb[0].mxu0 %v2366
        %v2668 = vpop.f32.mrb[0].mxu0
        %v2669 = vadd.f32 0.0, %v2668
        %v2670 = vpop.f32.mrb[0].mxu0
        %v2671 = vadd.f32 0.0, %v2670
        %v2672 = vpop.f32.mrb[0].mxu0
        %v2673 = vadd.f32 0.0, %v2672
        %v2674 = vpop.f32.mrb[0].mxu0
        %v2675 = vadd.f32 0.0, %v2674
        %2676 = vmatprep.mubr.bf16.mxu0 %v2371
        %2677 = vmatmul.mubr.bf16.gmra.mrb[0].mxu0 %v2370
        %v2678 = vpop.f32.mrb[0].mxu0
        %v2679 = vadd.f32 0.0, %v2678
        %v2680 = vpop.f32.mrb[0].mxu0
        %v2681 = vadd.f32 0.0, %v2680
        %v2682 = vpop.f32.mrb[0].mxu0
        %v2683 = vadd.f32 0.0, %v2682
        %v2684 = vpop.f32.mrb[0].mxu0
        %v2685 = vadd.f32 0.0, %v2684
        %2686 = vmatprep.mubr.bf16.mxu0 %v2375
        %2687 = vmatmul.mubr.bf16.gmra.mrb[0].mxu0 %v2374
        %v2688 = vpop.f32.mrb[0].mxu0
        %v2689 = vadd.f32 0.0, %v2688
        %v2690 = vpop.f32.mrb[0].mxu0
        %v2691 = vadd.f32 0.0, %v2690
        %v2692 = vpop.f32.mrb[0].mxu0
        %v2693 = vadd.f32 0.0, %v2692
        %v2694 = vpop.f32.mrb[0].mxu0
        %v2695 = vadd.f32 0.0, %v2694
        %2696 = vmatprep.mubr.bf16.mxu0 %v2379
        %2697 = vmatmul.mubr.bf16.gmra.mrb[0].mxu0 %v2378
        %v2698 = vpop.f32.mrb[0].mxu0
        %v2699 = vadd.f32 0.0, %v2698
        %v2700 = vpop.f32.mrb[0].mxu0
        %v2701 = vadd.f32 0.0, %v2700
        %v2702 = vpop.f32.mrb[0].mxu0
        %v2703 = vadd.f32 0.0, %v2702
        %v2704 = vpop.f32.mrb[0].mxu0
        %v2705 = vadd.f32 0.0, %v2704
        %2706 = vmatprep.mubr.bf16.mxu0 %v2383
        %2707 = vmatmul.mubr.bf16.gmra.mrb[0].mxu0 %v2382
        %v2708 = vpop.f32.mrb[0].mxu0
        %v2709 = vadd.f32 0.0, %v2708
        %v2710 = vpop.f32.mrb[0].mxu0
        %v2711 = vadd.f32 0.0, %v2710
        %v2712 = vpop.f32.mrb[0].mxu0
        %v2713 = vadd.f32 0.0, %v2712
        %v2714 = vpop.f32.mrb[0].mxu0
        %v2715 = vadd.f32 0.0, %v2714
        %2716 = vmatprep.mubr.bf16.mxu0 %v2387
        %2717 = vmatmul.mubr.bf16.gmra.mrb[0].mxu0 %v2386
        %v2718 = vpop.f32.mrb[0].mxu0
        %v2719 = vadd.f32 0.0, %v2718
        %v2720 = vpop.f32.mrb[0].mxu0
        %v2721 = vadd.f32 0.0, %v2720
        %v2722 = vpop.f32.mrb[0].mxu0
        %v2723 = vadd.f32 0.0, %v2722
        %v2724 = vpop.f32.mrb[0].mxu0
        %v2725 = vadd.f32 0.0, %v2724
        %2726 = vmatprep.mubr.bf16.mxu0 %v2391
        %2727 = vmatmul.mubr.bf16.gmra.mrb[0].mxu0 %v2390
        %v2728 = vpop.f32.mrb[0].mxu0
        %v2729 = vadd.f32 0.0, %v2728
        %v2730 = vpop.f32.mrb[0].mxu0
        %v2731 = vadd.f32 0.0, %v2730
        %v2732 = vpop.f32.mrb[0].mxu0
        %v2733 = vadd.f32 0.0, %v2732
        %v2734 = vpop.f32.mrb[0].mxu0
        %v2735 = vadd.f32 0.0, %v2734
        %2736 = vmatprep.mubr.bf16.mxu0 %v2395
        %2737 = vmatmul.mubr.bf16.gmra.mrb[0].mxu0 %v2394
        %v2738 = vpop.f32.mrb[0].mxu0
        %v2739 = vadd.f32 0.0, %v2738
        %v2740 = vpop.f32.mrb[0].mxu0
        %v2741 = vadd.f32 0.0, %v2740
        %v2742 = vpop.f32.mrb[0].mxu0
        %v2743 = vadd.f32 0.0, %v2742
        %v2744 = vpop.f32.mrb[0].mxu0
        %v2745 = vadd.f32 0.0, %v2744
        %2746 = vmatprep.mubr.bf16.mxu0 %v2399
        %2747 = vmatmul.mubr.bf16.gmra.mrb[0].mxu0 %v2398
        %v2748 = vpop.f32.mrb[0].mxu0
        %v2749 = vadd.f32 0.0, %v2748
        %v2750 = vpop.f32.mrb[0].mxu0
        %v2751 = vadd.f32 0.0, %v2750
        %v2752 = vpop.f32.mrb[0].mxu0
        %v2753 = vadd.f32 0.0, %v2752
        %v2754 = vpop.f32.mrb[0].mxu0
        %v2755 = vadd.f32 0.0, %v2754
        %2756 = vmatprep.mubr.bf16.mxu0 %v2403
        %2757 = vmatmul.mubr.bf16.gmra.mrb[0].mxu0 %v2402
        %v2758 = vpop.f32.mrb[0].mxu0
        %v2759 = vadd.f32 0.0, %v2758
        %v2760 = vpop.f32.mrb[0].mxu0
        %v2761 = vadd.f32 0.0, %v2760
        %v2762 = vpop.f32.mrb[0].mxu0
        %v2763 = vadd.f32 0.0, %v2762
        %v2764 = vpop.f32.mrb[0].mxu0
        %v2765 = vadd.f32 0.0, %v2764
        %2766 = vmatprep.mubr.bf16.mxu0 %v2407
        %2767 = vmatmul.mubr.bf16.gmra.mrb[0].mxu0 %v2406
        %v2768 = vpop.f32.mrb[0].mxu0
        %v2769 = vadd.f32 0.0, %v2768
        %v2770 = vpop.f32.mrb[0].mxu0
        %v2771 = vadd.f32 0.0, %v2770
        %v2772 = vpop.f32.mrb[0].mxu0
        %v2773 = vadd.f32 0.0, %v2772
        %v2774 = vpop.f32.mrb[0].mxu0
        %v2775 = vadd.f32 0.0, %v2774
        %2776 = vmatprep.mubr.bf16.mxu0 %v2411
        %2777 = vmatmul.mubr.bf16.gmra.mrb[0].mxu0 %v2410
        %v2778 = vpop.f32.mrb[0].mxu0
        %v2779 = vadd.f32 0.0, %v2778
        %v2780 = vpop.f32.mrb[0].mxu0
        %v2781 = vadd.f32 0.0, %v2780
        %v2782 = vpop.f32.mrb[0].mxu0
        %v2783 = vadd.f32 0.0, %v2782
        %v2784 = vpop.f32.mrb[0].mxu0
        %v2785 = vadd.f32 0.0, %v2784
        %2786 = vmatprep.mubr.bf16.mxu0 %v2415
        %2787 = vmatmul.mubr.bf16.gmra.mrb[0].mxu0 %v2414
        %v2788 = vpop.f32.mrb[0].mxu0
        %v2789 = vadd.f32 0.0, %v2788
        %v2790 = vpop.f32.mrb[0].mxu0
        %v2791 = vadd.f32 0.0, %v2790
        %v2792 = vpop.f32.mrb[0].mxu0
        %v2793 = vadd.f32 0.0, %v2792
        %v2794 = vpop.f32.mrb[0].mxu0
        %v2795 = vadd.f32 0.0, %v2794
        %2796 = vmatprep.mubr.bf16.mxu0 %v2419
        %2797 = vmatmul.mubr.bf16.gmra.mrb[0].mxu0 %v2418
        %v2798 = vpop.f32.mrb[0].mxu0
        %v2799 = vadd.f32 0.0, %v2798
        %v2800 = vpop.f32.mrb[0].mxu0
        %v2801 = vadd.f32 0.0, %v2800
        %v2802 = vpop.f32.mrb[0].mxu0
        %v2803 = vadd.f32 0.0, %v2802
        %v2804 = vpop.f32.mrb[0].mxu0
        %v2805 = vadd.f32 0.0, %v2804
        %2806 = vmatprep.mubr.bf16.mxu0 %v2423
        %2807 = vmatmul.mubr.bf16.gmra.mrb[0].mxu0 %v2422
        %v2808 = vpop.f32.mrb[0].mxu0
        %v2809 = vadd.f32 0.0, %v2808
        %v2810 = vpop.f32.mrb[0].mxu0
        %v2811 = vadd.f32 0.0, %v2810
        %v2812 = vpop.f32.mrb[0].mxu0
        %v2813 = vadd.f32 0.0, %v2812
        %v2814 = vpop.f32.mrb[0].mxu0
        %v2815 = vadd.f32 0.0, %v2814
        %2816 = vmatprep.mubr.bf16.mxu0 %v2427
        %2817 = vmatmul.mubr.bf16.gmra.mrb[0].mxu0 %v2426
        %v2818 = vpop.f32.mrb[0].mxu0
        %v2819 = vadd.f32 0.0, %v2818
        %v2820 = vpop.f32.mrb[0].mxu0
        %v2821 = vadd.f32 0.0, %v2820
        %v2822 = vpop.f32.mrb[0].mxu0
        %v2823 = vadd.f32 0.0, %v2822
        %v2824 = vpop.f32.mrb[0].mxu0
        %v2825 = vadd.f32 0.0, %v2824
        %2826 = vmatprep.mubr.bf16.mxu0 %v2431
        %2827 = vmatmul.mubr.bf16.gmra.mrb[0].mxu0 %v2430
        %v2828 = vpop.f32.mrb[0].mxu0
        %v2829 = vadd.f32 0.0, %v2828
        %v2830 = vpop.f32.mrb[0].mxu0
        %v2831 = vadd.f32 0.0, %v2830
        %v2832 = vpop.f32.mrb[0].mxu0
        %v2833 = vadd.f32 0.0, %v2832
        %v2834 = vpop.f32.mrb[0].mxu0
        %v2835 = vadd.f32 0.0, %v2834
        %2836 = vmatprep.mubr.bf16.mxu0 %v2435
        %2837 = vmatmul.mubr.bf16.gmra.mrb[0].mxu0 %v2434
        %v2838 = vpop.f32.mrb[0].mxu0
        %v2839 = vadd.f32 0.0, %v2838
        %v2840 = vpop.f32.mrb[0].mxu0
        %v2841 = vadd.f32 0.0, %v2840
        %v2842 = vpop.f32.mrb[0].mxu0
        %v2843 = vadd.f32 0.0, %v2842
        %v2844 = vpop.f32.mrb[0].mxu0
        %v2845 = vadd.f32 0.0, %v2844
        %2846 = vmatprep.mubr.bf16.mxu0 %v2439
        %2847 = vmatmul.mubr.bf16.gmra.mrb[0].mxu0 %v2438
        %v2848 = vpop.f32.mrb[0].mxu0
        %v2849 = vadd.f32 0.0, %v2848
        %v2850 = vpop.f32.mrb[0].mxu0
        %v2851 = vadd.f32 0.0, %v2850
        %v2852 = vpop.f32.mrb[0].mxu0
        %v2853 = vadd.f32 0.0, %v2852
        %v2854 = vpop.f32.mrb[0].mxu0
        %v2855 = vadd.f32 0.0, %v2854
        %2856 = vmatprep.mubr.bf16.mxu0 %v2443
        %2857 = vmatmul.mubr.bf16.gmra.mrb[0].mxu0 %v2442
        %v2858 = vpop.f32.mrb[0].mxu0
        %v2859 = vadd.f32 0.0, %v2858
        %v2860 = vpop.f32.mrb[0].mxu0
        %v2861 = vadd.f32 0.0, %v2860
        %v2862 = vpop.f32.mrb[0].mxu0
        %v2863 = vadd.f32 0.0, %v2862
        %v2864 = vpop.f32.mrb[0].mxu0
        %v2865 = vadd.f32 0.0, %v2864
        %2866 = vmatprep.mubr.bf16.mxu0 %v2447
        %2867 = vmatmul.mubr.bf16.gmra.mrb[0].mxu0 %v2446
        %v2868 = vpop.f32.mrb[0].mxu0
        %v2869 = vadd.f32 0.0, %v2868
        %v2870 = vpop.f32.mrb[0].mxu0
        %v2871 = vadd.f32 0.0, %v2870
        %v2872 = vpop.f32.mrb[0].mxu0
        %v2873 = vadd.f32 0.0, %v2872
        %v2874 = vpop.f32.mrb[0].mxu0
        %v2875 = vadd.f32 0.0, %v2874
        %2876 = vmatprep.mubr.bf16.mxu0 %v2451
        %2877 = vmatmul.mubr.bf16.gmra.mrb[0].mxu0 %v2450
        %v2878 = vpop.f32.mrb[0].mxu0
        %v2879 = vadd.f32 0.0, %v2878
        %v2880 = vpop.f32.mrb[0].mxu0
        %v2881 = vadd.f32 0.0, %v2880
        %v2882 = vpop.f32.mrb[0].mxu0
        %v2883 = vadd.f32 0.0, %v2882
        %v2884 = vpop.f32.mrb[0].mxu0
        %v2885 = vadd.f32 0.0, %v2884
        %2886 = vmatprep.mubr.bf16.mxu0 %v2455
        %2887 = vmatmul.mubr.bf16.gmra.mrb[0].mxu0 %v2454
        %v2888 = vpop.f32.mrb[0].mxu0
        %v2889 = vadd.f32 0.0, %v2888
        %v2890 = vpop.f32.mrb[0].mxu0
        %v2891 = vadd.f32 0.0, %v2890
        %v2892 = vpop.f32.mrb[0].mxu0
        %v2893 = vadd.f32 0.0, %v2892
        %v2894 = vpop.f32.mrb[0].mxu0
        %v2895 = vadd.f32 0.0, %v2894
        %2896 = vmatprep.mubr.bf16.mxu0 %v2459
        %2897 = vmatmul.mubr.bf16.gmra.mrb[0].mxu0 %v2458
        %v2898 = vpop.f32.mrb[0].mxu0
        %v2899 = vadd.f32 0.0, %v2898
        %v2900 = vpop.f32.mrb[0].mxu0
        %v2901 = vadd.f32 0.0, %v2900
        %v2902 = vpop.f32.mrb[0].mxu0
        %v2903 = vadd.f32 0.0, %v2902
        %v2904 = vpop.f32.mrb[0].mxu0
        %v2905 = vadd.f32 0.0, %v2904
        %2906 = vmatprep.mubr.bf16.mxu0 %v2463
        %2907 = vmatmul.mubr.bf16.gmra.mrb[0].mxu0 %v2462
        %v2908 = vpop.f32.mrb[0].mxu0
        %v2909 = vadd.f32 0.0, %v2908
        %v2910 = vpop.f32.mrb[0].mxu0
        %v2911 = vadd.f32 0.0, %v2910
        %v2912 = vpop.f32.mrb[0].mxu0
        %v2913 = vadd.f32 0.0, %v2912
        %v2914 = vpop.f32.mrb[0].mxu0
        %v2915 = vadd.f32 0.0, %v2914
        %2916 = vmatprep.mubr.bf16.mxu0 %v2467
        %2917 = vmatmul.mubr.bf16.gmra.mrb[0].mxu0 %v2466
        %v2918 = vpop.f32.mrb[0].mxu0
        %v2919 = vadd.f32 0.0, %v2918
        %v2920 = vpop.f32.mrb[0].mxu0
        %v2921 = vadd.f32 0.0, %v2920
        %v2922 = vpop.f32.mrb[0].mxu0
        %v2923 = vadd.f32 0.0, %v2922
        %v2924 = vpop.f32.mrb[0].mxu0
        %v2925 = vadd.f32 0.0, %v2924
        %2926 = vmatprep.mubr.bf16.mxu0 %v2471
        %2927 = vmatmul.mubr.bf16.gmra.mrb[0].mxu0 %v2470
        %v2928 = vpop.f32.mrb[0].mxu0
        %v2929 = vadd.f32 0.0, %v2928
        %v2930 = vpop.f32.mrb[0].mxu0
        %v2931 = vadd.f32 0.0, %v2930
        %v2932 = vpop.f32.mrb[0].mxu0
        %v2933 = vadd.f32 0.0, %v2932
        %v2934 = vpop.f32.mrb[0].mxu0
        %v2935 = vadd.f32 0.0, %v2934
        %2936 = vmatprep.mubr.bf16.mxu0 %v2475
        %2937 = vmatmul.mubr.bf16.gmra.mrb[0].mxu0 %v2474
        %v2938 = vpop.f32.mrb[0].mxu0
        %v2939 = vadd.f32 0.0, %v2938
        %v2940 = vpop.f32.mrb[0].mxu0
        %v2941 = vadd.f32 0.0, %v2940
        %v2942 = vpop.f32.mrb[0].mxu0
        %v2943 = vadd.f32 0.0, %v2942
        %v2944 = vpop.f32.mrb[0].mxu0
        %v2945 = vadd.f32 0.0, %v2944
        %2946 = vmatprep.mubr.bf16.mxu0 %v2479
        %2947 = vmatmul.mubr.bf16.gmra.mrb[0].mxu0 %v2478
        %v2948 = vpop.f32.mrb[0].mxu0
        %v2949 = vadd.f32 0.0, %v2948
        %v2950 = vpop.f32.mrb[0].mxu0
        %v2951 = vadd.f32 0.0, %v2950
        %v2952 = vpop.f32.mrb[0].mxu0
        %v2953 = vadd.f32 0.0, %v2952
        %v2954 = vpop.f32.mrb[0].mxu0
        %v2955 = vadd.f32 0.0, %v2954
        %2956 = vmatprep.mubr.bf16.mxu0 %v2483
        %2957 = vmatmul.mubr.bf16.gmra.mrb[0].mxu0 %v2482
        %v2958 = vpop.f32.mrb[0].mxu0
        %v2959 = vadd.f32 0.0, %v2958
        %v2960 = vpop.f32.mrb[0].mxu0
        %v2961 = vadd.f32 0.0, %v2960
        %v2962 = vpop.f32.mrb[0].mxu0
        %v2963 = vadd.f32 0.0, %v2962
        %v2964 = vpop.f32.mrb[0].mxu0
        %v2965 = vadd.f32 0.0, %v2964
        %2966 = vdwg.mxu0
        %2967 = vmatprep.subr.bf16.mxu0 %v1815
        %2968 = vmatpush1.bf16.msra.mxu0 %v1814
        %2969 = vmatprep.subr.bf16.mxu0 %v1817
        %2970 = vmatpush1.bf16.msra.mxu0 %v1816
        %2971 = vmatprep.subr.bf16.mxu0 %v1819
        %2972 = vmatpush1.bf16.msra.mxu0 %v1818
        %2973 = vmatprep.subr.bf16.mxu0 %v1821
        %2974 = vmatpush1.bf16.msra.mxu0 %v1820
        %2975 = vmatprep.subr.bf16.mxu0 %v1823
        %2976 = vmatpush1.bf16.msra.mxu0 %v1822
        %2977 = vmatprep.subr.bf16.mxu0 %v1825
        %2978 = vmatpush1.bf16.msra.mxu0 %v1824
        %2979 = vmatprep.subr.bf16.mxu0 %v1827
        %2980 = vmatpush1.bf16.msra.mxu0 %v1826
        %2981 = vmatprep.subr.bf16.mxu0 %v1829
        %2982 = vmatpush1.bf16.msra.mxu0 %v1828
        %2983 = vmatprep.subr.bf16.mxu0 %v1831
        %2984 = vmatpush1.bf16.msra.mxu0 %v1830
        %2985 = vmatprep.subr.bf16.mxu0 %v1833
        %2986 = vmatpush1.bf16.msra.mxu0 %v1832
        %2987 = vmatprep.subr.bf16.mxu0 %v1835
        %2988 = vmatpush1.bf16.msra.mxu0 %v1834
        %2989 = vmatprep.subr.bf16.mxu0 %v1837
        %2990 = vmatpush1.bf16.msra.mxu0 %v1836
        %2991 = vmatprep.subr.bf16.mxu0 %v1839
        %2992 = vmatpush1.bf16.msra.mxu0 %v1838
        %2993 = vmatprep.subr.bf16.mxu0 %v1841
        %2994 = vmatpush1.bf16.msra.mxu0 %v1840
        %2995 = vmatprep.subr.bf16.mxu0 %v1843
        %2996 = vmatpush1.bf16.msra.mxu0 %v1842
        %2997 = vmatprep.subr.bf16.mxu0 %v1845
        %2998 = vmatpush1.bf16.msra.mxu0 %v1844
        %2999 = vmatprep.mubr.bf16.mxu0 %v2361
        %3000 = vmatmul.mubr.bf16.gmra.mrb[0].mxu0 %v2360
        %v3001 = vpop.f32.mrb[0].mxu0
        %v3002 = vadd.f32 %v2649, %v3001
        %v3003 = vpop.f32.mrb[0].mxu0
        %v3004 = vadd.f32 %v2651, %v3003
        %v3005 = vpop.f32.mrb[0].mxu0
        %v3006 = vadd.f32 %v2653, %v3005
        %v3007 = vpop.f32.mrb[0].mxu0
        %v3008 = vadd.f32 %v2655, %v3007
        %3009 = vmatprep.mubr.bf16.mxu0 %v2365
        %3010 = vmatmul.mubr.bf16.gmra.mrb[0].mxu0 %v2364
        %v3011 = vpop.f32.mrb[0].mxu0
        %v3012 = vadd.f32 %v2659, %v3011
        %v3013 = vpop.f32.mrb[0].mxu0
        %v3014 = vadd.f32 %v2661, %v3013
        %v3015 = vpop.f32.mrb[0].mxu0
        %v3016 = vadd.f32 %v2663, %v3015
        %v3017 = vpop.f32.mrb[0].mxu0
        %v3018 = vadd.f32 %v2665, %v3017
        %3019 = vmatprep.mubr.bf16.mxu0 %v2369
        %3020 = vmatmul.mubr.bf16.gmra.mrb[0].mxu0 %v2368
        %v3021 = vpop.f32.mrb[0].mxu0
        %v3022 = vadd.f32 %v2669, %v3021
        %v3023 = vpop.f32.mrb[0].mxu0
        %v3024 = vadd.f32 %v2671, %v3023
        %v3025 = vpop.f32.mrb[0].mxu0
        %v3026 = vadd.f32 %v2673, %v3025
        %v3027 = vpop.f32.mrb[0].mxu0
        %v3028 = vadd.f32 %v2675, %v3027
        %3029 = vmatprep.mubr.bf16.mxu0 %v2373
        %3030 = vmatmul.mubr.bf16.gmra.mrb[0].mxu0 %v2372
        %v3031 = vpop.f32.mrb[0].mxu0
        %v3032 = vadd.f32 %v2679, %v3031
        %v3033 = vpop.f32.mrb[0].mxu0
        %v3034 = vadd.f32 %v2681, %v3033
        %v3035 = vpop.f32.mrb[0].mxu0
        %v3036 = vadd.f32 %v2683, %v3035
        %v3037 = vpop.f32.mrb[0].mxu0
        %v3038 = vadd.f32 %v2685, %v3037
        %3039 = vmatprep.mubr.bf16.mxu0 %v2377
        %3040 = vmatmul.mubr.bf16.gmra.mrb[0].mxu0 %v2376
        %v3041 = vpop.f32.mrb[0].mxu0
        %v3042 = vadd.f32 %v2689, %v3041
        %v3043 = vpop.f32.mrb[0].mxu0
        %v3044 = vadd.f32 %v2691, %v3043
        %v3045 = vpop.f32.mrb[0].mxu0
        %v3046 = vadd.f32 %v2693, %v3045
        %v3047 = vpop.f32.mrb[0].mxu0
        %v3048 = vadd.f32 %v2695, %v3047
        %3049 = vmatprep.mubr.bf16.mxu0 %v2381
        %3050 = vmatmul.mubr.bf16.gmra.mrb[0].mxu0 %v2380
        %v3051 = vpop.f32.mrb[0].mxu0
        %v3052 = vadd.f32 %v2699, %v3051
        %v3053 = vpop.f32.mrb[0].mxu0
        %v3054 = vadd.f32 %v2701, %v3053
        %v3055 = vpop.f32.mrb[0].mxu0
        %v3056 = vadd.f32 %v2703, %v3055
        %v3057 = vpop.f32.mrb[0].mxu0
        %v3058 = vadd.f32 %v2705, %v3057
        %3059 = vmatprep.mubr.bf16.mxu0 %v2385
        %3060 = vmatmul.mubr.bf16.gmra.mrb[0].mxu0 %v2384
        %v3061 = vpop.f32.mrb[0].mxu0
        %v3062 = vadd.f32 %v2709, %v3061
        %v3063 = vpop.f32.mrb[0].mxu0
        %v3064 = vadd.f32 %v2711, %v3063
        %v3065 = vpop.f32.mrb[0].mxu0
        %v3066 = vadd.f32 %v2713, %v3065
        %v3067 = vpop.f32.mrb[0].mxu0
        %v3068 = vadd.f32 %v2715, %v3067
        %3069 = vmatprep.mubr.bf16.mxu0 %v2389
        %3070 = vmatmul.mubr.bf16.gmra.mrb[0].mxu0 %v2388
        %v3071 = vpop.f32.mrb[0].mxu0
        %v3072 = vadd.f32 %v2719, %v3071
        %v3073 = vpop.f32.mrb[0].mxu0
        %v3074 = vadd.f32 %v2721, %v3073
        %v3075 = vpop.f32.mrb[0].mxu0
        %v3076 = vadd.f32 %v2723, %v3075
        %v3077 = vpop.f32.mrb[0].mxu0
        %v3078 = vadd.f32 %v2725, %v3077
        %3079 = vmatprep.mubr.bf16.mxu0 %v2393
        %3080 = vmatmul.mubr.bf16.gmra.mrb[0].mxu0 %v2392
        %v3081 = vpop.f32.mrb[0].mxu0
        %v3082 = vadd.f32 %v2729, %v3081
        %v3083 = vpop.f32.mrb[0].mxu0
        %v3084 = vadd.f32 %v2731, %v3083
        %v3085 = vpop.f32.mrb[0].mxu0
        %v3086 = vadd.f32 %v2733, %v3085
        %v3087 = vpop.f32.mrb[0].mxu0
        %v3088 = vadd.f32 %v2735, %v3087
        %3089 = vmatprep.mubr.bf16.mxu0 %v2397
        %3090 = vmatmul.mubr.bf16.gmra.mrb[0].mxu0 %v2396
        %v3091 = vpop.f32.mrb[0].mxu0
        %v3092 = vadd.f32 %v2739, %v3091
        %v3093 = vpop.f32.mrb[0].mxu0
        %v3094 = vadd.f32 %v2741, %v3093
        %v3095 = vpop.f32.mrb[0].mxu0
        %v3096 = vadd.f32 %v2743, %v3095
        %v3097 = vpop.f32.mrb[0].mxu0
        %v3098 = vadd.f32 %v2745, %v3097
        %3099 = vmatprep.mubr.bf16.mxu0 %v2401
        %3100 = vmatmul.mubr.bf16.gmra.mrb[0].mxu0 %v2400
        %v3101 = vpop.f32.mrb[0].mxu0
        %v3102 = vadd.f32 %v2749, %v3101
        %v3103 = vpop.f32.mrb[0].mxu0
        %v3104 = vadd.f32 %v2751, %v3103
        %v3105 = vpop.f32.mrb[0].mxu0
        %v3106 = vadd.f32 %v2753, %v3105
        %v3107 = vpop.f32.mrb[0].mxu0
        %v3108 = vadd.f32 %v2755, %v3107
        %3109 = vmatprep.mubr.bf16.mxu0 %v2405
        %3110 = vmatmul.mubr.bf16.gmra.mrb[0].mxu0 %v2404
        %v3111 = vpop.f32.mrb[0].mxu0
        %v3112 = vadd.f32 %v2759, %v3111
        %v3113 = vpop.f32.mrb[0].mxu0
        %v3114 = vadd.f32 %v2761, %v3113
        %v3115 = vpop.f32.mrb[0].mxu0
        %v3116 = vadd.f32 %v2763, %v3115
        %v3117 = vpop.f32.mrb[0].mxu0
        %v3118 = vadd.f32 %v2765, %v3117
        %3119 = vmatprep.mubr.bf16.mxu0 %v2409
        %3120 = vmatmul.mubr.bf16.gmra.mrb[0].mxu0 %v2408
        %v3121 = vpop.f32.mrb[0].mxu0
        %v3122 = vadd.f32 %v2769, %v3121
        %v3123 = vpop.f32.mrb[0].mxu0
        %v3124 = vadd.f32 %v2771, %v3123
        %v3125 = vpop.f32.mrb[0].mxu0
        %v3126 = vadd.f32 %v2773, %v3125
        %v3127 = vpop.f32.mrb[0].mxu0
        %v3128 = vadd.f32 %v2775, %v3127
        %3129 = vmatprep.mubr.bf16.mxu0 %v2413
        %3130 = vmatmul.mubr.bf16.gmra.mrb[0].mxu0 %v2412
        %v3131 = vpop.f32.mrb[0].mxu0
        %v3132 = vadd.f32 %v2779, %v3131
        %v3133 = vpop.f32.mrb[0].mxu0
        %v3134 = vadd.f32 %v2781, %v3133
        %v3135 = vpop.f32.mrb[0].mxu0
        %v3136 = vadd.f32 %v2783, %v3135
        %v3137 = vpop.f32.mrb[0].mxu0
        %v3138 = vadd.f32 %v2785, %v3137
        %3139 = vmatprep.mubr.bf16.mxu0 %v2417
        %3140 = vmatmul.mubr.bf16.gmra.mrb[0].mxu0 %v2416
        %v3141 = vpop.f32.mrb[0].mxu0
        %v3142 = vadd.f32 %v2789, %v3141
        %v3143 = vpop.f32.mrb[0].mxu0
        %v3144 = vadd.f32 %v2791, %v3143
        %v3145 = vpop.f32.mrb[0].mxu0
        %v3146 = vadd.f32 %v2793, %v3145
        %v3147 = vpop.f32.mrb[0].mxu0
        %v3148 = vadd.f32 %v2795, %v3147
        %3149 = vmatprep.mubr.bf16.mxu0 %v2421
        %3150 = vmatmul.mubr.bf16.gmra.mrb[0].mxu0 %v2420
        %v3151 = vpop.f32.mrb[0].mxu0
        %v3152 = vadd.f32 %v2799, %v3151
        %v3153 = vpop.f32.mrb[0].mxu0
        %v3154 = vadd.f32 %v2801, %v3153
        %v3155 = vpop.f32.mrb[0].mxu0
        %v3156 = vadd.f32 %v2803, %v3155
        %v3157 = vpop.f32.mrb[0].mxu0
        %v3158 = vadd.f32 %v2805, %v3157
        %3159 = vmatprep.mubr.bf16.mxu0 %v2425
        %3160 = vmatmul.mubr.bf16.gmra.mrb[0].mxu0 %v2424
        %v3161 = vpop.f32.mrb[0].mxu0
        %v3162 = vadd.f32 %v2809, %v3161
        %v3163 = vpop.f32.mrb[0].mxu0
        %v3164 = vadd.f32 %v2811, %v3163
        %v3165 = vpop.f32.mrb[0].mxu0
        %v3166 = vadd.f32 %v2813, %v3165
        %v3167 = vpop.f32.mrb[0].mxu0
        %v3168 = vadd.f32 %v2815, %v3167
        %3169 = vmatprep.mubr.bf16.mxu0 %v2429
        %3170 = vmatmul.mubr.bf16.gmra.mrb[0].mxu0 %v2428
        %v3171 = vpop.f32.mrb[0].mxu0
        %v3172 = vadd.f32 %v2819, %v3171
        %v3173 = vpop.f32.mrb[0].mxu0
        %v3174 = vadd.f32 %v2821, %v3173
        %v3175 = vpop.f32.mrb[0].mxu0
        %v3176 = vadd.f32 %v2823, %v3175
        %v3177 = vpop.f32.mrb[0].mxu0
        %v3178 = vadd.f32 %v2825, %v3177
        %3179 = vmatprep.mubr.bf16.mxu0 %v2433
        %3180 = vmatmul.mubr.bf16.gmra.mrb[0].mxu0 %v2432
        %v3181 = vpop.f32.mrb[0].mxu0
        %v3182 = vadd.f32 %v2829, %v3181
        %v3183 = vpop.f32.mrb[0].mxu0
        %v3184 = vadd.f32 %v2831, %v3183
        %v3185 = vpop.f32.mrb[0].mxu0
        %v3186 = vadd.f32 %v2833, %v3185
        %v3187 = vpop.f32.mrb[0].mxu0
        %v3188 = vadd.f32 %v2835, %v3187
        %3189 = vmatprep.mubr.bf16.mxu0 %v2437
        %3190 = vmatmul.mubr.bf16.gmra.mrb[0].mxu0 %v2436
        %v3191 = vpop.f32.mrb[0].mxu0
        %v3192 = vadd.f32 %v2839, %v3191
        %v3193 = vpop.f32.mrb[0].mxu0
        %v3194 = vadd.f32 %v2841, %v3193
        %v3195 = vpop.f32.mrb[0].mxu0
        %v3196 = vadd.f32 %v2843, %v3195
        %v3197 = vpop.f32.mrb[0].mxu0
        %v3198 = vadd.f32 %v2845, %v3197
        %3199 = vmatprep.mubr.bf16.mxu0 %v2441
        %3200 = vmatmul.mubr.bf16.gmra.mrb[0].mxu0 %v2440
        %v3201 = vpop.f32.mrb[0].mxu0
        %v3202 = vadd.f32 %v2849, %v3201
        %v3203 = vpop.f32.mrb[0].mxu0
        %v3204 = vadd.f32 %v2851, %v3203
        %v3205 = vpop.f32.mrb[0].mxu0
        %v3206 = vadd.f32 %v2853, %v3205
        %v3207 = vpop.f32.mrb[0].mxu0
        %v3208 = vadd.f32 %v2855, %v3207
        %3209 = vmatprep.mubr.bf16.mxu0 %v2445
        %3210 = vmatmul.mubr.bf16.gmra.mrb[0].mxu0 %v2444
        %v3211 = vpop.f32.mrb[0].mxu0
        %v3212 = vadd.f32 %v2859, %v3211
        %v3213 = vpop.f32.mrb[0].mxu0
        %v3214 = vadd.f32 %v2861, %v3213
        %v3215 = vpop.f32.mrb[0].mxu0
        %v3216 = vadd.f32 %v2863, %v3215
        %v3217 = vpop.f32.mrb[0].mxu0
        %v3218 = vadd.f32 %v2865, %v3217
        %3219 = vmatprep.mubr.bf16.mxu0 %v2449
        %3220 = vmatmul.mubr.bf16.gmra.mrb[0].mxu0 %v2448
        %v3221 = vpop.f32.mrb[0].mxu0
        %v3222 = vadd.f32 %v2869, %v3221
        %v3223 = vpop.f32.mrb[0].mxu0
        %v3224 = vadd.f32 %v2871, %v3223
        %v3225 = vpop.f32.mrb[0].mxu0
        %v3226 = vadd.f32 %v2873, %v3225
        %v3227 = vpop.f32.mrb[0].mxu0
        %v3228 = vadd.f32 %v2875, %v3227
        %3229 = vmatprep.mubr.bf16.mxu0 %v2453
        %3230 = vmatmul.mubr.bf16.gmra.mrb[0].mxu0 %v2452
        %v3231 = vpop.f32.mrb[0].mxu0
        %v3232 = vadd.f32 %v2879, %v3231
        %v3233 = vpop.f32.mrb[0].mxu0
        %v3234 = vadd.f32 %v2881, %v3233
        %v3235 = vpop.f32.mrb[0].mxu0
        %v3236 = vadd.f32 %v2883, %v3235
        %v3237 = vpop.f32.mrb[0].mxu0
        %v3238 = vadd.f32 %v2885, %v3237
        %3239 = vmatprep.mubr.bf16.mxu0 %v2457
        %3240 = vmatmul.mubr.bf16.gmra.mrb[0].mxu0 %v2456
        %v3241 = vpop.f32.mrb[0].mxu0
        %v3242 = vadd.f32 %v2889, %v3241
        %v3243 = vpop.f32.mrb[0].mxu0
        %v3244 = vadd.f32 %v2891, %v3243
        %v3245 = vpop.f32.mrb[0].mxu0
        %v3246 = vadd.f32 %v2893, %v3245
        %v3247 = vpop.f32.mrb[0].mxu0
        %v3248 = vadd.f32 %v2895, %v3247
        %3249 = vmatprep.mubr.bf16.mxu0 %v2461
        %3250 = vmatmul.mubr.bf16.gmra.mrb[0].mxu0 %v2460
        %v3251 = vpop.f32.mrb[0].mxu0
        %v3252 = vadd.f32 %v2899, %v3251
        %v3253 = vpop.f32.mrb[0].mxu0
        %v3254 = vadd.f32 %v2901, %v3253
        %v3255 = vpop.f32.mrb[0].mxu0
        %v3256 = vadd.f32 %v2903, %v3255
        %v3257 = vpop.f32.mrb[0].mxu0
        %v3258 = vadd.f32 %v2905, %v3257
        %3259 = vmatprep.mubr.bf16.mxu0 %v2465
        %3260 = vmatmul.mubr.bf16.gmra.mrb[0].mxu0 %v2464
        %v3261 = vpop.f32.mrb[0].mxu0
        %v3262 = vadd.f32 %v2909, %v3261
        %v3263 = vpop.f32.mrb[0].mxu0
        %v3264 = vadd.f32 %v2911, %v3263
        %v3265 = vpop.f32.mrb[0].mxu0
        %v3266 = vadd.f32 %v2913, %v3265
        %v3267 = vpop.f32.mrb[0].mxu0
        %v3268 = vadd.f32 %v2915, %v3267
        %3269 = vmatprep.mubr.bf16.mxu0 %v2469
        %3270 = vmatmul.mubr.bf16.gmra.mrb[0].mxu0 %v2468
        %v3271 = vpop.f32.mrb[0].mxu0
        %v3272 = vadd.f32 %v2919, %v3271
        %v3273 = vpop.f32.mrb[0].mxu0
        %v3274 = vadd.f32 %v2921, %v3273
        %v3275 = vpop.f32.mrb[0].mxu0
        %v3276 = vadd.f32 %v2923, %v3275
        %v3277 = vpop.f32.mrb[0].mxu0
        %v3278 = vadd.f32 %v2925, %v3277
        %3279 = vmatprep.mubr.bf16.mxu0 %v2473
        %3280 = vmatmul.mubr.bf16.gmra.mrb[0].mxu0 %v2472
        %v3281 = vpop.f32.mrb[0].mxu0
        %v3282 = vadd.f32 %v2929, %v3281
        %v3283 = vpop.f32.mrb[0].mxu0
        %v3284 = vadd.f32 %v2931, %v3283
        %v3285 = vpop.f32.mrb[0].mxu0
        %v3286 = vadd.f32 %v2933, %v3285
        %v3287 = vpop.f32.mrb[0].mxu0
        %v3288 = vadd.f32 %v2935, %v3287
        %3289 = vmatprep.mubr.bf16.mxu0 %v2477
        %3290 = vmatmul.mubr.bf16.gmra.mrb[0].mxu0 %v2476
        %v3291 = vpop.f32.mrb[0].mxu0
        %v3292 = vadd.f32 %v2939, %v3291
        %v3293 = vpop.f32.mrb[0].mxu0
        %v3294 = vadd.f32 %v2941, %v3293
        %v3295 = vpop.f32.mrb[0].mxu0
        %v3296 = vadd.f32 %v2943, %v3295
        %v3297 = vpop.f32.mrb[0].mxu0
        %v3298 = vadd.f32 %v2945, %v3297
        %3299 = vmatprep.mubr.bf16.mxu0 %v2481
        %3300 = vmatmul.mubr.bf16.gmra.mrb[0].mxu0 %v2480
        %v3301 = vpop.f32.mrb[0].mxu0
        %v3302 = vadd.f32 %v2949, %v3301
        %v3303 = vpop.f32.mrb[0].mxu0
        %v3304 = vadd.f32 %v2951, %v3303
        %v3305 = vpop.f32.mrb[0].mxu0
        %v3306 = vadd.f32 %v2953, %v3305
        %v3307 = vpop.f32.mrb[0].mxu0
        %v3308 = vadd.f32 %v2955, %v3307
        %3309 = vmatprep.mubr.bf16.mxu0 %v2485
        %3310 = vmatmul.mubr.bf16.gmra.mrb[0].mxu0 %v2484
        %v3311 = vpop.f32.mrb[0].mxu0
        %v3312 = vadd.f32 %v2959, %v3311
        %v3313 = vpop.f32.mrb[0].mxu0
        %v3314 = vadd.f32 %v2961, %v3313
        %v3315 = vpop.f32.mrb[0].mxu0
        %v3316 = vadd.f32 %v2963, %v3315
        %v3317 = vpop.f32.mrb[0].mxu0
        %v3318 = vadd.f32 %v2965, %v3317
        %3319 = vdwg.mxu0
        %v3320 = vpack.c.bf16 %v3006, %v3002
        %v3321 = vpack.c.bf16 %v3008, %v3004
        %v3322 = vpack.c.bf16 %v3016, %v3012
        %v3323 = vpack.c.bf16 %v3018, %v3014
        %v3324 = vpack.c.bf16 %v3026, %v3022
        %v3325 = vpack.c.bf16 %v3028, %v3024
        %v3326 = vpack.c.bf16 %v3036, %v3032
        %v3327 = vpack.c.bf16 %v3038, %v3034
        %v3328 = vpack.c.bf16 %v3046, %v3042
        %v3329 = vpack.c.bf16 %v3048, %v3044
        %v3330 = vpack.c.bf16 %v3056, %v3052
        %v3331 = vpack.c.bf16 %v3058, %v3054
        %v3332 = vpack.c.bf16 %v3066, %v3062
        %v3333 = vpack.c.bf16 %v3068, %v3064
        %v3334 = vpack.c.bf16 %v3076, %v3072
        %v3335 = vpack.c.bf16 %v3078, %v3074
        %v3336 = vpack.c.bf16 %v3086, %v3082
        %v3337 = vpack.c.bf16 %v3088, %v3084
        %v3338 = vpack.c.bf16 %v3096, %v3092
        %v3339 = vpack.c.bf16 %v3098, %v3094
        %v3340 = vpack.c.bf16 %v3106, %v3102
        %v3341 = vpack.c.bf16 %v3108, %v3104
        %v3342 = vpack.c.bf16 %v3116, %v3112
        %v3343 = vpack.c.bf16 %v3118, %v3114
        %v3344 = vpack.c.bf16 %v3126, %v3122
        %v3345 = vpack.c.bf16 %v3128, %v3124
        %v3346 = vpack.c.bf16 %v3136, %v3132
        %v3347 = vpack.c.bf16 %v3138, %v3134
        %v3348 = vpack.c.bf16 %v3146, %v3142
        %v3349 = vpack.c.bf16 %v3148, %v3144
        %v3350 = vpack.c.bf16 %v3156, %v3152
        %v3351 = vpack.c.bf16 %v3158, %v3154
        %v3352 = vpack.c.bf16 %v3166, %v3162
        %v3353 = vpack.c.bf16 %v3168, %v3164
        %v3354 = vpack.c.bf16 %v3176, %v3172
        %v3355 = vpack.c.bf16 %v3178, %v3174
        %v3356 = vpack.c.bf16 %v3186, %v3182
        %v3357 = vpack.c.bf16 %v3188, %v3184
        %v3358 = vpack.c.bf16 %v3196, %v3192
        %v3359 = vpack.c.bf16 %v3198, %v3194
        %v3360 = vpack.c.bf16 %v3206, %v3202
        %v3361 = vpack.c.bf16 %v3208, %v3204
        %v3362 = vpack.c.bf16 %v3216, %v3212
        %v3363 = vpack.c.bf16 %v3218, %v3214
        %v3364 = vpack.c.bf16 %v3226, %v3222
        %v3365 = vpack.c.bf16 %v3228, %v3224
        %v3366 = vpack.c.bf16 %v3236, %v3232
        %v3367 = vpack.c.bf16 %v3238, %v3234
        %v3368 = vpack.c.bf16 %v3246, %v3242
        %v3369 = vpack.c.bf16 %v3248, %v3244
        %v3370 = vpack.c.bf16 %v3256, %v3252
        %v3371 = vpack.c.bf16 %v3258, %v3254
        %v3372 = vpack.c.bf16 %v3266, %v3262
        %v3373 = vpack.c.bf16 %v3268, %v3264
        %v3374 = vpack.c.bf16 %v3276, %v3272
        %v3375 = vpack.c.bf16 %v3278, %v3274
        %v3376 = vpack.c.bf16 %v3286, %v3282
        %v3377 = vpack.c.bf16 %v3288, %v3284
        %v3378 = vpack.c.bf16 %v3296, %v3292
        %v3379 = vpack.c.bf16 %v3298, %v3294
        %v3380 = vpack.c.bf16 %v3306, %v3302
        %v3381 = vpack.c.bf16 %v3308, %v3304
        %v3382 = vpack.c.bf16 %v3316, %v3312
        %v3383 = vpack.c.bf16 %v3318, %v3314
        %3385 = vset.pattern.permute.xlu0 0
        %3386 = vperm.xlu0 %3385, %v661
        %v3387 = vpop.permute.xlu0 %3386
        %3390 = vset.pattern.permute.xlu0 0
        %3391 = vperm.xlu0 %3390, %v662
        %v3392 = vpop.permute.xlu0 %3391
        %3395 = vset.pattern.permute.xlu0 0
        %3396 = vperm.xlu0 %3395, %v663
        %v3397 = vpop.permute.xlu0 %3396
        %3400 = vset.pattern.permute.xlu0 0
        %3401 = vperm.xlu0 %3400, %v664
        %v3402 = vpop.permute.xlu0 %3401
        %3405 = vset.pattern.permute.xlu0 0
        %3406 = vperm.xlu0 %3405, %v665
        %v3407 = vpop.permute.xlu0 %3406
        %3410 = vset.pattern.permute.xlu0 0
        %3411 = vperm.xlu0 %3410, %v666
        %v3412 = vpop.permute.xlu0 %3411
        %3415 = vset.pattern.permute.xlu0 0
        %3416 = vperm.xlu0 %3415, %v667
        %v3417 = vpop.permute.xlu0 %3416
        %3420 = vset.pattern.permute.xlu0 0
        %3421 = vperm.xlu0 %3420, %v668
        %v3422 = vpop.permute.xlu0 %3421
        %3425 = vset.pattern.permute.xlu0 0
        %3426 = vperm.xlu0 %3425, %v669
        %v3427 = vpop.permute.xlu0 %3426
        %3430 = vset.pattern.permute.xlu0 0
        %3431 = vperm.xlu0 %3430, %v670
        %v3432 = vpop.permute.xlu0 %3431
        %3435 = vset.pattern.permute.xlu0 0
        %3436 = vperm.xlu0 %3435, %v671
        %v3437 = vpop.permute.xlu0 %3436
        %3440 = vset.pattern.permute.xlu0 0
        %3441 = vperm.xlu0 %3440, %v672
        %v3442 = vpop.permute.xlu0 %3441
        %3445 = vset.pattern.permute.xlu0 0
        %3446 = vperm.xlu0 %3445, %v673
        %v3447 = vpop.permute.xlu0 %3446
        %3450 = vset.pattern.permute.xlu0 0
        %3451 = vperm.xlu0 %3450, %v674
        %v3452 = vpop.permute.xlu0 %3451
        %3455 = vset.pattern.permute.xlu0 0
        %3456 = vperm.xlu0 %3455, %v675
        %v3457 = vpop.permute.xlu0 %3456
        %3460 = vset.pattern.permute.xlu0 0
        %3461 = vperm.xlu0 %3460, %v676
        %v3462 = vpop.permute.xlu0 %3461
        %3465 = vset.pattern.permute.xlu0 0
        %3466 = vperm.xlu0 %3465, %v677
        %v3467 = vpop.permute.xlu0 %3466
        %3470 = vset.pattern.permute.xlu0 0
        %3471 = vperm.xlu0 %3470, %v678
        %v3472 = vpop.permute.xlu0 %3471
        %3475 = vset.pattern.permute.xlu0 0
        %3476 = vperm.xlu0 %3475, %v679
        %v3477 = vpop.permute.xlu0 %3476
        %3480 = vset.pattern.permute.xlu0 0
        %3481 = vperm.xlu0 %3480, %v680
        %v3482 = vpop.permute.xlu0 %3481
        %3485 = vset.pattern.permute.xlu0 0
        %3486 = vperm.xlu0 %3485, %v681
        %v3487 = vpop.permute.xlu0 %3486
        %3490 = vset.pattern.permute.xlu0 0
        %3491 = vperm.xlu0 %3490, %v682
        %v3492 = vpop.permute.xlu0 %3491
        %3495 = vset.pattern.permute.xlu0 0
        %3496 = vperm.xlu0 %3495, %v683
        %v3497 = vpop.permute.xlu0 %3496
        %3500 = vset.pattern.permute.xlu0 0
        %3501 = vperm.xlu0 %3500, %v684
        %v3502 = vpop.permute.xlu0 %3501
        %3505 = vset.pattern.permute.xlu0 0
        %3506 = vperm.xlu0 %3505, %v685
        %v3507 = vpop.permute.xlu0 %3506
        %3510 = vset.pattern.permute.xlu0 0
        %3511 = vperm.xlu0 %3510, %v686
        %v3512 = vpop.permute.xlu0 %3511
        %3515 = vset.pattern.permute.xlu0 0
        %3516 = vperm.xlu0 %3515, %v687
        %v3517 = vpop.permute.xlu0 %3516
        %3520 = vset.pattern.permute.xlu0 0
        %3521 = vperm.xlu0 %3520, %v688
        %v3522 = vpop.permute.xlu0 %3521
        %3525 = vset.pattern.permute.xlu0 0
        %3526 = vperm.xlu0 %3525, %v689
        %v3527 = vpop.permute.xlu0 %3526
        %3530 = vset.pattern.permute.xlu0 0
        %3531 = vperm.xlu0 %3530, %v690
        %v3532 = vpop.permute.xlu0 %3531
        %3535 = vset.pattern.permute.xlu0 0
        %3536 = vperm.xlu0 %3535, %v691
        %v3537 = vpop.permute.xlu0 %3536
        %3540 = vset.pattern.permute.xlu0 0
        %3541 = vperm.xlu0 %3540, %v692
        %v3542 = vpop.permute.xlu0 %3541
        %v3544 = vadd.bf16 %v3320, %v3387
        %v3545 = vadd.bf16 %v3321, %v3387
        %v3546 = vadd.bf16 %v3322, %v3392
        %v3547 = vadd.bf16 %v3323, %v3392
        %v3548 = vadd.bf16 %v3324, %v3397
        %v3549 = vadd.bf16 %v3325, %v3397
        %v3550 = vadd.bf16 %v3326, %v3402
        %v3551 = vadd.bf16 %v3327, %v3402
        %v3552 = vadd.bf16 %v3328, %v3407
        %v3553 = vadd.bf16 %v3329, %v3407
        %v3554 = vadd.bf16 %v3330, %v3412
        %v3555 = vadd.bf16 %v3331, %v3412
        %v3556 = vadd.bf16 %v3332, %v3417
        %v3557 = vadd.bf16 %v3333, %v3417
        %v3558 = vadd.bf16 %v3334, %v3422
        %v3559 = vadd.bf16 %v3335, %v3422
        %v3560 = vadd.bf16 %v3336, %v3427
        %v3561 = vadd.bf16 %v3337, %v3427
        %v3562 = vadd.bf16 %v3338, %v3432
        %v3563 = vadd.bf16 %v3339, %v3432
        %v3564 = vadd.bf16 %v3340, %v3437
        %v3565 = vadd.bf16 %v3341, %v3437
        %v3566 = vadd.bf16 %v3342, %v3442
        %v3567 = vadd.bf16 %v3343, %v3442
        %v3568 = vadd.bf16 %v3344, %v3447
        %v3569 = vadd.bf16 %v3345, %v3447
        %v3570 = vadd.bf16 %v3346, %v3452
        %v3571 = vadd.bf16 %v3347, %v3452
        %v3572 = vadd.bf16 %v3348, %v3457
        %v3573 = vadd.bf16 %v3349, %v3457
        %v3574 = vadd.bf16 %v3350, %v3462
        %v3575 = vadd.bf16 %v3351, %v3462
        %v3576 = vadd.bf16 %v3352, %v3467
        %v3577 = vadd.bf16 %v3353, %v3467
        %v3578 = vadd.bf16 %v3354, %v3472
        %v3579 = vadd.bf16 %v3355, %v3472
        %v3580 = vadd.bf16 %v3356, %v3477
        %v3581 = vadd.bf16 %v3357, %v3477
        %v3582 = vadd.bf16 %v3358, %v3482
        %v3583 = vadd.bf16 %v3359, %v3482
        %v3584 = vadd.bf16 %v3360, %v3487
        %v3585 = vadd.bf16 %v3361, %v3487
        %v3586 = vadd.bf16 %v3362, %v3492
        %v3587 = vadd.bf16 %v3363, %v3492
        %v3588 = vadd.bf16 %v3364, %v3497
        %v3589 = vadd.bf16 %v3365, %v3497
        %v3590 = vadd.bf16 %v3366, %v3502
        %v3591 = vadd.bf16 %v3367, %v3502
        %v3592 = vadd.bf16 %v3368, %v3507
        %v3593 = vadd.bf16 %v3369, %v3507
        %v3594 = vadd.bf16 %v3370, %v3512
        %v3595 = vadd.bf16 %v3371, %v3512
        %v3596 = vadd.bf16 %v3372, %v3517
        %v3597 = vadd.bf16 %v3373, %v3517
        %v3598 = vadd.bf16 %v3374, %v3522
        %v3599 = vadd.bf16 %v3375, %v3522
        %v3600 = vadd.bf16 %v3376, %v3527
        %v3601 = vadd.bf16 %v3377, %v3527
        %v3602 = vadd.bf16 %v3378, %v3532
        %v3603 = vadd.bf16 %v3379, %v3532
        %v3604 = vadd.bf16 %v3380, %v3537
        %v3605 = vadd.bf16 %v3381, %v3537
        %v3606 = vadd.bf16 %v3382, %v3542
        %v3607 = vadd.bf16 %v3383, %v3542
        %v3608 = vmax.bf16 %v3544, 0
        %v3609 = vmax.bf16 %v3545, 0
        %v3610 = vmax.bf16 %v3546, 0
        %v3611 = vmax.bf16 %v3547, 0
        %v3612 = vmax.bf16 %v3548, 0
        %v3613 = vmax.bf16 %v3549, 0
        %v3614 = vmax.bf16 %v3550, 0
        %v3615 = vmax.bf16 %v3551, 0
        %v3616 = vmax.bf16 %v3552, 0
        %v3617 = vmax.bf16 %v3553, 0
        %v3618 = vmax.bf16 %v3554, 0
        %v3619 = vmax.bf16 %v3555, 0
        %v3620 = vmax.bf16 %v3556, 0
        %v3621 = vmax.bf16 %v3557, 0
        %v3622 = vmax.bf16 %v3558, 0
        %v3623 = vmax.bf16 %v3559, 0
        %v3624 = vmax.bf16 %v3560, 0
        %v3625 = vmax.bf16 %v3561, 0
        %v3626 = vmax.bf16 %v3562, 0
        %v3627 = vmax.bf16 %v3563, 0
        %v3628 = vmax.bf16 %v3564, 0
        %v3629 = vmax.bf16 %v3565, 0
        %v3630 = vmax.bf16 %v3566, 0
        %v3631 = vmax.bf16 %v3567, 0
        %v3632 = vmax.bf16 %v3568, 0
        %v3633 = vmax.bf16 %v3569, 0
        %v3634 = vmax.bf16 %v3570, 0
        %v3635 = vmax.bf16 %v3571, 0
        %v3636 = vmax.bf16 %v3572, 0
        %v3637 = vmax.bf16 %v3573, 0
        %v3638 = vmax.bf16 %v3574, 0
        %v3639 = vmax.bf16 %v3575, 0
        %v3640 = vmax.bf16 %v3576, 0
        %v3641 = vmax.bf16 %v3577, 0
        %v3642 = vmax.bf16 %v3578, 0
        %v3643 = vmax.bf16 %v3579, 0
        %v3644 = vmax.bf16 %v3580, 0
        %v3645 = vmax.bf16 %v3581, 0
        %v3646 = vmax.bf16 %v3582, 0
        %v3647 = vmax.bf16 %v3583, 0
        %v3648 = vmax.bf16 %v3584, 0
        %v3649 = vmax.bf16 %v3585, 0
        %v3650 = vmax.bf16 %v3586, 0
        %v3651 = vmax.bf16 %v3587, 0
        %v3652 = vmax.bf16 %v3588, 0
        %v3653 = vmax.bf16 %v3589, 0
        %v3654 = vmax.bf16 %v3590, 0
        %v3655 = vmax.bf16 %v3591, 0
        %v3656 = vmax.bf16 %v3592, 0
        %v3657 = vmax.bf16 %v3593, 0
        %v3658 = vmax.bf16 %v3594, 0
        %v3659 = vmax.bf16 %v3595, 0
        %v3660 = vmax.bf16 %v3596, 0
        %v3661 = vmax.bf16 %v3597, 0
        %v3662 = vmax.bf16 %v3598, 0
        %v3663 = vmax.bf16 %v3599, 0
        %v3664 = vmax.bf16 %v3600, 0
        %v3665 = vmax.bf16 %v3601, 0
        %v3666 = vmax.bf16 %v3602, 0
        %v3667 = vmax.bf16 %v3603, 0
        %v3668 = vmax.bf16 %v3604, 0
        %v3669 = vmax.bf16 %v3605, 0
        %v3670 = vmax.bf16 %v3606, 0
        %v3671 = vmax.bf16 %v3607, 0
        %v3672 = vld [vmem:[#allocation8] sm:$0xff]
        %v3673 = vld [vmem:[#allocation8 + $0x8] sm:$0xff]
        %v3674 = vld [vmem:[#allocation8 + $0x10] sm:$0xff]
        %v3675 = vld [vmem:[#allocation8 + $0x18] sm:$0xff]
        %v3676 = vld [vmem:[#allocation8 + $0x20] sm:$0xff]
        %v3677 = vld [vmem:[#allocation8 + $0x28] sm:$0xff]
        %v3678 = vld [vmem:[#allocation8 + $0x30] sm:$0xff]
        %v3679 = vld [vmem:[#allocation8 + $0x38] sm:$0xff]
        %v3680 = vld [vmem:[#allocation8 + $0x40] sm:$0xff]
        %v3681 = vld [vmem:[#allocation8 + $0x48] sm:$0xff]
        %v3682 = vld [vmem:[#allocation8 + $0x50] sm:$0xff]
        %v3683 = vld [vmem:[#allocation8 + $0x58] sm:$0xff]
        %v3684 = vld [vmem:[#allocation8 + $0x60] sm:$0xff]
        %v3685 = vld [vmem:[#allocation8 + $0x68] sm:$0xff]
        %v3686 = vld [vmem:[#allocation8 + $0x70] sm:$0xff]
        %v3687 = vld [vmem:[#allocation8 + $0x78] sm:$0xff]
        %v3688 = vld [vmem:[#allocation8 + $0x80] sm:$0xff]
        %v3689 = vld [vmem:[#allocation8 + $0x88] sm:$0xff]
        %v3690 = vld [vmem:[#allocation8 + $0x90] sm:$0xff]
        %v3691 = vld [vmem:[#allocation8 + $0x98] sm:$0xff]
        %v3692 = vld [vmem:[#allocation8 + $0xa0] sm:$0xff]
        %v3693 = vld [vmem:[#allocation8 + $0xa8] sm:$0xff]
        %v3694 = vld [vmem:[#allocation8 + $0xb0] sm:$0xff]
        %v3695 = vld [vmem:[#allocation8 + $0xb8] sm:$0xff]
        %v3696 = vld [vmem:[#allocation8 + $0xc0] sm:$0xff]
        %v3697 = vld [vmem:[#allocation8 + $0xc8] sm:$0xff]
        %v3698 = vld [vmem:[#allocation8 + $0xd0] sm:$0xff]
        %v3699 = vld [vmem:[#allocation8 + $0xd8] sm:$0xff]
        %v3700 = vld [vmem:[#allocation8 + $0xe0] sm:$0xff]
        %v3701 = vld [vmem:[#allocation8 + $0xe8] sm:$0xff]
        %v3702 = vld [vmem:[#allocation8 + $0xf0] sm:$0xff]
        %v3703 = vld [vmem:[#allocation8 + $0xf8] sm:$0xff]
        %v3704 = vld [vmem:[#allocation8 + $0x100] sm:$0xff]
        %v3705 = vld [vmem:[#allocation8 + $0x108] sm:$0xff]
        %v3706 = vld [vmem:[#allocation8 + $0x110] sm:$0xff]
        %v3707 = vld [vmem:[#allocation8 + $0x118] sm:$0xff]
        %v3708 = vld [vmem:[#allocation8 + $0x120] sm:$0xff]
        %v3709 = vld [vmem:[#allocation8 + $0x128] sm:$0xff]
        %v3710 = vld [vmem:[#allocation8 + $0x130] sm:$0xff]
        %v3711 = vld [vmem:[#allocation8 + $0x138] sm:$0xff]
        %v3712 = vld [vmem:[#allocation8 + $0x140] sm:$0xff]
        %v3713 = vld [vmem:[#allocation8 + $0x148] sm:$0xff]
        %v3714 = vld [vmem:[#allocation8 + $0x150] sm:$0xff]
        %v3715 = vld [vmem:[#allocation8 + $0x158] sm:$0xff]
        %v3716 = vld [vmem:[#allocation8 + $0x160] sm:$0xff]
        %v3717 = vld [vmem:[#allocation8 + $0x168] sm:$0xff]
        %v3718 = vld [vmem:[#allocation8 + $0x170] sm:$0xff]
        %v3719 = vld [vmem:[#allocation8 + $0x178] sm:$0xff]
        %v3720 = vld [vmem:[#allocation8 + $0x180] sm:$0xff]
        %v3721 = vld [vmem:[#allocation8 + $0x188] sm:$0xff]
        %v3722 = vld [vmem:[#allocation8 + $0x190] sm:$0xff]
        %v3723 = vld [vmem:[#allocation8 + $0x198] sm:$0xff]
        %v3724 = vld [vmem:[#allocation8 + $0x1a0] sm:$0xff]
        %v3725 = vld [vmem:[#allocation8 + $0x1a8] sm:$0xff]
        %v3726 = vld [vmem:[#allocation8 + $0x1b0] sm:$0xff]
        %v3727 = vld [vmem:[#allocation8 + $0x1b8] sm:$0xff]
        %v3728 = vld [vmem:[#allocation8 + $0x1c0] sm:$0xff]
        %v3729 = vld [vmem:[#allocation8 + $0x1c8] sm:$0xff]
        %v3730 = vld [vmem:[#allocation8 + $0x1d0] sm:$0xff]
        %v3731 = vld [vmem:[#allocation8 + $0x1d8] sm:$0xff]
        %v3732 = vld [vmem:[#allocation8 + $0x1e0] sm:$0xff]
        %v3733 = vld [vmem:[#allocation8 + $0x1e8] sm:$0xff]
        %v3734 = vld [vmem:[#allocation8 + $0x1f0] sm:$0xff]
        %v3735 = vld [vmem:[#allocation8 + $0x1f8] sm:$0xff]
        %v3800 = vunpack.c.l.b16 %v3672
        %v3801 = vunpack.c.h.b16 %v3672
        %v3802 = vunpack.c.l.b16 %v3673
        %v3803 = vunpack.c.h.b16 %v3673
        %v3804 = vunpack.c.l.b16 %v3674
        %v3805 = vunpack.c.h.b16 %v3674
        %v3806 = vunpack.c.l.b16 %v3675
        %v3807 = vunpack.c.h.b16 %v3675
        %v3808 = vunpack.c.l.b16 %v3676
        %v3809 = vunpack.c.h.b16 %v3676
        %v3810 = vunpack.c.l.b16 %v3677
        %v3811 = vunpack.c.h.b16 %v3677
        %v3812 = vunpack.c.l.b16 %v3678
        %v3813 = vunpack.c.h.b16 %v3678
        %v3814 = vunpack.c.l.b16 %v3679
        %v3815 = vunpack.c.h.b16 %v3679
        %v3816 = vunpack.c.l.b16 %v3680
        %v3817 = vunpack.c.h.b16 %v3680
        %v3818 = vunpack.c.l.b16 %v3681
        %v3819 = vunpack.c.h.b16 %v3681
        %v3820 = vunpack.c.l.b16 %v3682
        %v3821 = vunpack.c.h.b16 %v3682
        %v3822 = vunpack.c.l.b16 %v3683
        %v3823 = vunpack.c.h.b16 %v3683
        %v3824 = vunpack.c.l.b16 %v3684
        %v3825 = vunpack.c.h.b16 %v3684
        %v3826 = vunpack.c.l.b16 %v3685
        %v3827 = vunpack.c.h.b16 %v3685
        %v3828 = vunpack.c.l.b16 %v3686
        %v3829 = vunpack.c.h.b16 %v3686
        %v3830 = vunpack.c.l.b16 %v3687
        %v3831 = vunpack.c.h.b16 %v3687
        %v3832 = vunpack.c.l.b16 %v3688
        %v3833 = vunpack.c.h.b16 %v3688
        %v3834 = vunpack.c.l.b16 %v3689
        %v3835 = vunpack.c.h.b16 %v3689
        %v3836 = vunpack.c.l.b16 %v3690
        %v3837 = vunpack.c.h.b16 %v3690
        %v3838 = vunpack.c.l.b16 %v3691
        %v3839 = vunpack.c.h.b16 %v3691
        %v3840 = vunpack.c.l.b16 %v3692
        %v3841 = vunpack.c.h.b16 %v3692
        %v3842 = vunpack.c.l.b16 %v3693
        %v3843 = vunpack.c.h.b16 %v3693
        %v3844 = vunpack.c.l.b16 %v3694
        %v3845 = vunpack.c.h.b16 %v3694
        %v3846 = vunpack.c.l.b16 %v3695
        %v3847 = vunpack.c.h.b16 %v3695
        %v3848 = vunpack.c.l.b16 %v3696
        %v3849 = vunpack.c.h.b16 %v3696
        %v3850 = vunpack.c.l.b16 %v3697
        %v3851 = vunpack.c.h.b16 %v3697
        %v3852 = vunpack.c.l.b16 %v3698
        %v3853 = vunpack.c.h.b16 %v3698
        %v3854 = vunpack.c.l.b16 %v3699
        %v3855 = vunpack.c.h.b16 %v3699
        %v3856 = vunpack.c.l.b16 %v3700
        %v3857 = vunpack.c.h.b16 %v3700
        %v3858 = vunpack.c.l.b16 %v3701
        %v3859 = vunpack.c.h.b16 %v3701
        %v3860 = vunpack.c.l.b16 %v3702
        %v3861 = vunpack.c.h.b16 %v3702
        %v3862 = vunpack.c.l.b16 %v3703
        %v3863 = vunpack.c.h.b16 %v3703
        %v3864 = vunpack.c.l.b16 %v3704
        %v3865 = vunpack.c.h.b16 %v3704
        %v3866 = vunpack.c.l.b16 %v3705
        %v3867 = vunpack.c.h.b16 %v3705
        %v3868 = vunpack.c.l.b16 %v3706
        %v3869 = vunpack.c.h.b16 %v3706
        %v3870 = vunpack.c.l.b16 %v3707
        %v3871 = vunpack.c.h.b16 %v3707
        %v3872 = vunpack.c.l.b16 %v3708
        %v3873 = vunpack.c.h.b16 %v3708
        %v3874 = vunpack.c.l.b16 %v3709
        %v3875 = vunpack.c.h.b16 %v3709
        %v3876 = vunpack.c.l.b16 %v3710
        %v3877 = vunpack.c.h.b16 %v3710
        %v3878 = vunpack.c.l.b16 %v3711
        %v3879 = vunpack.c.h.b16 %v3711
        %v3880 = vunpack.c.l.b16 %v3712
        %v3881 = vunpack.c.h.b16 %v3712
        %v3882 = vunpack.c.l.b16 %v3713
        %v3883 = vunpack.c.h.b16 %v3713
        %v3884 = vunpack.c.l.b16 %v3714
        %v3885 = vunpack.c.h.b16 %v3714
        %v3886 = vunpack.c.l.b16 %v3715
        %v3887 = vunpack.c.h.b16 %v3715
        %v3888 = vunpack.c.l.b16 %v3716
        %v3889 = vunpack.c.h.b16 %v3716
        %v3890 = vunpack.c.l.b16 %v3717
        %v3891 = vunpack.c.h.b16 %v3717
        %v3892 = vunpack.c.l.b16 %v3718
        %v3893 = vunpack.c.h.b16 %v3718
        %v3894 = vunpack.c.l.b16 %v3719
        %v3895 = vunpack.c.h.b16 %v3719
        %v3896 = vunpack.c.l.b16 %v3720
        %v3897 = vunpack.c.h.b16 %v3720
        %v3898 = vunpack.c.l.b16 %v3721
        %v3899 = vunpack.c.h.b16 %v3721
        %v3900 = vunpack.c.l.b16 %v3722
        %v3901 = vunpack.c.h.b16 %v3722
        %v3902 = vunpack.c.l.b16 %v3723
        %v3903 = vunpack.c.h.b16 %v3723
        %v3904 = vunpack.c.l.b16 %v3724
        %v3905 = vunpack.c.h.b16 %v3724
        %v3906 = vunpack.c.l.b16 %v3725
        %v3907 = vunpack.c.h.b16 %v3725
        %v3908 = vunpack.c.l.b16 %v3726
        %v3909 = vunpack.c.h.b16 %v3726
        %v3910 = vunpack.c.l.b16 %v3727
        %v3911 = vunpack.c.h.b16 %v3727
        %v3912 = vunpack.c.l.b16 %v3728
        %v3913 = vunpack.c.h.b16 %v3728
        %v3914 = vunpack.c.l.b16 %v3729
        %v3915 = vunpack.c.h.b16 %v3729
        %v3916 = vunpack.c.l.b16 %v3730
        %v3917 = vunpack.c.h.b16 %v3730
        %v3918 = vunpack.c.l.b16 %v3731
        %v3919 = vunpack.c.h.b16 %v3731
        %v3920 = vunpack.c.l.b16 %v3732
        %v3921 = vunpack.c.h.b16 %v3732
        %v3922 = vunpack.c.l.b16 %v3733
        %v3923 = vunpack.c.h.b16 %v3733
        %v3924 = vunpack.c.l.b16 %v3734
        %v3925 = vunpack.c.h.b16 %v3734
        %v3926 = vunpack.c.l.b16 %v3735
        %v3927 = vunpack.c.h.b16 %v3735
        %v3928 = vpack.c.b16 %v3804, %v3800
        %v3929 = vpack.c.b16 %v3805, %v3801
        %v3930 = vpack.c.b16 %v3806, %v3802
        %v3931 = vpack.c.b16 %v3807, %v3803
        %v3932 = vpack.c.b16 %v3812, %v3808
        %v3933 = vpack.c.b16 %v3813, %v3809
        %v3934 = vpack.c.b16 %v3814, %v3810
        %v3935 = vpack.c.b16 %v3815, %v3811
        %v3936 = vpack.c.b16 %v3820, %v3816
        %v3937 = vpack.c.b16 %v3821, %v3817
        %v3938 = vpack.c.b16 %v3822, %v3818
        %v3939 = vpack.c.b16 %v3823, %v3819
        %v3940 = vpack.c.b16 %v3828, %v3824
        %v3941 = vpack.c.b16 %v3829, %v3825
        %v3942 = vpack.c.b16 %v3830, %v3826
        %v3943 = vpack.c.b16 %v3831, %v3827
        %v3944 = vpack.c.b16 %v3836, %v3832
        %v3945 = vpack.c.b16 %v3837, %v3833
        %v3946 = vpack.c.b16 %v3838, %v3834
        %v3947 = vpack.c.b16 %v3839, %v3835
        %v3948 = vpack.c.b16 %v3844, %v3840
        %v3949 = vpack.c.b16 %v3845, %v3841
        %v3950 = vpack.c.b16 %v3846, %v3842
        %v3951 = vpack.c.b16 %v3847, %v3843
        %v3952 = vpack.c.b16 %v3852, %v3848
        %v3953 = vpack.c.b16 %v3853, %v3849
        %v3954 = vpack.c.b16 %v3854, %v3850
        %v3955 = vpack.c.b16 %v3855, %v3851
        %v3956 = vpack.c.b16 %v3860, %v3856
        %v3957 = vpack.c.b16 %v3861, %v3857
        %v3958 = vpack.c.b16 %v3862, %v3858
        %v3959 = vpack.c.b16 %v3863, %v3859
        %v3960 = vpack.c.b16 %v3868, %v3864
        %v3961 = vpack.c.b16 %v3869, %v3865
        %v3962 = vpack.c.b16 %v3870, %v3866
        %v3963 = vpack.c.b16 %v3871, %v3867
        %v3964 = vpack.c.b16 %v3876, %v3872
        %v3965 = vpack.c.b16 %v3877, %v3873
        %v3966 = vpack.c.b16 %v3878, %v3874
        %v3967 = vpack.c.b16 %v3879, %v3875
        %v3968 = vpack.c.b16 %v3884, %v3880
        %v3969 = vpack.c.b16 %v3885, %v3881
        %v3970 = vpack.c.b16 %v3886, %v3882
        %v3971 = vpack.c.b16 %v3887, %v3883
        %v3972 = vpack.c.b16 %v3892, %v3888
        %v3973 = vpack.c.b16 %v3893, %v3889
        %v3974 = vpack.c.b16 %v3894, %v3890
        %v3975 = vpack.c.b16 %v3895, %v3891
        %v3976 = vpack.c.b16 %v3900, %v3896
        %v3977 = vpack.c.b16 %v3901, %v3897
        %v3978 = vpack.c.b16 %v3902, %v3898
        %v3979 = vpack.c.b16 %v3903, %v3899
        %v3980 = vpack.c.b16 %v3908, %v3904
        %v3981 = vpack.c.b16 %v3909, %v3905
        %v3982 = vpack.c.b16 %v3910, %v3906
        %v3983 = vpack.c.b16 %v3911, %v3907
        %v3984 = vpack.c.b16 %v3916, %v3912
        %v3985 = vpack.c.b16 %v3917, %v3913
        %v3986 = vpack.c.b16 %v3918, %v3914
        %v3987 = vpack.c.b16 %v3919, %v3915
        %v3988 = vpack.c.b16 %v3924, %v3920
        %v3989 = vpack.c.b16 %v3925, %v3921
        %v3990 = vpack.c.b16 %v3926, %v3922
        %v3991 = vpack.c.b16 %v3927, %v3923
        %4056 = vmatprep.subr.bf16.mxu0 %v3609
        %4057 = vmatpush1.bf16.msra.mxu0 %v3608
        %4058 = vmatprep.subr.bf16.mxu0 %v3611
        %4059 = vmatpush1.bf16.msra.mxu0 %v3610
        %4060 = vmatprep.subr.bf16.mxu0 %v3613
        %4061 = vmatpush1.bf16.msra.mxu0 %v3612
        %4062 = vmatprep.subr.bf16.mxu0 %v3615
        %4063 = vmatpush1.bf16.msra.mxu0 %v3614
        %4064 = vmatprep.subr.bf16.mxu0 %v3617
        %4065 = vmatpush1.bf16.msra.mxu0 %v3616
        %4066 = vmatprep.subr.bf16.mxu0 %v3619
        %4067 = vmatpush1.bf16.msra.mxu0 %v3618
        %4068 = vmatprep.subr.bf16.mxu0 %v3621
        %4069 = vmatpush1.bf16.msra.mxu0 %v3620
        %4070 = vmatprep.subr.bf16.mxu0 %v3623
        %4071 = vmatpush1.bf16.msra.mxu0 %v3622
        %4072 = vmatprep.subr.bf16.mxu0 %v3625
        %4073 = vmatpush1.bf16.msra.mxu0 %v3624
        %4074 = vmatprep.subr.bf16.mxu0 %v3627
        %4075 = vmatpush1.bf16.msra.mxu0 %v3626
        %4076 = vmatprep.subr.bf16.mxu0 %v3629
        %4077 = vmatpush1.bf16.msra.mxu0 %v3628
        %4078 = vmatprep.subr.bf16.mxu0 %v3631
        %4079 = vmatpush1.bf16.msra.mxu0 %v3630
        %4080 = vmatprep.subr.bf16.mxu0 %v3633
        %4081 = vmatpush1.bf16.msra.mxu0 %v3632
        %4082 = vmatprep.subr.bf16.mxu0 %v3635
        %4083 = vmatpush1.bf16.msra.mxu0 %v3634
        %4084 = vmatprep.subr.bf16.mxu0 %v3637
        %4085 = vmatpush1.bf16.msra.mxu0 %v3636
        %4086 = vmatprep.subr.bf16.mxu0 %v3639
        %4087 = vmatpush1.bf16.msra.mxu0 %v3638
        %4088 = vmatprep.mubr.bf16.mxu0 %v3929
        %4089 = vmatmul.mubr.bf16.gmra.mrb[0].mxu0 %v3928
        %v4090 = vpop.f32.mrb[0].mxu0
        %v4091 = vadd.f32 0.0, %v4090
        %v4092 = vpop.f32.mrb[0].mxu0
        %v4093 = vadd.f32 0.0, %v4092
        %v4094 = vpop.f32.mrb[0].mxu0
        %v4095 = vadd.f32 0.0, %v4094
        %v4096 = vpop.f32.mrb[0].mxu0
        %v4097 = vadd.f32 0.0, %v4096
        %4098 = vmatprep.mubr.bf16.mxu0 %v3933
        %4099 = vmatmul.mubr.bf16.gmra.mrb[0].mxu0 %v3932
        %v4100 = vpop.f32.mrb[0].mxu0
        %v4101 = vadd.f32 0.0, %v4100
        %v4102 = vpop.f32.mrb[0].mxu0
        %v4103 = vadd.f32 0.0, %v4102
        %v4104 = vpop.f32.mrb[0].mxu0
        %v4105 = vadd.f32 0.0, %v4104
        %v4106 = vpop.f32.mrb[0].mxu0
        %v4107 = vadd.f32 0.0, %v4106
        %4108 = vmatprep.mubr.bf16.mxu0 %v3937
        %4109 = vmatmul.mubr.bf16.gmra.mrb[0].mxu0 %v3936
        %v4110 = vpop.f32.mrb[0].mxu0
        %v4111 = vadd.f32 0.0, %v4110
        %v4112 = vpop.f32.mrb[0].mxu0
        %v4113 = vadd.f32 0.0, %v4112
        %v4114 = vpop.f32.mrb[0].mxu0
        %v4115 = vadd.f32 0.0, %v4114
        %v4116 = vpop.f32.mrb[0].mxu0
        %v4117 = vadd.f32 0.0, %v4116
        %4118 = vmatprep.mubr.bf16.mxu0 %v3941
        %4119 = vmatmul.mubr.bf16.gmra.mrb[0].mxu0 %v3940
        %v4120 = vpop.f32.mrb[0].mxu0
        %v4121 = vadd.f32 0.0, %v4120
        %v4122 = vpop.f32.mrb[0].mxu0
        %v4123 = vadd.f32 0.0, %v4122
        %v4124 = vpop.f32.mrb[0].mxu0
        %v4125 = vadd.f32 0.0, %v4124
        %v4126 = vpop.f32.mrb[0].mxu0
        %v4127 = vadd.f32 0.0, %v4126
        %4128 = vmatprep.mubr.bf16.mxu0 %v3945
        %4129 = vmatmul.mubr.bf16.gmra.mrb[0].mxu0 %v3944
        %v4130 = vpop.f32.mrb[0].mxu0
        %v4131 = vadd.f32 0.0, %v4130
        %v4132 = vpop.f32.mrb[0].mxu0
        %v4133 = vadd.f32 0.0, %v4132
        %v4134 = vpop.f32.mrb[0].mxu0
        %v4135 = vadd.f32 0.0, %v4134
        %v4136 = vpop.f32.mrb[0].mxu0
        %v4137 = vadd.f32 0.0, %v4136
        %4138 = vmatprep.mubr.bf16.mxu0 %v3949
        %4139 = vmatmul.mubr.bf16.gmra.mrb[0].mxu0 %v3948
        %v4140 = vpop.f32.mrb[0].mxu0
        %v4141 = vadd.f32 0.0, %v4140
        %v4142 = vpop.f32.mrb[0].mxu0
        %v4143 = vadd.f32 0.0, %v4142
        %v4144 = vpop.f32.mrb[0].mxu0
        %v4145 = vadd.f32 0.0, %v4144
        %v4146 = vpop.f32.mrb[0].mxu0
        %v4147 = vadd.f32 0.0, %v4146
        %4148 = vmatprep.mubr.bf16.mxu0 %v3953
        %4149 = vmatmul.mubr.bf16.gmra.mrb[0].mxu0 %v3952
        %v4150 = vpop.f32.mrb[0].mxu0
        %v4151 = vadd.f32 0.0, %v4150
        %v4152 = vpop.f32.mrb[0].mxu0
        %v4153 = vadd.f32 0.0, %v4152
        %v4154 = vpop.f32.mrb[0].mxu0
        %v4155 = vadd.f32 0.0, %v4154
        %v4156 = vpop.f32.mrb[0].mxu0
        %v4157 = vadd.f32 0.0, %v4156
        %4158 = vmatprep.mubr.bf16.mxu0 %v3957
        %4159 = vmatmul.mubr.bf16.gmra.mrb[0].mxu0 %v3956
        %v4160 = vpop.f32.mrb[0].mxu0
        %v4161 = vadd.f32 0.0, %v4160
        %v4162 = vpop.f32.mrb[0].mxu0
        %v4163 = vadd.f32 0.0, %v4162
        %v4164 = vpop.f32.mrb[0].mxu0
        %v4165 = vadd.f32 0.0, %v4164
        %v4166 = vpop.f32.mrb[0].mxu0
        %v4167 = vadd.f32 0.0, %v4166
        %4168 = vmatprep.mubr.bf16.mxu0 %v3961
        %4169 = vmatmul.mubr.bf16.gmra.mrb[0].mxu0 %v3960
        %v4170 = vpop.f32.mrb[0].mxu0
        %v4171 = vadd.f32 0.0, %v4170
        %v4172 = vpop.f32.mrb[0].mxu0
        %v4173 = vadd.f32 0.0, %v4172
        %v4174 = vpop.f32.mrb[0].mxu0
        %v4175 = vadd.f32 0.0, %v4174
        %v4176 = vpop.f32.mrb[0].mxu0
        %v4177 = vadd.f32 0.0, %v4176
        %4178 = vmatprep.mubr.bf16.mxu0 %v3965
        %4179 = vmatmul.mubr.bf16.gmra.mrb[0].mxu0 %v3964
        %v4180 = vpop.f32.mrb[0].mxu0
        %v4181 = vadd.f32 0.0, %v4180
        %v4182 = vpop.f32.mrb[0].mxu0
        %v4183 = vadd.f32 0.0, %v4182
        %v4184 = vpop.f32.mrb[0].mxu0
        %v4185 = vadd.f32 0.0, %v4184
        %v4186 = vpop.f32.mrb[0].mxu0
        %v4187 = vadd.f32 0.0, %v4186
        %4188 = vmatprep.mubr.bf16.mxu0 %v3969
        %4189 = vmatmul.mubr.bf16.gmra.mrb[0].mxu0 %v3968
        %v4190 = vpop.f32.mrb[0].mxu0
        %v4191 = vadd.f32 0.0, %v4190
        %v4192 = vpop.f32.mrb[0].mxu0
        %v4193 = vadd.f32 0.0, %v4192
        %v4194 = vpop.f32.mrb[0].mxu0
        %v4195 = vadd.f32 0.0, %v4194
        %v4196 = vpop.f32.mrb[0].mxu0
        %v4197 = vadd.f32 0.0, %v4196
        %4198 = vmatprep.mubr.bf16.mxu0 %v3973
        %4199 = vmatmul.mubr.bf16.gmra.mrb[0].mxu0 %v3972
        %v4200 = vpop.f32.mrb[0].mxu0
        %v4201 = vadd.f32 0.0, %v4200
        %v4202 = vpop.f32.mrb[0].mxu0
        %v4203 = vadd.f32 0.0, %v4202
        %v4204 = vpop.f32.mrb[0].mxu0
        %v4205 = vadd.f32 0.0, %v4204
        %v4206 = vpop.f32.mrb[0].mxu0
        %v4207 = vadd.f32 0.0, %v4206
        %4208 = vmatprep.mubr.bf16.mxu0 %v3977
        %4209 = vmatmul.mubr.bf16.gmra.mrb[0].mxu0 %v3976
        %v4210 = vpop.f32.mrb[0].mxu0
        %v4211 = vadd.f32 0.0, %v4210
        %v4212 = vpop.f32.mrb[0].mxu0
        %v4213 = vadd.f32 0.0, %v4212
        %v4214 = vpop.f32.mrb[0].mxu0
        %v4215 = vadd.f32 0.0, %v4214
        %v4216 = vpop.f32.mrb[0].mxu0
        %v4217 = vadd.f32 0.0, %v4216
        %4218 = vmatprep.mubr.bf16.mxu0 %v3981
        %4219 = vmatmul.mubr.bf16.gmra.mrb[0].mxu0 %v3980
        %v4220 = vpop.f32.mrb[0].mxu0
        %v4221 = vadd.f32 0.0, %v4220
        %v4222 = vpop.f32.mrb[0].mxu0
        %v4223 = vadd.f32 0.0, %v4222
        %v4224 = vpop.f32.mrb[0].mxu0
        %v4225 = vadd.f32 0.0, %v4224
        %v4226 = vpop.f32.mrb[0].mxu0
        %v4227 = vadd.f32 0.0, %v4226
        %4228 = vmatprep.mubr.bf16.mxu0 %v3985
        %4229 = vmatmul.mubr.bf16.gmra.mrb[0].mxu0 %v3984
        %v4230 = vpop.f32.mrb[0].mxu0
        %v4231 = vadd.f32 0.0, %v4230
        %v4232 = vpop.f32.mrb[0].mxu0
        %v4233 = vadd.f32 0.0, %v4232
        %v4234 = vpop.f32.mrb[0].mxu0
        %v4235 = vadd.f32 0.0, %v4234
        %v4236 = vpop.f32.mrb[0].mxu0
        %v4237 = vadd.f32 0.0, %v4236
        %4238 = vmatprep.mubr.bf16.mxu0 %v3989
        %4239 = vmatmul.mubr.bf16.gmra.mrb[0].mxu0 %v3988
        %v4240 = vpop.f32.mrb[0].mxu0
        %v4241 = vadd.f32 0.0, %v4240
        %v4242 = vpop.f32.mrb[0].mxu0
        %v4243 = vadd.f32 0.0, %v4242
        %v4244 = vpop.f32.mrb[0].mxu0
        %v4245 = vadd.f32 0.0, %v4244
        %v4246 = vpop.f32.mrb[0].mxu0
        %v4247 = vadd.f32 0.0, %v4246
        %4248 = vdwg.mxu0
        %4249 = vmatprep.subr.bf16.mxu0 %v3641
        %4250 = vmatpush1.bf16.msra.mxu0 %v3640
        %4251 = vmatprep.subr.bf16.mxu0 %v3643
        %4252 = vmatpush1.bf16.msra.mxu0 %v3642
        %4253 = vmatprep.subr.bf16.mxu0 %v3645
        %4254 = vmatpush1.bf16.msra.mxu0 %v3644
        %4255 = vmatprep.subr.bf16.mxu0 %v3647
        %4256 = vmatpush1.bf16.msra.mxu0 %v3646
        %4257 = vmatprep.subr.bf16.mxu0 %v3649
        %4258 = vmatpush1.bf16.msra.mxu0 %v3648
        %4259 = vmatprep.subr.bf16.mxu0 %v3651
        %4260 = vmatpush1.bf16.msra.mxu0 %v3650
        %4261 = vmatprep.subr.bf16.mxu0 %v3653
        %4262 = vmatpush1.bf16.msra.mxu0 %v3652
        %4263 = vmatprep.subr.bf16.mxu0 %v3655
        %4264 = vmatpush1.bf16.msra.mxu0 %v3654
        %4265 = vmatprep.subr.bf16.mxu0 %v3657
        %4266 = vmatpush1.bf16.msra.mxu0 %v3656
        %4267 = vmatprep.subr.bf16.mxu0 %v3659
        %4268 = vmatpush1.bf16.msra.mxu0 %v3658
        %4269 = vmatprep.subr.bf16.mxu0 %v3661
        %4270 = vmatpush1.bf16.msra.mxu0 %v3660
        %4271 = vmatprep.subr.bf16.mxu0 %v3663
        %4272 = vmatpush1.bf16.msra.mxu0 %v3662
        %4273 = vmatprep.subr.bf16.mxu0 %v3665
        %4274 = vmatpush1.bf16.msra.mxu0 %v3664
        %4275 = vmatprep.subr.bf16.mxu0 %v3667
        %4276 = vmatpush1.bf16.msra.mxu0 %v3666
        %4277 = vmatprep.subr.bf16.mxu0 %v3669
        %4278 = vmatpush1.bf16.msra.mxu0 %v3668
        %4279 = vmatprep.subr.bf16.mxu0 %v3671
        %4280 = vmatpush1.bf16.msra.mxu0 %v3670
        %4281 = vmatprep.mubr.bf16.mxu0 %v3931
        %4282 = vmatmul.mubr.bf16.gmra.mrb[0].mxu0 %v3930
        %v4283 = vpop.f32.mrb[0].mxu0
        %v4284 = vadd.f32 %v4091, %v4283
        %v4285 = vpop.f32.mrb[0].mxu0
        %v4286 = vadd.f32 %v4093, %v4285
        %v4287 = vpop.f32.mrb[0].mxu0
        %v4288 = vadd.f32 %v4095, %v4287
        %v4289 = vpop.f32.mrb[0].mxu0
        %v4290 = vadd.f32 %v4097, %v4289
        %4291 = vmatprep.mubr.bf16.mxu0 %v3935
        %4292 = vmatmul.mubr.bf16.gmra.mrb[0].mxu0 %v3934
        %v4293 = vpop.f32.mrb[0].mxu0
        %v4294 = vadd.f32 %v4101, %v4293
        %v4295 = vpop.f32.mrb[0].mxu0
        %v4296 = vadd.f32 %v4103, %v4295
        %v4297 = vpop.f32.mrb[0].mxu0
        %v4298 = vadd.f32 %v4105, %v4297
        %v4299 = vpop.f32.mrb[0].mxu0
        %v4300 = vadd.f32 %v4107, %v4299
        %4301 = vmatprep.mubr.bf16.mxu0 %v3939
        %4302 = vmatmul.mubr.bf16.gmra.mrb[0].mxu0 %v3938
        %v4303 = vpop.f32.mrb[0].mxu0
        %v4304 = vadd.f32 %v4111, %v4303
        %v4305 = vpop.f32.mrb[0].mxu0
        %v4306 = vadd.f32 %v4113, %v4305
        %v4307 = vpop.f32.mrb[0].mxu0
        %v4308 = vadd.f32 %v4115, %v4307
        %v4309 = vpop.f32.mrb[0].mxu0
        %v4310 = vadd.f32 %v4117, %v4309
        %4311 = vmatprep.mubr.bf16.mxu0 %v3943
        %4312 = vmatmul.mubr.bf16.gmra.mrb[0].mxu0 %v3942
        %v4313 = vpop.f32.mrb[0].mxu0
        %v4314 = vadd.f32 %v4121, %v4313
        %v4315 = vpop.f32.mrb[0].mxu0
        %v4316 = vadd.f32 %v4123, %v4315
        %v4317 = vpop.f32.mrb[0].mxu0
        %v4318 = vadd.f32 %v4125, %v4317
        %v4319 = vpop.f32.mrb[0].mxu0
        %v4320 = vadd.f32 %v4127, %v4319
        %4321 = vmatprep.mubr.bf16.mxu0 %v3947
        %4322 = vmatmul.mubr.bf16.gmra.mrb[0].mxu0 %v3946
        %v4323 = vpop.f32.mrb[0].mxu0
        %v4324 = vadd.f32 %v4131, %v4323
        %v4325 = vpop.f32.mrb[0].mxu0
        %v4326 = vadd.f32 %v4133, %v4325
        %v4327 = vpop.f32.mrb[0].mxu0
        %v4328 = vadd.f32 %v4135, %v4327
        %v4329 = vpop.f32.mrb[0].mxu0
        %v4330 = vadd.f32 %v4137, %v4329
        %4331 = vmatprep.mubr.bf16.mxu0 %v3951
        %4332 = vmatmul.mubr.bf16.gmra.mrb[0].mxu0 %v3950
        %v4333 = vpop.f32.mrb[0].mxu0
        %v4334 = vadd.f32 %v4141, %v4333
        %v4335 = vpop.f32.mrb[0].mxu0
        %v4336 = vadd.f32 %v4143, %v4335
        %v4337 = vpop.f32.mrb[0].mxu0
        %v4338 = vadd.f32 %v4145, %v4337
        %v4339 = vpop.f32.mrb[0].mxu0
        %v4340 = vadd.f32 %v4147, %v4339
        %4341 = vmatprep.mubr.bf16.mxu0 %v3955
        %4342 = vmatmul.mubr.bf16.gmra.mrb[0].mxu0 %v3954
        %v4343 = vpop.f32.mrb[0].mxu0
        %v4344 = vadd.f32 %v4151, %v4343
        %v4345 = vpop.f32.mrb[0].mxu0
        %v4346 = vadd.f32 %v4153, %v4345
        %v4347 = vpop.f32.mrb[0].mxu0
        %v4348 = vadd.f32 %v4155, %v4347
        %v4349 = vpop.f32.mrb[0].mxu0
        %v4350 = vadd.f32 %v4157, %v4349
        %4351 = vmatprep.mubr.bf16.mxu0 %v3959
        %4352 = vmatmul.mubr.bf16.gmra.mrb[0].mxu0 %v3958
        %v4353 = vpop.f32.mrb[0].mxu0
        %v4354 = vadd.f32 %v4161, %v4353
        %v4355 = vpop.f32.mrb[0].mxu0
        %v4356 = vadd.f32 %v4163, %v4355
        %v4357 = vpop.f32.mrb[0].mxu0
        %v4358 = vadd.f32 %v4165, %v4357
        %v4359 = vpop.f32.mrb[0].mxu0
        %v4360 = vadd.f32 %v4167, %v4359
        %4361 = vmatprep.mubr.bf16.mxu0 %v3963
        %4362 = vmatmul.mubr.bf16.gmra.mrb[0].mxu0 %v3962
        %v4363 = vpop.f32.mrb[0].mxu0
        %v4364 = vadd.f32 %v4171, %v4363
        %v4365 = vpop.f32.mrb[0].mxu0
        %v4366 = vadd.f32 %v4173, %v4365
        %v4367 = vpop.f32.mrb[0].mxu0
        %v4368 = vadd.f32 %v4175, %v4367
        %v4369 = vpop.f32.mrb[0].mxu0
        %v4370 = vadd.f32 %v4177, %v4369
        %4371 = vmatprep.mubr.bf16.mxu0 %v3967
        %4372 = vmatmul.mubr.bf16.gmra.mrb[0].mxu0 %v3966
        %v4373 = vpop.f32.mrb[0].mxu0
        %v4374 = vadd.f32 %v4181, %v4373
        %v4375 = vpop.f32.mrb[0].mxu0
        %v4376 = vadd.f32 %v4183, %v4375
        %v4377 = vpop.f32.mrb[0].mxu0
        %v4378 = vadd.f32 %v4185, %v4377
        %v4379 = vpop.f32.mrb[0].mxu0
        %v4380 = vadd.f32 %v4187, %v4379
        %4381 = vmatprep.mubr.bf16.mxu0 %v3971
        %4382 = vmatmul.mubr.bf16.gmra.mrb[0].mxu0 %v3970
        %v4383 = vpop.f32.mrb[0].mxu0
        %v4384 = vadd.f32 %v4191, %v4383
        %v4385 = vpop.f32.mrb[0].mxu0
        %v4386 = vadd.f32 %v4193, %v4385
        %v4387 = vpop.f32.mrb[0].mxu0
        %v4388 = vadd.f32 %v4195, %v4387
        %v4389 = vpop.f32.mrb[0].mxu0
        %v4390 = vadd.f32 %v4197, %v4389
        %4391 = vmatprep.mubr.bf16.mxu0 %v3975
        %4392 = vmatmul.mubr.bf16.gmra.mrb[0].mxu0 %v3974
        %v4393 = vpop.f32.mrb[0].mxu0
        %v4394 = vadd.f32 %v4201, %v4393
        %v4395 = vpop.f32.mrb[0].mxu0
        %v4396 = vadd.f32 %v4203, %v4395
        %v4397 = vpop.f32.mrb[0].mxu0
        %v4398 = vadd.f32 %v4205, %v4397
        %v4399 = vpop.f32.mrb[0].mxu0
        %v4400 = vadd.f32 %v4207, %v4399
        %4401 = vmatprep.mubr.bf16.mxu0 %v3979
        %4402 = vmatmul.mubr.bf16.gmra.mrb[0].mxu0 %v3978
        %v4403 = vpop.f32.mrb[0].mxu0
        %v4404 = vadd.f32 %v4211, %v4403
        %v4405 = vpop.f32.mrb[0].mxu0
        %v4406 = vadd.f32 %v4213, %v4405
        %v4407 = vpop.f32.mrb[0].mxu0
        %v4408 = vadd.f32 %v4215, %v4407
        %v4409 = vpop.f32.mrb[0].mxu0
        %v4410 = vadd.f32 %v4217, %v4409
        %4411 = vmatprep.mubr.bf16.mxu0 %v3983
        %4412 = vmatmul.mubr.bf16.gmra.mrb[0].mxu0 %v3982
        %v4413 = vpop.f32.mrb[0].mxu0
        %v4414 = vadd.f32 %v4221, %v4413
        %v4415 = vpop.f32.mrb[0].mxu0
        %v4416 = vadd.f32 %v4223, %v4415
        %v4417 = vpop.f32.mrb[0].mxu0
        %v4418 = vadd.f32 %v4225, %v4417
        %v4419 = vpop.f32.mrb[0].mxu0
        %v4420 = vadd.f32 %v4227, %v4419
        %4421 = vmatprep.mubr.bf16.mxu0 %v3987
        %4422 = vmatmul.mubr.bf16.gmra.mrb[0].mxu0 %v3986
        %v4423 = vpop.f32.mrb[0].mxu0
        %v4424 = vadd.f32 %v4231, %v4423
        %v4425 = vpop.f32.mrb[0].mxu0
        %v4426 = vadd.f32 %v4233, %v4425
        %v4427 = vpop.f32.mrb[0].mxu0
        %v4428 = vadd.f32 %v4235, %v4427
        %v4429 = vpop.f32.mrb[0].mxu0
        %v4430 = vadd.f32 %v4237, %v4429
        %4431 = vmatprep.mubr.bf16.mxu0 %v3991
        %4432 = vmatmul.mubr.bf16.gmra.mrb[0].mxu0 %v3990
        %v4433 = vpop.f32.mrb[0].mxu0
        %v4434 = vadd.f32 %v4241, %v4433
        %v4435 = vpop.f32.mrb[0].mxu0
        %v4436 = vadd.f32 %v4243, %v4435
        %v4437 = vpop.f32.mrb[0].mxu0
        %v4438 = vadd.f32 %v4245, %v4437
        %v4439 = vpop.f32.mrb[0].mxu0
        %v4440 = vadd.f32 %v4247, %v4439
        %4441 = vdwg.mxu0
        %v4442 = vpack.c.bf16 %v4288, %v4284
        %v4443 = vpack.c.bf16 %v4290, %v4286
        %v4444 = vpack.c.bf16 %v4298, %v4294
        %v4445 = vpack.c.bf16 %v4300, %v4296
        %v4446 = vpack.c.bf16 %v4308, %v4304
        %v4447 = vpack.c.bf16 %v4310, %v4306
        %v4448 = vpack.c.bf16 %v4318, %v4314
        %v4449 = vpack.c.bf16 %v4320, %v4316
        %v4450 = vpack.c.bf16 %v4328, %v4324
        %v4451 = vpack.c.bf16 %v4330, %v4326
        %v4452 = vpack.c.bf16 %v4338, %v4334
        %v4453 = vpack.c.bf16 %v4340, %v4336
        %v4454 = vpack.c.bf16 %v4348, %v4344
        %v4455 = vpack.c.bf16 %v4350, %v4346
        %v4456 = vpack.c.bf16 %v4358, %v4354
        %v4457 = vpack.c.bf16 %v4360, %v4356
        %v4458 = vpack.c.bf16 %v4368, %v4364
        %v4459 = vpack.c.bf16 %v4370, %v4366
        %v4460 = vpack.c.bf16 %v4378, %v4374
        %v4461 = vpack.c.bf16 %v4380, %v4376
        %v4462 = vpack.c.bf16 %v4388, %v4384
        %v4463 = vpack.c.bf16 %v4390, %v4386
        %v4464 = vpack.c.bf16 %v4398, %v4394
        %v4465 = vpack.c.bf16 %v4400, %v4396
        %v4466 = vpack.c.bf16 %v4408, %v4404
        %v4467 = vpack.c.bf16 %v4410, %v4406
        %v4468 = vpack.c.bf16 %v4418, %v4414
        %v4469 = vpack.c.bf16 %v4420, %v4416
        %v4470 = vpack.c.bf16 %v4428, %v4424
        %v4471 = vpack.c.bf16 %v4430, %v4426
        %v4472 = vpack.c.bf16 %v4438, %v4434
        %v4473 = vpack.c.bf16 %v4440, %v4436
        %4475 = vset.pattern.permute.xlu0 0
        %4476 = vperm.xlu0 %4475, %v725
        %v4477 = vpop.permute.xlu0 %4476
        %4480 = vset.pattern.permute.xlu0 0
        %4481 = vperm.xlu0 %4480, %v726
        %v4482 = vpop.permute.xlu0 %4481
        %4485 = vset.pattern.permute.xlu0 0
        %4486 = vperm.xlu0 %4485, %v727
        %v4487 = vpop.permute.xlu0 %4486
        %4490 = vset.pattern.permute.xlu0 0
        %4491 = vperm.xlu0 %4490, %v728
        %v4492 = vpop.permute.xlu0 %4491
        %4495 = vset.pattern.permute.xlu0 0
        %4496 = vperm.xlu0 %4495, %v729
        %v4497 = vpop.permute.xlu0 %4496
        %4500 = vset.pattern.permute.xlu0 0
        %4501 = vperm.xlu0 %4500, %v730
        %v4502 = vpop.permute.xlu0 %4501
        %4505 = vset.pattern.permute.xlu0 0
        %4506 = vperm.xlu0 %4505, %v731
        %v4507 = vpop.permute.xlu0 %4506
        %4510 = vset.pattern.permute.xlu0 0
        %4511 = vperm.xlu0 %4510, %v732
        %v4512 = vpop.permute.xlu0 %4511
        %4515 = vset.pattern.permute.xlu0 0
        %4516 = vperm.xlu0 %4515, %v733
        %v4517 = vpop.permute.xlu0 %4516
        %4520 = vset.pattern.permute.xlu0 0
        %4521 = vperm.xlu0 %4520, %v734
        %v4522 = vpop.permute.xlu0 %4521
        %4525 = vset.pattern.permute.xlu0 0
        %4526 = vperm.xlu0 %4525, %v735
        %v4527 = vpop.permute.xlu0 %4526
        %4530 = vset.pattern.permute.xlu0 0
        %4531 = vperm.xlu0 %4530, %v736
        %v4532 = vpop.permute.xlu0 %4531
        %4535 = vset.pattern.permute.xlu0 0
        %4536 = vperm.xlu0 %4535, %v737
        %v4537 = vpop.permute.xlu0 %4536
        %4540 = vset.pattern.permute.xlu0 0
        %4541 = vperm.xlu0 %4540, %v738
        %v4542 = vpop.permute.xlu0 %4541
        %4545 = vset.pattern.permute.xlu0 0
        %4546 = vperm.xlu0 %4545, %v739
        %v4547 = vpop.permute.xlu0 %4546
        %4550 = vset.pattern.permute.xlu0 0
        %4551 = vperm.xlu0 %4550, %v740
        %v4552 = vpop.permute.xlu0 %4551
        %v4554 = vadd.bf16 %v4442, %v4477
        %v4555 = vadd.bf16 %v4443, %v4477
        %v4556 = vadd.bf16 %v4444, %v4482
        %v4557 = vadd.bf16 %v4445, %v4482
        %v4558 = vadd.bf16 %v4446, %v4487
        %v4559 = vadd.bf16 %v4447, %v4487
        %v4560 = vadd.bf16 %v4448, %v4492
        %v4561 = vadd.bf16 %v4449, %v4492
        %v4562 = vadd.bf16 %v4450, %v4497
        %v4563 = vadd.bf16 %v4451, %v4497
        %v4564 = vadd.bf16 %v4452, %v4502
        %v4565 = vadd.bf16 %v4453, %v4502
        %v4566 = vadd.bf16 %v4454, %v4507
        %v4567 = vadd.bf16 %v4455, %v4507
        %v4568 = vadd.bf16 %v4456, %v4512
        %v4569 = vadd.bf16 %v4457, %v4512
        %v4570 = vadd.bf16 %v4458, %v4517
        %v4571 = vadd.bf16 %v4459, %v4517
        %v4572 = vadd.bf16 %v4460, %v4522
        %v4573 = vadd.bf16 %v4461, %v4522
        %v4574 = vadd.bf16 %v4462, %v4527
        %v4575 = vadd.bf16 %v4463, %v4527
        %v4576 = vadd.bf16 %v4464, %v4532
        %v4577 = vadd.bf16 %v4465, %v4532
        %v4578 = vadd.bf16 %v4466, %v4537
        %v4579 = vadd.bf16 %v4467, %v4537
        %v4580 = vadd.bf16 %v4468, %v4542
        %v4581 = vadd.bf16 %v4469, %v4542
        %v4582 = vadd.bf16 %v4470, %v4547
        %v4583 = vadd.bf16 %v4471, %v4547
        %v4584 = vadd.bf16 %v4472, %v4552
        %v4585 = vadd.bf16 %v4473, %v4552
        %v4586 = vmax.bf16 %v4554, 0
        %v4587 = vmax.bf16 %v4555, 0
        %v4588 = vmax.bf16 %v4556, 0
        %v4589 = vmax.bf16 %v4557, 0
        %v4590 = vmax.bf16 %v4558, 0
        %v4591 = vmax.bf16 %v4559, 0
        %v4592 = vmax.bf16 %v4560, 0
        %v4593 = vmax.bf16 %v4561, 0
        %v4594 = vmax.bf16 %v4562, 0
        %v4595 = vmax.bf16 %v4563, 0
        %v4596 = vmax.bf16 %v4564, 0
        %v4597 = vmax.bf16 %v4565, 0
        %v4598 = vmax.bf16 %v4566, 0
        %v4599 = vmax.bf16 %v4567, 0
        %v4600 = vmax.bf16 %v4568, 0
        %v4601 = vmax.bf16 %v4569, 0
        %v4602 = vmax.bf16 %v4570, 0
        %v4603 = vmax.bf16 %v4571, 0
        %v4604 = vmax.bf16 %v4572, 0
        %v4605 = vmax.bf16 %v4573, 0
        %v4606 = vmax.bf16 %v4574, 0
        %v4607 = vmax.bf16 %v4575, 0
        %v4608 = vmax.bf16 %v4576, 0
        %v4609 = vmax.bf16 %v4577, 0
        %v4610 = vmax.bf16 %v4578, 0
        %v4611 = vmax.bf16 %v4579, 0
        %v4612 = vmax.bf16 %v4580, 0
        %v4613 = vmax.bf16 %v4581, 0
        %v4614 = vmax.bf16 %v4582, 0
        %v4615 = vmax.bf16 %v4583, 0
        %v4616 = vmax.bf16 %v4584, 0
        %v4617 = vmax.bf16 %v4585, 0
        %v4618 = vld [vmem:[#allocation10] sm:$0xff]
        %v4619 = vld [vmem:[#allocation10 + $0x8] sm:$0xff]
        %v4620 = vld [vmem:[#allocation10 + $0x10] sm:$0xff]
        %v4621 = vld [vmem:[#allocation10 + $0x18] sm:$0xff]
        %v4622 = vld [vmem:[#allocation10 + $0x20] sm:$0xff]
        %v4623 = vld [vmem:[#allocation10 + $0x28] sm:$0xff]
        %v4624 = vld [vmem:[#allocation10 + $0x30] sm:$0xff]
        %v4625 = vld [vmem:[#allocation10 + $0x38] sm:$0xff]
        %v4626 = vld [vmem:[#allocation10 + $0x40] sm:$0xff]
        %v4627 = vld [vmem:[#allocation10 + $0x48] sm:$0xff]
        %v4628 = vld [vmem:[#allocation10 + $0x50] sm:$0xff]
        %v4629 = vld [vmem:[#allocation10 + $0x58] sm:$0xff]
        %v4630 = vld [vmem:[#allocation10 + $0x60] sm:$0xff]
        %v4631 = vld [vmem:[#allocation10 + $0x68] sm:$0xff]
        %v4632 = vld [vmem:[#allocation10 + $0x70] sm:$0xff]
        %v4633 = vld [vmem:[#allocation10 + $0x78] sm:$0xff]
        %4635 = vset.pattern.permute.xlu0 0
        %4636 = vperm.xlu0 %4635, %v741
        %v4637 = vpop.permute.xlu0 %4636
        %4640 = vset.pattern.permute.xlu0 0
        %4641 = vperm.xlu0 %4640, %v742
        %v4642 = vpop.permute.xlu0 %4641
        %4645 = vset.pattern.permute.xlu0 0
        %4646 = vperm.xlu0 %4645, %v743
        %v4647 = vpop.permute.xlu0 %4646
        %4650 = vset.pattern.permute.xlu0 0
        %4651 = vperm.xlu0 %4650, %v744
        %v4652 = vpop.permute.xlu0 %4651
        %4655 = vset.pattern.permute.xlu0 0
        %4656 = vperm.xlu0 %4655, %v745
        %v4657 = vpop.permute.xlu0 %4656
        %4660 = vset.pattern.permute.xlu0 0
        %4661 = vperm.xlu0 %4660, %v746
        %v4662 = vpop.permute.xlu0 %4661
        %4665 = vset.pattern.permute.xlu0 0
        %4666 = vperm.xlu0 %4665, %v747
        %v4667 = vpop.permute.xlu0 %4666
        %4670 = vset.pattern.permute.xlu0 0
        %4671 = vperm.xlu0 %4670, %v748
        %v4672 = vpop.permute.xlu0 %4671
        %4675 = vset.pattern.permute.xlu0 0
        %4676 = vperm.xlu0 %4675, %v749
        %v4677 = vpop.permute.xlu0 %4676
        %4680 = vset.pattern.permute.xlu0 0
        %4681 = vperm.xlu0 %4680, %v750
        %v4682 = vpop.permute.xlu0 %4681
        %4685 = vset.pattern.permute.xlu0 0
        %4686 = vperm.xlu0 %4685, %v751
        %v4687 = vpop.permute.xlu0 %4686
        %4690 = vset.pattern.permute.xlu0 0
        %4691 = vperm.xlu0 %4690, %v752
        %v4692 = vpop.permute.xlu0 %4691
        %4695 = vset.pattern.permute.xlu0 0
        %4696 = vperm.xlu0 %4695, %v753
        %v4697 = vpop.permute.xlu0 %4696
        %4700 = vset.pattern.permute.xlu0 0
        %4701 = vperm.xlu0 %4700, %v754
        %v4702 = vpop.permute.xlu0 %4701
        %4705 = vset.pattern.permute.xlu0 0
        %4706 = vperm.xlu0 %4705, %v755
        %v4707 = vpop.permute.xlu0 %4706
        %4710 = vset.pattern.permute.xlu0 0
        %4711 = vperm.xlu0 %4710, %v756
        %v4712 = vpop.permute.xlu0 %4711
        %v4730 = vunpack.c.l.b16 %v4618
        %v4731 = vunpack.c.h.b16 %v4618
        %v4732 = vunpack.c.l.b16 %v4619
        %v4733 = vunpack.c.h.b16 %v4619
        %v4734 = vunpack.c.l.b16 %v4620
        %v4735 = vunpack.c.h.b16 %v4620
        %v4736 = vunpack.c.l.b16 %v4621
        %v4737 = vunpack.c.h.b16 %v4621
        %v4738 = vunpack.c.l.b16 %v4622
        %v4739 = vunpack.c.h.b16 %v4622
        %v4740 = vunpack.c.l.b16 %v4623
        %v4741 = vunpack.c.h.b16 %v4623
        %v4742 = vunpack.c.l.b16 %v4624
        %v4743 = vunpack.c.h.b16 %v4624
        %v4744 = vunpack.c.l.b16 %v4625
        %v4745 = vunpack.c.h.b16 %v4625
        %v4746 = vunpack.c.l.b16 %v4626
        %v4747 = vunpack.c.h.b16 %v4626
        %v4748 = vunpack.c.l.b16 %v4627
        %v4749 = vunpack.c.h.b16 %v4627
        %v4750 = vunpack.c.l.b16 %v4628
        %v4751 = vunpack.c.h.b16 %v4628
        %v4752 = vunpack.c.l.b16 %v4629
        %v4753 = vunpack.c.h.b16 %v4629
        %v4754 = vunpack.c.l.b16 %v4630
        %v4755 = vunpack.c.h.b16 %v4630
        %v4756 = vunpack.c.l.b16 %v4631
        %v4757 = vunpack.c.h.b16 %v4631
        %v4758 = vunpack.c.l.b16 %v4632
        %v4759 = vunpack.c.h.b16 %v4632
        %v4760 = vunpack.c.l.b16 %v4633
        %v4761 = vunpack.c.h.b16 %v4633
        %v4762 = vpack.c.b16 %v4732, %v4730
        %v4763 = vpack.c.b16 %v4733, %v4731
        %v4764 = vpack.c.b16 %v4736, %v4734
        %v4765 = vpack.c.b16 %v4737, %v4735
        %v4766 = vpack.c.b16 %v4740, %v4738
        %v4767 = vpack.c.b16 %v4741, %v4739
        %v4768 = vpack.c.b16 %v4744, %v4742
        %v4769 = vpack.c.b16 %v4745, %v4743
        %v4770 = vpack.c.b16 %v4748, %v4746
        %v4771 = vpack.c.b16 %v4749, %v4747
        %v4772 = vpack.c.b16 %v4752, %v4750
        %v4773 = vpack.c.b16 %v4753, %v4751
        %v4774 = vpack.c.b16 %v4756, %v4754
        %v4775 = vpack.c.b16 %v4757, %v4755
        %v4776 = vpack.c.b16 %v4760, %v4758
        %v4777 = vpack.c.b16 %v4761, %v4759
        %4794 = vmatprep.subr.bf16.mxu0 %v4587
        %4795 = vmatpush1.bf16.msra.mxu0 %v4586
        %4796 = vmatprep.subr.bf16.mxu0 %v4589
        %4797 = vmatpush1.bf16.msra.mxu0 %v4588
        %4798 = vmatprep.subr.bf16.mxu0 %v4591
        %4799 = vmatpush1.bf16.msra.mxu0 %v4590
        %4800 = vmatprep.subr.bf16.mxu0 %v4593
        %4801 = vmatpush1.bf16.msra.mxu0 %v4592
        %4802 = vmatprep.subr.bf16.mxu0 %v4595
        %4803 = vmatpush1.bf16.msra.mxu0 %v4594
        %4804 = vmatprep.subr.bf16.mxu0 %v4597
        %4805 = vmatpush1.bf16.msra.mxu0 %v4596
        %4806 = vmatprep.subr.bf16.mxu0 %v4599
        %4807 = vmatpush1.bf16.msra.mxu0 %v4598
        %4808 = vmatprep.subr.bf16.mxu0 %v4601
        %4809 = vmatpush1.bf16.msra.mxu0 %v4600
        %4810 = vmatprep.subr.bf16.mxu0 %v4603
        %4811 = vmatpush1.bf16.msra.mxu0 %v4602
        %4812 = vmatprep.subr.bf16.mxu0 %v4605
        %4813 = vmatpush1.bf16.msra.mxu0 %v4604
        %4814 = vmatprep.subr.bf16.mxu0 %v4607
        %4815 = vmatpush1.bf16.msra.mxu0 %v4606
        %4816 = vmatprep.subr.bf16.mxu0 %v4609
        %4817 = vmatpush1.bf16.msra.mxu0 %v4608
        %4818 = vmatprep.subr.bf16.mxu0 %v4611
        %4819 = vmatpush1.bf16.msra.mxu0 %v4610
        %4820 = vmatprep.subr.bf16.mxu0 %v4613
        %4821 = vmatpush1.bf16.msra.mxu0 %v4612
        %4822 = vmatprep.subr.bf16.mxu0 %v4615
        %4823 = vmatpush1.bf16.msra.mxu0 %v4614
        %4824 = vmatprep.subr.bf16.mxu0 %v4617
        %4825 = vmatpush1.bf16.msra.mxu0 %v4616
        %4826 = vmatprep.mubr.bf16.mxu0 %v4763
        %4827 = vmatmul.mubr.bf16.gmra.mrb[0].mxu0 %v4762
        %v4828 = vpop.f32.mrb[0].mxu0
        %v4829 = vadd.f32 %v4637, %v4828
        %v4830 = vpop.f32.mrb[0].mxu0
        %v4831 = vadd.f32 %v4637, %v4830
        %v4832 = vpop.f32.mrb[0].mxu0
        %v4833 = vadd.f32 %v4642, %v4832
        %v4834 = vpop.f32.mrb[0].mxu0
        %v4835 = vadd.f32 %v4642, %v4834
        %4836 = vmatprep.mubr.bf16.mxu0 %v4765
        %4837 = vmatmul.mubr.bf16.gmra.mrb[0].mxu0 %v4764
        %v4838 = vpop.f32.mrb[0].mxu0
        %v4839 = vadd.f32 %v4647, %v4838
        %v4840 = vpop.f32.mrb[0].mxu0
        %v4841 = vadd.f32 %v4647, %v4840
        %v4842 = vpop.f32.mrb[0].mxu0
        %v4843 = vadd.f32 %v4652, %v4842
        %v4844 = vpop.f32.mrb[0].mxu0
        %v4845 = vadd.f32 %v4652, %v4844
        %4846 = vmatprep.mubr.bf16.mxu0 %v4767
        %4847 = vmatmul.mubr.bf16.gmra.mrb[0].mxu0 %v4766
        %v4848 = vpop.f32.mrb[0].mxu0
        %v4849 = vadd.f32 %v4657, %v4848
        %v4850 = vpop.f32.mrb[0].mxu0
        %v4851 = vadd.f32 %v4657, %v4850
        %v4852 = vpop.f32.mrb[0].mxu0
        %v4853 = vadd.f32 %v4662, %v4852
        %v4854 = vpop.f32.mrb[0].mxu0
        %v4855 = vadd.f32 %v4662, %v4854
        %4856 = vmatprep.mubr.bf16.mxu0 %v4769
        %4857 = vmatmul.mubr.bf16.gmra.mrb[0].mxu0 %v4768
        %v4858 = vpop.f32.mrb[0].mxu0
        %v4859 = vadd.f32 %v4667, %v4858
        %v4860 = vpop.f32.mrb[0].mxu0
        %v4861 = vadd.f32 %v4667, %v4860
        %v4862 = vpop.f32.mrb[0].mxu0
        %v4863 = vadd.f32 %v4672, %v4862
        %v4864 = vpop.f32.mrb[0].mxu0
        %v4865 = vadd.f32 %v4672, %v4864
        %4866 = vmatprep.mubr.bf16.mxu0 %v4771
        %4867 = vmatmul.mubr.bf16.gmra.mrb[0].mxu0 %v4770
        %v4868 = vpop.f32.mrb[0].mxu0
        %v4869 = vadd.f32 %v4677, %v4868
        %v4870 = vpop.f32.mrb[0].mxu0
        %v4871 = vadd.f32 %v4677, %v4870
        %v4872 = vpop.f32.mrb[0].mxu0
        %v4873 = vadd.f32 %v4682, %v4872
        %v4874 = vpop.f32.mrb[0].mxu0
        %v4875 = vadd.f32 %v4682, %v4874
        %4876 = vmatprep.mubr.bf16.mxu0 %v4773
        %4877 = vmatmul.mubr.bf16.gmra.mrb[0].mxu0 %v4772
        %v4878 = vpop.f32.mrb[0].mxu0
        %v4879 = vadd.f32 %v4687, %v4878
        %v4880 = vpop.f32.mrb[0].mxu0
        %v4881 = vadd.f32 %v4687, %v4880
        %v4882 = vpop.f32.mrb[0].mxu0
        %v4883 = vadd.f32 %v4692, %v4882
        %v4884 = vpop.f32.mrb[0].mxu0
        %v4885 = vadd.f32 %v4692, %v4884
        %4886 = vmatprep.mubr.bf16.mxu0 %v4775
        %4887 = vmatmul.mubr.bf16.gmra.mrb[0].mxu0 %v4774
        %v4888 = vpop.f32.mrb[0].mxu0
        %v4889 = vadd.f32 %v4697, %v4888
        %v4890 = vpop.f32.mrb[0].mxu0
        %v4891 = vadd.f32 %v4697, %v4890
        %v4892 = vpop.f32.mrb[0].mxu0
        %v4893 = vadd.f32 %v4702, %v4892
        %v4894 = vpop.f32.mrb[0].mxu0
        %v4895 = vadd.f32 %v4702, %v4894
        %4896 = vmatprep.mubr.bf16.mxu0 %v4777
        %4897 = vmatmul.mubr.bf16.gmra.mrb[0].mxu0 %v4776
        %v4898 = vpop.f32.mrb[0].mxu0
        %v4899 = vadd.f32 %v4707, %v4898
        %v4900 = vpop.f32.mrb[0].mxu0
        %v4901 = vadd.f32 %v4707, %v4900
        %v4902 = vpop.f32.mrb[0].mxu0
        %v4903 = vadd.f32 %v4712, %v4902
        %v4904 = vpop.f32.mrb[0].mxu0
        %v4905 = vadd.f32 %v4712, %v4904
        %4906 = vdwg.mxu0
        %v4907 = vmax.f32 %v4829, 0.0
        %v4908 = vmax.f32 %v4831, 0.0
        %v4909 = vmax.f32 %v4833, 0.0
        %v4910 = vmax.f32 %v4835, 0.0
        %v4911 = vmax.f32 %v4839, 0.0
        %v4912 = vmax.f32 %v4841, 0.0
        %v4913 = vmax.f32 %v4843, 0.0
        %v4914 = vmax.f32 %v4845, 0.0
        %v4915 = vmax.f32 %v4849, 0.0
        %v4916 = vmax.f32 %v4851, 0.0
        %v4917 = vmax.f32 %v4853, 0.0
        %v4918 = vmax.f32 %v4855, 0.0
        %v4919 = vmax.f32 %v4859, 0.0
        %v4920 = vmax.f32 %v4861, 0.0
        %v4921 = vmax.f32 %v4863, 0.0
        %v4922 = vmax.f32 %v4865, 0.0
        %v4923 = vmax.f32 %v4869, 0.0
        %v4924 = vmax.f32 %v4871, 0.0
        %v4925 = vmax.f32 %v4873, 0.0
        %v4926 = vmax.f32 %v4875, 0.0
        %v4927 = vmax.f32 %v4879, 0.0
        %v4928 = vmax.f32 %v4881, 0.0
        %v4929 = vmax.f32 %v4883, 0.0
        %v4930 = vmax.f32 %v4885, 0.0
        %v4931 = vmax.f32 %v4889, 0.0
        %v4932 = vmax.f32 %v4891, 0.0
        %v4933 = vmax.f32 %v4893, 0.0
        %v4934 = vmax.f32 %v4895, 0.0
        %v4935 = vmax.f32 %v4899, 0.0
        %v4936 = vmax.f32 %v4901, 0.0
        %v4937 = vmax.f32 %v4903, 0.0
        %v4938 = vmax.f32 %v4905, 0.0
        %v4939 = vld [vmem:[#allocation11] sm:$0xff]
        %v4940 = vld [vmem:[#allocation11 + $0x8] sm:$0xff]
        %v4941 = vld [vmem:[#allocation11 + $0x10] sm:$0xff]
        %v4942 = vld [vmem:[#allocation11 + $0x18] sm:$0xff]
        %v4943 = vld [vmem:[#allocation11 + $0x20] sm:$0xff]
        %v4944 = vld [vmem:[#allocation11 + $0x28] sm:$0xff]
        %v4945 = vld [vmem:[#allocation11 + $0x30] sm:$0xff]
        %v4946 = vld [vmem:[#allocation11 + $0x38] sm:$0xff]
        %v4947 = vld [vmem:[#allocation11 + $0x40] sm:$0xff]
        %v4948 = vld [vmem:[#allocation11 + $0x48] sm:$0xff]
        %v4949 = vld [vmem:[#allocation11 + $0x50] sm:$0xff]
        %v4950 = vld [vmem:[#allocation11 + $0x58] sm:$0xff]
        %v4951 = vld [vmem:[#allocation11 + $0x60] sm:$0xff]
        %v4952 = vld [vmem:[#allocation11 + $0x68] sm:$0xff]
        %v4953 = vld [vmem:[#allocation11 + $0x70] sm:$0xff]
        %v4954 = vld [vmem:[#allocation11 + $0x78] sm:$0xff]
        %4956 = vset.pattern.permute.xlu0 0
        %4957 = vperm.xlu0 %4956, %v4939
        %v4958 = vpop.permute.xlu0 %4957
        %4961 = vset.pattern.permute.xlu0 0
        %4962 = vperm.xlu0 %4961, %v4940
        %v4963 = vpop.permute.xlu0 %4962
        %4966 = vset.pattern.permute.xlu0 0
        %4967 = vperm.xlu0 %4966, %v4941
        %v4968 = vpop.permute.xlu0 %4967
        %4971 = vset.pattern.permute.xlu0 0
        %4972 = vperm.xlu0 %4971, %v4942
        %v4973 = vpop.permute.xlu0 %4972
        %4976 = vset.pattern.permute.xlu0 0
        %4977 = vperm.xlu0 %4976, %v4943
        %v4978 = vpop.permute.xlu0 %4977
        %4981 = vset.pattern.permute.xlu0 0
        %4982 = vperm.xlu0 %4981, %v4944
        %v4983 = vpop.permute.xlu0 %4982
        %4986 = vset.pattern.permute.xlu0 0
        %4987 = vperm.xlu0 %4986, %v4945
        %v4988 = vpop.permute.xlu0 %4987
        %4991 = vset.pattern.permute.xlu0 0
        %4992 = vperm.xlu0 %4991, %v4946
        %v4993 = vpop.permute.xlu0 %4992
        %4996 = vset.pattern.permute.xlu0 0
        %4997 = vperm.xlu0 %4996, %v4947
        %v4998 = vpop.permute.xlu0 %4997
        %5001 = vset.pattern.permute.xlu0 0
        %5002 = vperm.xlu0 %5001, %v4948
        %v5003 = vpop.permute.xlu0 %5002
        %5006 = vset.pattern.permute.xlu0 0
        %5007 = vperm.xlu0 %5006, %v4949
        %v5008 = vpop.permute.xlu0 %5007
        %5011 = vset.pattern.permute.xlu0 0
        %5012 = vperm.xlu0 %5011, %v4950
        %v5013 = vpop.permute.xlu0 %5012
        %5016 = vset.pattern.permute.xlu0 0
        %5017 = vperm.xlu0 %5016, %v4951
        %v5018 = vpop.permute.xlu0 %5017
        %5021 = vset.pattern.permute.xlu0 0
        %5022 = vperm.xlu0 %5021, %v4952
        %v5023 = vpop.permute.xlu0 %5022
        %5026 = vset.pattern.permute.xlu0 0
        %5027 = vperm.xlu0 %5026, %v4953
        %v5028 = vpop.permute.xlu0 %5027
        %5031 = vset.pattern.permute.xlu0 0
        %5032 = vperm.xlu0 %5031, %v4954
        %v5033 = vpop.permute.xlu0 %5032
        %v5035 = vmul.f32 %v4907, %v4958
        %v5036 = vmul.f32 %v4908, %v4958
        %v5037 = vmul.f32 %v4909, %v4963
        %v5038 = vmul.f32 %v4910, %v4963
        %v5039 = vmul.f32 %v4911, %v4968
        %v5040 = vmul.f32 %v4912, %v4968
        %v5041 = vmul.f32 %v4913, %v4973
        %v5042 = vmul.f32 %v4914, %v4973
        %v5043 = vmul.f32 %v4915, %v4978
        %v5044 = vmul.f32 %v4916, %v4978
        %v5045 = vmul.f32 %v4917, %v4983
        %v5046 = vmul.f32 %v4918, %v4983
        %v5047 = vmul.f32 %v4919, %v4988
        %v5048 = vmul.f32 %v4920, %v4988
        %v5049 = vmul.f32 %v4921, %v4993
        %v5050 = vmul.f32 %v4922, %v4993
        %v5051 = vmul.f32 %v4923, %v4998
        %v5052 = vmul.f32 %v4924, %v4998
        %v5053 = vmul.f32 %v4925, %v5003
        %v5054 = vmul.f32 %v4926, %v5003
        %v5055 = vmul.f32 %v4927, %v5008
        %v5056 = vmul.f32 %v4928, %v5008
        %v5057 = vmul.f32 %v4929, %v5013
        %v5058 = vmul.f32 %v4930, %v5013
        %v5059 = vmul.f32 %v4931, %v5018
        %v5060 = vmul.f32 %v4932, %v5018
        %v5061 = vmul.f32 %v4933, %v5023
        %v5062 = vmul.f32 %v4934, %v5023
        %v5063 = vmul.f32 %v4935, %v5028
        %v5064 = vmul.f32 %v4936, %v5028
        %v5065 = vmul.f32 %v4937, %v5033
        %v5066 = vmul.f32 %v4938, %v5033
        %v5067 = vadd.f32 %v5035, %v5037
        %v5068 = vadd.f32 %v5067, %v5039
        %v5069 = vadd.f32 %v5068, %v5041
        %v5070 = vadd.f32 %v5069, %v5043
        %v5071 = vadd.f32 %v5070, %v5045
        %v5072 = vadd.f32 %v5071, %v5047
        %v5073 = vadd.f32 %v5072, %v5049
        %v5074 = vadd.f32 %v5073, %v5051
        %v5075 = vadd.f32 %v5074, %v5053
        %v5076 = vadd.f32 %v5075, %v5055
        %v5077 = vadd.f32 %v5076, %v5057
        %v5078 = vadd.f32 %v5077, %v5059
        %v5079 = vadd.f32 %v5078, %v5061
        %v5080 = vadd.f32 %v5079, %v5063
        %v5081 = vadd.f32 %v5080, %v5065
        %v5082 = vrot.slane %v5081, 4
        %v5083 = vadd.f32 %v5081, %v5082
        %v5084 = vrot.slane %v5083, 2
        %v5085 = vadd.f32 %v5083, %v5084
        %v5086 = vrot.slane %v5085, 1
        %v5087 = vadd.f32 %v5085, %v5086
        %v5088 = vadd.f32 %v5036, %v5038
        %v5089 = vadd.f32 %v5088, %v5040
        %v5090 = vadd.f32 %v5089, %v5042
        %v5091 = vadd.f32 %v5090, %v5044
        %v5092 = vadd.f32 %v5091, %v5046
        %v5093 = vadd.f32 %v5092, %v5048
        %v5094 = vadd.f32 %v5093, %v5050
        %v5095 = vadd.f32 %v5094, %v5052
        %v5096 = vadd.f32 %v5095, %v5054
        %v5097 = vadd.f32 %v5096, %v5056
        %v5098 = vadd.f32 %v5097, %v5058
        %v5099 = vadd.f32 %v5098, %v5060
        %v5100 = vadd.f32 %v5099, %v5062
        %v5101 = vadd.f32 %v5100, %v5064
        %v5102 = vadd.f32 %v5101, %v5066
        %v5103 = vrot.slane %v5102, 4
        %v5104 = vadd.f32 %v5102, %v5103
        %v5105 = vrot.slane %v5104, 2
        %v5106 = vadd.f32 %v5104, %v5105
        %v5107 = vrot.slane %v5106, 1
        %v5108 = vadd.f32 %v5106, %v5107
        %v5109 = vxor.u32 %v5087, 2147483648
        %v5110 = vxor.u32 %v5108, 2147483648
        %v5111 = vmul.f32 %v5109, 1.442695
        %v5112 = vpow.pop %v5111
        %v5113 = vmul.f32 %v5110, 1.442695
        %v5114 = vpow.pop %v5113
        %v5115 = vadd.f32 %v5112, 1.0
        %v5116 = vadd.f32 %v5114, 1.0
        %v5117 = vrcp.pop %v5115
        %v5118 = vmul.f32 1.0, %v5117
        %v5119 = vrcp.pop %v5116
        %v5120 = vmul.f32 1.0, %v5119
        %v5123 = vcombine.low %v5118, %v5120
        %v5125 = vunpack.c.l.s4 1966171168
        %v5126 = vunpack.c.0.s8 %v5125
        %v5127 = vlaneseq
        %v5128 = vshrl.u32 %v5127, 7
        %v5129 = vsub.s32 %v5126, %v5128
        %v5130 = vrot.slane %v5123, %v5129
        %v5132 = vunpack.c.l.s4 1966171168
        %v5133 = vunpack.c.0.s8 %v5132
        %v5134 = vlaneseq
        %v5135 = vshrl.u32 %v5134, 7
        %v5136 = vsub.s32 %v5133, %v5135
        %v5137 = vrot.slane %v5130, %v5136
        %v5139 = vlaneseq
        %vm5140 = vcmp.ge.s32.totalorder %v5139, 0
        %vm5141 = vcmp.lt.s32.totalorder %v5139, 256
        %vm5142 = vmand %vm5140, %vm5141
        %5143 = vst.msk [vmem:[%s401] sm:$0x3] %vm5142, %v5137
        %s5144 = sand.u32 %s203, 1
        %s5145 = scalar_lea.sflag [#allocation4], %s5144
        %s5146 = sand.u32 %s203, 1
        %s5147 = smul.addr %s5146, 2
        %s5148 = scalar_lea.vmem [#allocation14], %s5147
        // Predicated region
        $region77: #{discriminator_forward.1} parent=47 // pred_check
          %p5149 = pneg %p213
        $region78: #{discriminator_forward.1} parent=47 // pred_check_branch
          %5151 = sbr.rel (%p5149) target = $region80
        $region79: #{discriminator_forward.1} parent=47 // pred_region
          %s5152 = smul.u32 2, %s32
          %s5154 = ssub.s32 32, 32
          %5155 = vsyncadd %s5145, %s5154
          %s5156 = smul.addr %s31, 2
          %s5157 = sadd.s32 %s5152, %s5156
          %s5158 = smul.addr %s5157, 16
          %s5159 = scalar_lea.hbm %s7, %s5158
          %s5161 = sshll.u32 %s5148, 4
          %s5162 = int_to_ptr.vmem [resolvable:$true] %s5161
          %5164 = dma.vmem_to_hbm [thread:$0]  %s5162, 32, %s5159, %s5145
        $region80: #{discriminator_forward.1} parent=47 // pred_fallthru
          _
      $region48: #{discriminator_forward.1} parent=5 // pred_fallthru
        _
      %p5165 = scmp.le.s32.totalorder 2, %s22
      // Predicated region
      $region81: #{discriminator_forward.1} parent=5 // pred_check
        %p5166 = pneg %p5165
      $region82: #{discriminator_forward.1} parent=5 // pred_check_branch
        %5168 = sbr.rel (%p5166) target = $region84
      $region83: #{discriminator_forward.1} parent=5 // pred_region
        %s5169 = ssub.s32 %s22, 2
        // Predicated region
        $region85: #{discriminator_forward.1} parent=83 // pred_check
          %p5170 = pneg %p219
        $region86: #{discriminator_forward.1} parent=83 // pred_check_branch
          %5172 = sbr.rel (%p5170) target = $region88
        $region87: #{discriminator_forward.1} parent=83 // pred_region
          %s5173 = sand.u32 %s204, 1
          %s5174 = scalar_lea.sflag [#allocation4], %s5173
          %s5175 = sand.u32 %s204, 1
          %s5176 = smul.addr %s5175, 2
          %s5177 = scalar_lea.vmem [#allocation14], %s5176
          %5178 = dma.done %s5174, 32
        $region88: #{discriminator_forward.1} parent=83 // pred_fallthru
          _
      $region84: #{discriminator_forward.1} parent=5 // pred_fallthru
        _
    $region6: #{discriminator_forward.1} parent=1 // loop_footer
      %s26 = sadd.s32 1, %s22
    $region7: #{discriminator_forward.1} parent=1 // loop_footer_branch
      %21 = sbr.rel target = $region3
    $region8: #{discriminator_forward.1} parent=1 // loop_exit
      _
    %5179 = vsyncpa [#allocation3], 1
    %s5180 = scalar_lea.sflag [#allocation3], 1
    %5181 = vsyncpa %s5180, 1
    %5182 = vsyncpa [#allocation6], 1
    %5183 = vsyncpa [#allocation9], 1
    %5184 = vsyncpa [#allocation12], 1
    %5185 = vsyncpa [#allocation4], 1
    %s5186 = scalar_lea.sflag [#allocation4], 1
    %5187 = vsyncpa %s5186, 1

</llo_original>
